<compile_context>
chip_gen: v7x
topology: tpu7x:2x2x1
jax: 0.10.0
libtpu: 0.0.40
codegen_flags: <defaults>
</compile_context>

<pallas_src>
import math
from functools import partial

import jax
import jax.numpy as jnp
from jax import lax
from jax.experimental import pallas as pl
from jax.experimental.pallas import tpu as pltpu

DMODEL = 128    # small-shape stand-in for the torch default dmodel=512
NHEAD = 4
NLAYERS = 2
OUT_PAD = 128   # lane-dense packed output width: [mean | std | zero pad]


# ---------------------------------------------------------------------------
# Fused Pallas kernel: entire EncoderTrans forward
# ---------------------------------------------------------------------------
def _encoder_kernel(
    seq_ref,                                   # (N,)   int32  SMEM
    x_ref, pe_ref,                             # (R,5)  f32, (R,D) f32
    emb_w_ref, emb_b_ref,                      # (5,D)  bf16, (1,D) f32
    wqkv_ref, bqkv_ref,                        # (L,D,3D) bf16, (L,1,3D) f32
    wo_ref, bo_ref,                            # (L,D,D) bf16, (L,1,D) f32
    ln1_g_ref, ln1_b_ref,                      # (L,1,D) f32
    w1_ref, b1_ref, w2_ref, b2_ref,            # FFN weights bf16 / biases f32
    ln2_g_ref, ln2_b_ref,
    fln_g_ref, fln_b_ref,                      # (1,D) f32
    out_w_ref, out_b_ref,                      # (D,P) bf16, (1,P) f32
    out_ref,                                   # (N,P) f32
    *, n_batch, s_len, n_layers, n_heads, z_size,
):
    f32, bf16 = jnp.float32, jnp.bfloat16
    D = pe_ref.shape[1]
    hd = D // n_heads
    R = n_batch * s_len
    HR = n_heads * R
    scale = 1.0 / math.sqrt(hd)

    # integer div/mod by static positive ints (shift/and fast path for powers of two)
    def idiv(x, d):
        return jnp.right_shift(x, d.bit_length() - 1) if d & (d - 1) == 0 else x // d

    def imod(x, d):
        return jnp.bitwise_and(x, d - 1) if d & (d - 1) == 0 else x % d

    def layernorm(v, g, b):
        m = jnp.mean(v, axis=-1, keepdims=True)
        c = v - m
        var = jnp.mean(c * c, axis=-1, keepdims=True)
        return c * lax.rsqrt(var + 1e-5) * g + b

    # ---- additive bias for the head-stacked (H*R, H*R) score matrix ------------
    # stacked index a = head * R + (batch * S + pos)
    aa = lax.broadcasted_iota(jnp.int32, (HR, HR), 0)   # stacked query index
    bb = lax.broadcasted_iota(jnp.int32, (HR, HR), 1)   # stacked key index
    row_a, row_b = imod(aa, R), imod(bb, R)
    same_head = idiv(aa, R) == idiv(bb, R)
    batch_a, batch_b = idiv(row_a, s_len), idiv(row_b, s_len)
    pos_b = imod(row_b, s_len)
    seq_b = jnp.zeros((HR, HR), jnp.int32)
    for n in range(n_batch):
        seq_b = jnp.where(batch_b == n, seq_ref[n], seq_b)
    keep = same_head & (batch_a == batch_b) & (pos_b < seq_b)
    bias = jnp.where(keep, 0.0, -1e9)                   # (HR, HR) f32, reused by all layers

    # ---- row validity (R,1) for the masked max-pool -----------------------------
    ridx = lax.broadcasted_iota(jnp.int32, (R, 1), 0)
    rbatch = idiv(ridx, s_len)
    rpos = imod(ridx, s_len)
    seq_r = jnp.zeros((R, 1), jnp.int32)
    for n in range(n_batch):
        seq_r = jnp.where(rbatch == n, seq_ref[n], seq_r)
    row_valid = rpos < seq_r

    # ---- embedding (Linear 5 -> D) + positional encoding (dropout omitted) ------
    h = (jnp.dot(x_ref[...].astype(bf16), emb_w_ref[...], preferred_element_type=f32)
         + emb_b_ref[...] + pe_ref[...])                                     # (R, D) f32

    def stack_heads(t):     # (R, H*hd) -> (H*R, hd), head-major row blocks
        return jnp.concatenate(
            [t[:, k * hd:(k + 1) * hd] for k in range(n_heads)], axis=0)

    for l in range(n_layers):
        # ---- self-attention: one score matmul / softmax / PV for all heads & batches
        qkv = jnp.dot(h.astype(bf16), wqkv_ref[l],
                      preferred_element_type=f32) + bqkv_ref[l]              # (R, 3D)
        qs = stack_heads(qkv[:, :D]).astype(bf16)                            # (HR, hd)
        ks = stack_heads(qkv[:, D:2 * D]).astype(bf16)
        vs = stack_heads(qkv[:, 2 * D:]).astype(bf16)

        s = lax.dot_general(qs, ks, (((1,), (1,)), ((), ())),
                            preferred_element_type=f32) * scale + bias       # (HR, HR)
        s = s - jnp.max(s, axis=-1, keepdims=True)
        p = jnp.exp(s)
        p = p * pl.reciprocal(jnp.sum(p, axis=-1, keepdims=True), approx=True)
        o = jnp.dot(p.astype(bf16), vs, preferred_element_type=f32)          # (HR, hd)

        # output projection: per-head sublane block of o x matching row block of W_o
        wo_l = wo_ref[l]
        attn = jnp.zeros((R, D), f32)
        for k in range(n_heads):
            attn = attn + jnp.dot(o[k * R:(k + 1) * R, :].astype(bf16),
                                  wo_l[k * hd:(k + 1) * hd, :],
                                  preferred_element_type=f32)
        attn = attn + bo_ref[l]
        h = layernorm(h + attn, ln1_g_ref[l], ln1_b_ref[l])

        # ---- feed-forward (ReLU) ----
        f = jnp.dot(h.astype(bf16), w1_ref[l], preferred_element_type=f32) + b1_ref[l]
        f = jnp.maximum(f, 0.0)
        f = jnp.dot(f.astype(bf16), w2_ref[l], preferred_element_type=f32) + b2_ref[l]
        h = layernorm(h + f, ln2_g_ref[l], ln2_b_ref[l])

    # Final TransformerEncoder norm.
    h = layernorm(h, fln_g_ref[...], fln_b_ref[...])

    # Masked max-pool over valid timesteps, per batch element (one XLU reduce).
    hm = jnp.where(row_valid, h, -1e30)
    pooled = jnp.max(hm.reshape(n_batch, s_len, D), axis=1)                  # (N, D)

    # Fused fc_mu / fc_sigma into one lane-dense slab: [mean | std | pad].
    raw = jnp.dot(pooled.astype(bf16), out_w_ref[...],
                  preferred_element_type=f32) + out_b_ref[...]               # (N, P)
    lane = lax.broadcasted_iota(jnp.int32, raw.shape, 1)
    out_ref[...] = jnp.where(lane < z_size, raw, jnp.exp(0.5 * raw))


# ---------------------------------------------------------------------------
# Wrapper (pure JAX glue: layout, positional encoding, bf16 weight casts)
# ---------------------------------------------------------------------------
def positional_encoding(S, D):
    position = jnp.arange(S, dtype=jnp.float32)[:, None]
    div_term = jnp.exp(jnp.arange(0, D, 2, dtype=jnp.float32) * (-math.log(10000.0) / D))
    pe = jnp.zeros((S, D), jnp.float32)
    pe = pe.at[:, 0::2].set(jnp.sin(position * div_term))
    pe = pe.at[:, 1::2].set(jnp.cos(position * div_term))
    return pe


@partial(jax.jit, static_argnames=("z_size",))
def _forward_jit(params, x, seq_len, *, z_size):
    S, N, _ = x.shape
    D = params["emb_w"].shape[1]
    R = N * S
    P = OUT_PAD
    assert 2 * z_size <= P
    bf16 = jnp.bfloat16

    # batch-major flatten: row r = n * S + s
    x2d = jnp.transpose(x, (1, 0, 2)).reshape(R, 5).astype(jnp.float32)
    pe_flat = jnp.tile(positional_encoding(S, D), (N, 1))                    # (R, D)

    # fc_mu / fc_sigma fused into one lane-dense (D, 128) head.
    out_w = jnp.zeros((D, P), jnp.float32)
    out_w = out_w.at[:, :z_size].set(params["mu_w"]).at[:, z_size:2 * z_size].set(params["sg_w"])
    out_b = jnp.zeros((1, P), jnp.float32)
    out_b = out_b.at[:, :z_size].set(params["mu_b"]).at[:, z_size:2 * z_size].set(params["sg_b"])

    args = (
        seq_len.astype(jnp.int32),                                           # -> SMEM
        x2d, pe_flat,
        params["emb_w"].astype(bf16), params["emb_b"],
        params["wqkv"].astype(bf16), params["bqkv"],
        params["wo"].astype(bf16), params["bo"],
        params["ln1_g"], params["ln1_b"],
        params["w1"].astype(bf16), params["b1"],
        params["w2"].astype(bf16), params["b2"],
        params["ln2_g"], params["ln2_b"],
        params["fln_g"], params["fln_b"],
        out_w.astype(bf16), out_b,
    )

    # VMEM budget from actual residency (no grid: every operand resident once) + slack.
    resident = sum(int(a.size) * a.dtype.itemsize for a in args) + N * P * 4
    vmem_limit = int(2 * resident) + (8 << 20)

    kernel = partial(_encoder_kernel, n_batch=N, s_len=S,
                     n_layers=NLAYERS, n_heads=NHEAD, z_size=z_size)

    smem = pl.BlockSpec(memory_space=pltpu.MemorySpace.SMEM)
    vmem = pl.BlockSpec(memory_space=pltpu.MemorySpace.VMEM)

    out = pl.pallas_call(
        kernel,
        out_shape=jax.ShapeDtypeStruct((N, P), jnp.float32),
        in_specs=[smem] + [vmem] * (len(args) - 1),
        out_specs=vmem,
        compiler_params=pltpu.CompilerParams(vmem_limit_bytes=vmem_limit),
    )(*args)

    mean = out[:, :z_size]
    std = out[:, z_size:2 * z_size]
    return mean, std


def encoder_trans_forward(params, x, seq_len, hp):
    """x: (S, N, 5) seq-first strokes; seq_len: (N,) valid lengths.
    Returns (mean, std) of the posterior Normal, both (N, z_size)."""
    return _forward_jit(params, x, seq_len, z_size=hp["z_size"])


# ---------------------------------------------------------------------------
# Pure-JAX reference (for correctness check)
# ---------------------------------------------------------------------------
def _ln_ref(v, g, b):
    m = jnp.mean(v, axis=-1, keepdims=True)
    var = jnp.mean((v - m) ** 2, axis=-1, keepdims=True)
    return (v - m) * jax.lax.rsqrt(var + 1e-5) * g + b


def ref_forward(params, x, seq_len, hp):
    S, N, _ = x.shape
    D, H = DMODEL, NHEAD
    hd = D // H
    h = jnp.einsum("snf,fd->snd", x, params["emb_w"]) + params["emb_b"][0]
    h = h + positional_encoding(S, D)[:, None, :]
    key_valid = jnp.arange(S)[None, :] < seq_len[:, None]                    # (N, S)
    for l in range(NLAYERS):
        qkv = jnp.einsum("snd,de->sne", h, params["wqkv"][l]) + params["bqkv"][l][0]
        q, k, v = qkv[..., :D], qkv[..., D:2 * D], qkv[..., 2 * D:]
        q = q.reshape(S, N, H, hd); k = k.reshape(S, N, H, hd); v = v.reshape(S, N, H, hd)
        s = jnp.einsum("qnhd,knhd->nhqk", q, k) / math.sqrt(hd)
        s = jnp.where(key_valid[:, None, None, :], s, -1e9)
        p = jax.nn.softmax(s, axis=-1)
        o = jnp.einsum("nhqk,knhd->qnhd", p, v).reshape(S, N, D)
        o = jnp.einsum("snd,de->sne", o, params["wo"][l]) + params["bo"][l][0]
        h = _ln_ref(h + o, params["ln1_g"][l][0], params["ln1_b"][l][0])
        f = jax.nn.relu(jnp.einsum("snd,df->snf", h, params["w1"][l]) + params["b1"][l][0])
        f = jnp.einsum("snf,fd->snd", f, params["w2"][l]) + params["b2"][l][0]
        h = _ln_ref(h + f, params["ln2_g"][l][0], params["ln2_b"][l][0])
    h = _ln_ref(h, params["fln_g"][0], params["fln_b"][0])
    hm = jnp.where(key_valid.T[:, :, None], h, -1e30)
    pooled = jnp.max(hm, axis=0)                                             # (N, D)
    mean = pooled @ params["mu_w"] + params["mu_b"][0]
    logv = pooled @ params["sg_w"] + params["sg_b"][0]
    return mean, jnp.exp(0.5 * logv)


# ---------------------------------------------------------------------------
# Deterministic synthetic parameters (shapes follow the torch __init__)
# ---------------------------------------------------------------------------
def init_params(key, hp, dmodel=DMODEL, nlayers=NLAYERS):
    F = hp["dim_feedforward"]
    Z = hp["z_size"]
    kit = iter(jax.random.split(key, 32))

    def w(shape):
        return jax.random.normal(next(kit), shape, jnp.float32) * 0.02

    zeros = lambda s: jnp.zeros(s, jnp.float32)
    ones = lambda s: jnp.ones(s, jnp.float32)

    return dict(
        emb_w=w((5, dmodel)), emb_b=zeros((1, dmodel)),
        wqkv=w((nlayers, dmodel, 3 * dmodel)), bqkv=zeros((nlayers, 1, 3 * dmodel)),
        wo=w((nlayers, dmodel, dmodel)), bo=zeros((nlayers, 1, dmodel)),
        ln1_g=ones((nlayers, 1, dmodel)), ln1_b=zeros((nlayers, 1, dmodel)),
        w1=w((nlayers, dmodel, F)), b1=zeros((nlayers, 1, F)),
        w2=w((nlayers, F, dmodel)), b2=zeros((nlayers, 1, dmodel)),
        ln2_g=ones((nlayers, 1, dmodel)), ln2_b=zeros((nlayers, 1, dmodel)),
        fln_g=ones((1, dmodel)), fln_b=zeros((1, dmodel)),
        mu_w=w((dmodel, Z)), mu_b=zeros((1, Z)),
        sg_w=w((dmodel, Z)), sg_b=zeros((1, Z)),
    )


# ---------------------------------------------------------------------------
if __name__ == "__main__":
    hp = dict(z_size=32, dim_feedforward=256, single_embedding=True)
    S, N = 8, 2

    key = jax.random.PRNGKey(0)
    k_x, k_p = jax.random.split(key)
    x = jax.random.normal(k_x, (S, N, 5), jnp.float32)       # seq-first strokes
    seq_len = jnp.array([8, 5], jnp.int32)                    # variable valid lengths
    params = init_params(k_p, hp)

    mean, std = encoder_trans_forward(params, x, seq_len, hp)
    mean, std = jax.block_until_ready((mean, std))

    ref_mean, ref_std = ref_forward(params, x, seq_len, hp)

    assert mean.shape == (N, hp["z_size"]) and std.shape == (N, hp["z_size"])
    assert bool(jnp.all(jnp.isfinite(mean))) and bool(jnp.all(std > 0))
    assert bool(jnp.allclose(mean, ref_mean, atol=2e-2, rtol=2e-2))
    assert bool(jnp.allclose(std, ref_std, atol=2e-2, rtol=2e-2))
    print("KERNEL_OK")
</pallas_src>

<mosaic_0001>
module attributes {stable_mosaic.version = 11 : i64} {
  func.func @_encoder_kernel(%arg0: memref<2xi32, #tpu.memory_space<smem>>, %arg1: memref<16x5xf32, #tpu.memory_space<vmem>>, %arg2: memref<16x128xf32, #tpu.memory_space<vmem>>, %arg3: memref<5x128xbf16, #tpu.memory_space<vmem>>, %arg4: memref<1x128xf32, #tpu.memory_space<vmem>>, %arg5: memref<2x128x384xbf16, #tpu.memory_space<vmem>>, %arg6: memref<2x1x384xf32, #tpu.memory_space<vmem>>, %arg7: memref<2x128x128xbf16, #tpu.memory_space<vmem>>, %arg8: memref<2x1x128xf32, #tpu.memory_space<vmem>>, %arg9: memref<2x1x128xf32, #tpu.memory_space<vmem>>, %arg10: memref<2x1x128xf32, #tpu.memory_space<vmem>>, %arg11: memref<2x128x256xbf16, #tpu.memory_space<vmem>>, %arg12: memref<2x1x256xf32, #tpu.memory_space<vmem>>, %arg13: memref<2x256x128xbf16, #tpu.memory_space<vmem>>, %arg14: memref<2x1x128xf32, #tpu.memory_space<vmem>>, %arg15: memref<2x1x128xf32, #tpu.memory_space<vmem>>, %arg16: memref<2x1x128xf32, #tpu.memory_space<vmem>>, %arg17: memref<1x128xf32, #tpu.memory_space<vmem>>, %arg18: memref<1x128xf32, #tpu.memory_space<vmem>>, %arg19: memref<128x128xbf16, #tpu.memory_space<vmem>>, %arg20: memref<1x128xf32, #tpu.memory_space<vmem>>, %arg21: memref<2x128xf32, #tpu.memory_space<vmem>>) attributes {dimension_semantics = [], scalar_prefetch = 0 : i64, scratch_operands = 0 : i64, tpu.core_type = #tpu.core_type<tc>} {
    %0 = tpu.iota {dimensions = array<i32: 0>} : vector<64x64xi32>
    %1 = tpu.iota {dimensions = array<i32: 1>} : vector<64x64xi32>
    %c15_i32 = arith.constant 15 : i32
    %2 = vector.broadcast %c15_i32 : i32 to vector<64x64xi32>
    %3 = arith.andi %0, %2 : vector<64x64xi32>
    %c15_i32_0 = arith.constant 15 : i32
    %4 = vector.broadcast %c15_i32_0 : i32 to vector<64x64xi32>
    %5 = arith.andi %1, %4 : vector<64x64xi32>
    %c4_i32 = arith.constant 4 : i32
    %6 = vector.broadcast %c4_i32 : i32 to vector<64x64xi32>
    %7 = arith.shrsi %0, %6 : vector<64x64xi32>
    %c4_i32_1 = arith.constant 4 : i32
    %8 = vector.broadcast %c4_i32_1 : i32 to vector<64x64xi32>
    %9 = arith.shrsi %1, %8 : vector<64x64xi32>
    %10 = arith.cmpi eq, %7, %9 : vector<64x64xi32>
    %c3_i32 = arith.constant 3 : i32
    %11 = vector.broadcast %c3_i32 : i32 to vector<64x64xi32>
    %12 = arith.shrsi %3, %11 : vector<64x64xi32>
    %c3_i32_2 = arith.constant 3 : i32
    %13 = vector.broadcast %c3_i32_2 : i32 to vector<64x64xi32>
    %14 = arith.shrsi %5, %13 : vector<64x64xi32>
    %c7_i32 = arith.constant 7 : i32
    %15 = vector.broadcast %c7_i32 : i32 to vector<64x64xi32>
    %16 = arith.andi %5, %15 : vector<64x64xi32>
    %c0_i32 = arith.constant 0 : i32
    %17 = vector.broadcast %c0_i32 : i32 to vector<64x64xi32>
    %c0_i32_3 = arith.constant 0 : i32
    %18 = vector.broadcast %c0_i32_3 : i32 to vector<64x64xi32>
    %19 = arith.cmpi eq, %14, %18 : vector<64x64xi32>
    %c0 = arith.constant 0 : index
    %20 = memref.load %arg0[%c0] : memref<2xi32, #tpu.memory_space<smem>>
    %21 = vector.broadcast %20 : i32 to vector<64x64xi32>
    %22 = arith.select %19, %21, %17 : vector<64x64xi1>, vector<64x64xi32>
    %c1_i32 = arith.constant 1 : i32
    %23 = vector.broadcast %c1_i32 : i32 to vector<64x64xi32>
    %24 = arith.cmpi eq, %14, %23 : vector<64x64xi32>
    %c1 = arith.constant 1 : index
    %25 = memref.load %arg0[%c1] : memref<2xi32, #tpu.memory_space<smem>>
    %26 = vector.broadcast %25 : i32 to vector<64x64xi32>
    %27 = arith.select %24, %26, %22 : vector<64x64xi1>, vector<64x64xi32>
    %28 = arith.cmpi eq, %12, %14 : vector<64x64xi32>
    %29 = arith.andi %10, %28 : vector<64x64xi1>
    %30 = arith.cmpi slt, %16, %27 : vector<64x64xi32>
    %31 = arith.andi %29, %30 : vector<64x64xi1>
    %cst = arith.constant 0.000000e+00 : f32
    %cst_4 = arith.constant -1.000000e+09 : f32
    %32 = vector.broadcast %cst : f32 to vector<64x64xf32>
    %33 = vector.broadcast %cst_4 : f32 to vector<64x64xf32>
    %34 = arith.select %31, %32, %33 : vector<64x64xi1>, vector<64x64xf32>
    %35 = tpu.iota {dimensions = array<i32: 0>} : vector<16x1xi32>
    %c3_i32_5 = arith.constant 3 : i32
    %36 = vector.broadcast %c3_i32_5 : i32 to vector<16x1xi32>
    %37 = arith.shrsi %35, %36 : vector<16x1xi32>
    %c7_i32_6 = arith.constant 7 : i32
    %38 = vector.broadcast %c7_i32_6 : i32 to vector<16x1xi32>
    %39 = arith.andi %35, %38 : vector<16x1xi32>
    %c0_i32_7 = arith.constant 0 : i32
    %40 = vector.broadcast %c0_i32_7 : i32 to vector<16x1xi32>
    %c0_i32_8 = arith.constant 0 : i32
    %41 = vector.broadcast %c0_i32_8 : i32 to vector<16x1xi32>
    %42 = arith.cmpi eq, %37, %41 : vector<16x1xi32>
    %c0_9 = arith.constant 0 : index
    %43 = memref.load %arg0[%c0_9] : memref<2xi32, #tpu.memory_space<smem>>
    %44 = vector.broadcast %43 : i32 to vector<16x1xi32>
    %45 = arith.select %42, %44, %40 : vector<16x1xi1>, vector<16x1xi32>
    %c1_i32_10 = arith.constant 1 : i32
    %46 = vector.broadcast %c1_i32_10 : i32 to vector<16x1xi32>
    %47 = arith.cmpi eq, %37, %46 : vector<16x1xi32>
    %c1_11 = arith.constant 1 : index
    %48 = memref.load %arg0[%c1_11] : memref<2xi32, #tpu.memory_space<smem>>
    %49 = vector.broadcast %48 : i32 to vector<16x1xi32>
    %50 = arith.select %47, %49, %45 : vector<16x1xi1>, vector<16x1xi32>
    %51 = arith.cmpi slt, %39, %50 : vector<16x1xi32>
    %c0_12 = arith.constant 0 : index
    %c0_13 = arith.constant 0 : index
    %52 = vector.load %arg1[%c0_12, %c0_13] : memref<16x5xf32, #tpu.memory_space<vmem>>, vector<16x5xf32>
    %53 = arith.truncf %52 : vector<16x5xf32> to vector<16x5xbf16>
    %c0_14 = arith.constant 0 : index
    %c0_15 = arith.constant 0 : index
    %54 = vector.load %arg3[%c0_14, %c0_15] : memref<5x128xbf16, #tpu.memory_space<vmem>>, vector<5x128xbf16>
    %cst_16 = arith.constant dense<0.000000e+00> : vector<16x128xf32>
    %55 = tpu.matmul %53, %54, %cst_16 {dimension_numbers = #tpu.dot_dimension_numbers<[1], [0], [0], [1], [0, 0, 1, 1], [], []>} : vector<16x5xbf16>, vector<5x128xbf16>, vector<16x128xf32> -> vector<16x128xf32>
    %c0_17 = arith.constant 0 : index
    %c0_18 = arith.constant 0 : index
    %56 = vector.load %arg4[%c0_17, %c0_18] : memref<1x128xf32, #tpu.memory_space<vmem>>, vector<1x128xf32>
    %57 = vector.broadcast %56 : vector<1x128xf32> to vector<16x128xf32>
    %58 = arith.addf %55, %57 : vector<16x128xf32>
    %c0_19 = arith.constant 0 : index
    %c0_20 = arith.constant 0 : index
    %59 = vector.load %arg2[%c0_19, %c0_20] : memref<16x128xf32, #tpu.memory_space<vmem>>, vector<16x128xf32>
    %60 = arith.addf %58, %59 : vector<16x128xf32>
    %61 = arith.truncf %60 : vector<16x128xf32> to vector<16x128xbf16>
    %c0_21 = arith.constant 0 : index
    %c0_22 = arith.constant 0 : index
    %c0_23 = arith.constant 0 : index
    %62 = vector.load %arg5[%c0_21, %c0_22, %c0_23] : memref<2x128x384xbf16, #tpu.memory_space<vmem>>, vector<1x128x384xbf16>
    %63 = vector.shape_cast %62 : vector<1x128x384xbf16> to vector<128x384xbf16>
    %cst_24 = arith.constant dense<0.000000e+00> : vector<16x384xf32>
    %64 = tpu.matmul %61, %63, %cst_24 {dimension_numbers = #tpu.dot_dimension_numbers<[1], [0], [0], [1], [0, 0, 1, 1], [], []>} : vector<16x128xbf16>, vector<128x384xbf16>, vector<16x384xf32> -> vector<16x384xf32>
    %c0_25 = arith.constant 0 : index
    %c0_26 = arith.constant 0 : index
    %c0_27 = arith.constant 0 : index
    %65 = vector.load %arg6[%c0_25, %c0_26, %c0_27] : memref<2x1x384xf32, #tpu.memory_space<vmem>>, vector<1x1x384xf32>
    %66 = vector.shape_cast %65 : vector<1x1x384xf32> to vector<1x384xf32>
    %67 = vector.broadcast %66 : vector<1x384xf32> to vector<16x384xf32>
    %68 = arith.addf %64, %67 : vector<16x384xf32>
    %69 = vector.extract_strided_slice %68 {offsets = [0, 0], sizes = [16, 128], strides = [1, 1]} : vector<16x384xf32> to vector<16x128xf32>
    %70 = vector.extract_strided_slice %69 {offsets = [0, 0], sizes = [16, 32], strides = [1, 1]} : vector<16x128xf32> to vector<16x32xf32>
    %71 = vector.extract_strided_slice %69 {offsets = [0, 32], sizes = [16, 32], strides = [1, 1]} : vector<16x128xf32> to vector<16x32xf32>
    %72 = vector.extract_strided_slice %69 {offsets = [0, 64], sizes = [16, 32], strides = [1, 1]} : vector<16x128xf32> to vector<16x32xf32>
    %73 = vector.extract_strided_slice %69 {offsets = [0, 96], sizes = [16, 32], strides = [1, 1]} : vector<16x128xf32> to vector<16x32xf32>
    %74 = tpu.concatenate %70, %71, %72, %73 in 0 : vector<16x32xf32>, vector<16x32xf32>, vector<16x32xf32>, vector<16x32xf32> -> vector<64x32xf32>
    %75 = arith.truncf %74 : vector<64x32xf32> to vector<64x32xbf16>
    %76 = vector.extract_strided_slice %68 {offsets = [0, 128], sizes = [16, 128], strides = [1, 1]} : vector<16x384xf32> to vector<16x128xf32>
    %77 = vector.extract_strided_slice %76 {offsets = [0, 0], sizes = [16, 32], strides = [1, 1]} : vector<16x128xf32> to vector<16x32xf32>
    %78 = vector.extract_strided_slice %76 {offsets = [0, 32], sizes = [16, 32], strides = [1, 1]} : vector<16x128xf32> to vector<16x32xf32>
    %79 = vector.extract_strided_slice %76 {offsets = [0, 64], sizes = [16, 32], strides = [1, 1]} : vector<16x128xf32> to vector<16x32xf32>
    %80 = vector.extract_strided_slice %76 {offsets = [0, 96], sizes = [16, 32], strides = [1, 1]} : vector<16x128xf32> to vector<16x32xf32>
    %81 = tpu.concatenate %77, %78, %79, %80 in 0 : vector<16x32xf32>, vector<16x32xf32>, vector<16x32xf32>, vector<16x32xf32> -> vector<64x32xf32>
    %82 = arith.truncf %81 : vector<64x32xf32> to vector<64x32xbf16>
    %83 = vector.extract_strided_slice %68 {offsets = [0, 256], sizes = [16, 128], strides = [1, 1]} : vector<16x384xf32> to vector<16x128xf32>
    %84 = vector.extract_strided_slice %83 {offsets = [0, 0], sizes = [16, 32], strides = [1, 1]} : vector<16x128xf32> to vector<16x32xf32>
    %85 = vector.extract_strided_slice %83 {offsets = [0, 32], sizes = [16, 32], strides = [1, 1]} : vector<16x128xf32> to vector<16x32xf32>
    %86 = vector.extract_strided_slice %83 {offsets = [0, 64], sizes = [16, 32], strides = [1, 1]} : vector<16x128xf32> to vector<16x32xf32>
    %87 = vector.extract_strided_slice %83 {offsets = [0, 96], sizes = [16, 32], strides = [1, 1]} : vector<16x128xf32> to vector<16x32xf32>
    %88 = tpu.concatenate %84, %85, %86, %87 in 0 : vector<16x32xf32>, vector<16x32xf32>, vector<16x32xf32>, vector<16x32xf32> -> vector<64x32xf32>
    %89 = arith.truncf %88 : vector<64x32xf32> to vector<64x32xbf16>
    %cst_28 = arith.constant dense<0.000000e+00> : vector<64x64xf32>
    %90 = tpu.matmul %75, %82, %cst_28 {dimension_numbers = #tpu.dot_dimension_numbers<[1], [1], [0], [0], [0, 0, 1, 0], [], []>} : vector<64x32xbf16>, vector<64x32xbf16>, vector<64x64xf32> -> vector<64x64xf32>
    %cst_29 = arith.constant 0.176776692 : f32
    %91 = vector.broadcast %cst_29 : f32 to vector<64x64xf32>
    %92 = arith.mulf %90, %91 : vector<64x64xf32>
    %93 = arith.addf %92, %34 : vector<64x64xf32>
    %cst_30 = arith.constant dense<0xFF800000> : vector<64xf32>
    %94 = vector.multi_reduction <maximumf>, %93, %cst_30 [1] : vector<64x64xf32> to vector<64xf32>
    %95 = vector.shape_cast %94 : vector<64xf32> to vector<64x1xf32>
    %96 = vector.broadcast %95 : vector<64x1xf32> to vector<64x64xf32>
    %97 = arith.subf %93, %96 : vector<64x64xf32>
    %98 = math.exp %97 : vector<64x64xf32>
    %cst_31 = arith.constant dense<0.000000e+00> : vector<64xf32>
    %99 = vector.multi_reduction <add>, %98, %cst_31 [1] : vector<64x64xf32> to vector<64xf32>
    %100 = vector.shape_cast %99 : vector<64xf32> to vector<64x1xf32>
    %101 = tpu.reciprocal %100 {approx = true} : vector<64x1xf32> -> vector<64x1xf32>
    %102 = vector.broadcast %101 : vector<64x1xf32> to vector<64x64xf32>
    %103 = arith.mulf %98, %102 : vector<64x64xf32>
    %104 = arith.truncf %103 : vector<64x64xf32> to vector<64x64xbf16>
    %cst_32 = arith.constant dense<0.000000e+00> : vector<64x32xf32>
    %105 = tpu.matmul %104, %89, %cst_32 {dimension_numbers = #tpu.dot_dimension_numbers<[1], [0], [0], [1], [0, 0, 1, 1], [], []>} : vector<64x64xbf16>, vector<64x32xbf16>, vector<64x32xf32> -> vector<64x32xf32>
    %c0_33 = arith.constant 0 : index
    %c0_34 = arith.constant 0 : index
    %c0_35 = arith.constant 0 : index
    %106 = vector.load %arg7[%c0_33, %c0_34, %c0_35] : memref<2x128x128xbf16, #tpu.memory_space<vmem>>, vector<1x128x128xbf16>
    %107 = vector.shape_cast %106 : vector<1x128x128xbf16> to vector<128x128xbf16>
    %cst_36 = arith.constant 0.000000e+00 : f32
    %108 = vector.broadcast %cst_36 : f32 to vector<16x128xf32>
    %109 = vector.extract_strided_slice %105 {offsets = [0, 0], sizes = [16, 32], strides = [1, 1]} : vector<64x32xf32> to vector<16x32xf32>
    %110 = arith.truncf %109 : vector<16x32xf32> to vector<16x32xbf16>
    %111 = vector.extract_strided_slice %107 {offsets = [0, 0], sizes = [32, 128], strides = [1, 1]} : vector<128x128xbf16> to vector<32x128xbf16>
    %cst_37 = arith.constant dense<0.000000e+00> : vector<16x128xf32>
    %112 = tpu.matmul %110, %111, %cst_37 {dimension_numbers = #tpu.dot_dimension_numbers<[1], [0], [0], [1], [0, 0, 1, 1], [], []>} : vector<16x32xbf16>, vector<32x128xbf16>, vector<16x128xf32> -> vector<16x128xf32>
    %113 = arith.addf %108, %112 : vector<16x128xf32>
    %114 = vector.extract_strided_slice %105 {offsets = [16, 0], sizes = [16, 32], strides = [1, 1]} : vector<64x32xf32> to vector<16x32xf32>
    %115 = arith.truncf %114 : vector<16x32xf32> to vector<16x32xbf16>
    %116 = vector.extract_strided_slice %107 {offsets = [32, 0], sizes = [32, 128], strides = [1, 1]} : vector<128x128xbf16> to vector<32x128xbf16>
    %cst_38 = arith.constant dense<0.000000e+00> : vector<16x128xf32>
    %117 = tpu.matmul %115, %116, %cst_38 {dimension_numbers = #tpu.dot_dimension_numbers<[1], [0], [0], [1], [0, 0, 1, 1], [], []>} : vector<16x32xbf16>, vector<32x128xbf16>, vector<16x128xf32> -> vector<16x128xf32>
    %118 = arith.addf %113, %117 : vector<16x128xf32>
    %119 = vector.extract_strided_slice %105 {offsets = [32, 0], sizes = [16, 32], strides = [1, 1]} : vector<64x32xf32> to vector<16x32xf32>
    %120 = arith.truncf %119 : vector<16x32xf32> to vector<16x32xbf16>
    %121 = vector.extract_strided_slice %107 {offsets = [64, 0], sizes = [32, 128], strides = [1, 1]} : vector<128x128xbf16> to vector<32x128xbf16>
    %cst_39 = arith.constant dense<0.000000e+00> : vector<16x128xf32>
    %122 = tpu.matmul %120, %121, %cst_39 {dimension_numbers = #tpu.dot_dimension_numbers<[1], [0], [0], [1], [0, 0, 1, 1], [], []>} : vector<16x32xbf16>, vector<32x128xbf16>, vector<16x128xf32> -> vector<16x128xf32>
    %123 = arith.addf %118, %122 : vector<16x128xf32>
    %124 = vector.extract_strided_slice %105 {offsets = [48, 0], sizes = [16, 32], strides = [1, 1]} : vector<64x32xf32> to vector<16x32xf32>
    %125 = arith.truncf %124 : vector<16x32xf32> to vector<16x32xbf16>
    %126 = vector.extract_strided_slice %107 {offsets = [96, 0], sizes = [32, 128], strides = [1, 1]} : vector<128x128xbf16> to vector<32x128xbf16>
    %cst_40 = arith.constant dense<0.000000e+00> : vector<16x128xf32>
    %127 = tpu.matmul %125, %126, %cst_40 {dimension_numbers = #tpu.dot_dimension_numbers<[1], [0], [0], [1], [0, 0, 1, 1], [], []>} : vector<16x32xbf16>, vector<32x128xbf16>, vector<16x128xf32> -> vector<16x128xf32>
    %128 = arith.addf %123, %127 : vector<16x128xf32>
    %c0_41 = arith.constant 0 : index
    %c0_42 = arith.constant 0 : index
    %c0_43 = arith.constant 0 : index
    %129 = vector.load %arg8[%c0_41, %c0_42, %c0_43] : memref<2x1x128xf32, #tpu.memory_space<vmem>>, vector<1x1x128xf32>
    %130 = vector.shape_cast %129 : vector<1x1x128xf32> to vector<1x128xf32>
    %131 = vector.broadcast %130 : vector<1x128xf32> to vector<16x128xf32>
    %132 = arith.addf %128, %131 : vector<16x128xf32>
    %133 = arith.addf %60, %132 : vector<16x128xf32>
    %c0_44 = arith.constant 0 : index
    %c0_45 = arith.constant 0 : index
    %c0_46 = arith.constant 0 : index
    %134 = vector.load %arg9[%c0_44, %c0_45, %c0_46] : memref<2x1x128xf32, #tpu.memory_space<vmem>>, vector<1x1x128xf32>
    %135 = vector.shape_cast %134 : vector<1x1x128xf32> to vector<1x128xf32>
    %c0_47 = arith.constant 0 : index
    %c0_48 = arith.constant 0 : index
    %c0_49 = arith.constant 0 : index
    %136 = vector.load %arg10[%c0_47, %c0_48, %c0_49] : memref<2x1x128xf32, #tpu.memory_space<vmem>>, vector<1x1x128xf32>
    %137 = vector.shape_cast %136 : vector<1x1x128xf32> to vector<1x128xf32>
    %cst_50 = arith.constant dense<0.000000e+00> : vector<16xf32>
    %138 = vector.multi_reduction <add>, %133, %cst_50 [1] : vector<16x128xf32> to vector<16xf32>
    %139 = vector.shape_cast %138 : vector<16xf32> to vector<16x1xf32>
    %cst_51 = arith.constant 1.280000e+02 : f32
    %140 = vector.broadcast %cst_51 : f32 to vector<16x1xf32>
    %141 = arith.divf %139, %140 : vector<16x1xf32>
    %142 = vector.broadcast %141 : vector<16x1xf32> to vector<16x128xf32>
    %143 = arith.subf %133, %142 : vector<16x128xf32>
    %144 = arith.mulf %143, %143 : vector<16x128xf32>
    %cst_52 = arith.constant dense<0.000000e+00> : vector<16xf32>
    %145 = vector.multi_reduction <add>, %144, %cst_52 [1] : vector<16x128xf32> to vector<16xf32>
    %146 = vector.shape_cast %145 : vector<16xf32> to vector<16x1xf32>
    %cst_53 = arith.constant 1.280000e+02 : f32
    %147 = vector.broadcast %cst_53 : f32 to vector<16x1xf32>
    %148 = arith.divf %146, %147 : vector<16x1xf32>
    %cst_54 = arith.constant 9.99999974E-6 : f32
    %149 = vector.broadcast %cst_54 : f32 to vector<16x1xf32>
    %150 = arith.addf %148, %149 : vector<16x1xf32>
    %151 = math.rsqrt %150 : vector<16x1xf32>
    %152 = vector.broadcast %151 : vector<16x1xf32> to vector<16x128xf32>
    %153 = arith.mulf %143, %152 : vector<16x128xf32>
    %154 = vector.broadcast %135 : vector<1x128xf32> to vector<16x128xf32>
    %155 = arith.mulf %153, %154 : vector<16x128xf32>
    %156 = vector.broadcast %137 : vector<1x128xf32> to vector<16x128xf32>
    %157 = arith.addf %155, %156 : vector<16x128xf32>
    %158 = arith.truncf %157 : vector<16x128xf32> to vector<16x128xbf16>
    %c0_55 = arith.constant 0 : index
    %c0_56 = arith.constant 0 : index
    %c0_57 = arith.constant 0 : index
    %159 = vector.load %arg11[%c0_55, %c0_56, %c0_57] : memref<2x128x256xbf16, #tpu.memory_space<vmem>>, vector<1x128x256xbf16>
    %160 = vector.shape_cast %159 : vector<1x128x256xbf16> to vector<128x256xbf16>
    %cst_58 = arith.constant dense<0.000000e+00> : vector<16x256xf32>
    %161 = tpu.matmul %158, %160, %cst_58 {dimension_numbers = #tpu.dot_dimension_numbers<[1], [0], [0], [1], [0, 0, 1, 1], [], []>} : vector<16x128xbf16>, vector<128x256xbf16>, vector<16x256xf32> -> vector<16x256xf32>
    %c0_59 = arith.constant 0 : index
    %c0_60 = arith.constant 0 : index
    %c0_61 = arith.constant 0 : index
    %162 = vector.load %arg12[%c0_59, %c0_60, %c0_61] : memref<2x1x256xf32, #tpu.memory_space<vmem>>, vector<1x1x256xf32>
    %163 = vector.shape_cast %162 : vector<1x1x256xf32> to vector<1x256xf32>
    %164 = vector.broadcast %163 : vector<1x256xf32> to vector<16x256xf32>
    %165 = arith.addf %161, %164 : vector<16x256xf32>
    %cst_62 = arith.constant 0.000000e+00 : f32
    %166 = vector.broadcast %cst_62 : f32 to vector<16x256xf32>
    %167 = arith.maximumf %165, %166 : vector<16x256xf32>
    %168 = arith.truncf %167 : vector<16x256xf32> to vector<16x256xbf16>
    %c0_63 = arith.constant 0 : index
    %c0_64 = arith.constant 0 : index
    %c0_65 = arith.constant 0 : index
    %169 = vector.load %arg13[%c0_63, %c0_64, %c0_65] : memref<2x256x128xbf16, #tpu.memory_space<vmem>>, vector<1x256x128xbf16>
    %170 = vector.shape_cast %169 : vector<1x256x128xbf16> to vector<256x128xbf16>
    %cst_66 = arith.constant dense<0.000000e+00> : vector<16x128xf32>
    %171 = tpu.matmul %168, %170, %cst_66 {dimension_numbers = #tpu.dot_dimension_numbers<[1], [0], [0], [1], [0, 0, 1, 1], [], []>} : vector<16x256xbf16>, vector<256x128xbf16>, vector<16x128xf32> -> vector<16x128xf32>
    %c0_67 = arith.constant 0 : index
    %c0_68 = arith.constant 0 : index
    %c0_69 = arith.constant 0 : index
    %172 = vector.load %arg14[%c0_67, %c0_68, %c0_69] : memref<2x1x128xf32, #tpu.memory_space<vmem>>, vector<1x1x128xf32>
    %173 = vector.shape_cast %172 : vector<1x1x128xf32> to vector<1x128xf32>
    %174 = vector.broadcast %173 : vector<1x128xf32> to vector<16x128xf32>
    %175 = arith.addf %171, %174 : vector<16x128xf32>
    %176 = arith.addf %157, %175 : vector<16x128xf32>
    %c0_70 = arith.constant 0 : index
    %c0_71 = arith.constant 0 : index
    %c0_72 = arith.constant 0 : index
    %177 = vector.load %arg15[%c0_70, %c0_71, %c0_72] : memref<2x1x128xf32, #tpu.memory_space<vmem>>, vector<1x1x128xf32>
    %178 = vector.shape_cast %177 : vector<1x1x128xf32> to vector<1x128xf32>
    %c0_73 = arith.constant 0 : index
    %c0_74 = arith.constant 0 : index
    %c0_75 = arith.constant 0 : index
    %179 = vector.load %arg16[%c0_73, %c0_74, %c0_75] : memref<2x1x128xf32, #tpu.memory_space<vmem>>, vector<1x1x128xf32>
    %180 = vector.shape_cast %179 : vector<1x1x128xf32> to vector<1x128xf32>
    %cst_76 = arith.constant dense<0.000000e+00> : vector<16xf32>
    %181 = vector.multi_reduction <add>, %176, %cst_76 [1] : vector<16x128xf32> to vector<16xf32>
    %182 = vector.shape_cast %181 : vector<16xf32> to vector<16x1xf32>
    %cst_77 = arith.constant 1.280000e+02 : f32
    %183 = vector.broadcast %cst_77 : f32 to vector<16x1xf32>
    %184 = arith.divf %182, %183 : vector<16x1xf32>
    %185 = vector.broadcast %184 : vector<16x1xf32> to vector<16x128xf32>
    %186 = arith.subf %176, %185 : vector<16x128xf32>
    %187 = arith.mulf %186, %186 : vector<16x128xf32>
    %cst_78 = arith.constant dense<0.000000e+00> : vector<16xf32>
    %188 = vector.multi_reduction <add>, %187, %cst_78 [1] : vector<16x128xf32> to vector<16xf32>
    %189 = vector.shape_cast %188 : vector<16xf32> to vector<16x1xf32>
    %cst_79 = arith.constant 1.280000e+02 : f32
    %190 = vector.broadcast %cst_79 : f32 to vector<16x1xf32>
    %191 = arith.divf %189, %190 : vector<16x1xf32>
    %cst_80 = arith.constant 9.99999974E-6 : f32
    %192 = vector.broadcast %cst_80 : f32 to vector<16x1xf32>
    %193 = arith.addf %191, %192 : vector<16x1xf32>
    %194 = math.rsqrt %193 : vector<16x1xf32>
    %195 = vector.broadcast %194 : vector<16x1xf32> to vector<16x128xf32>
    %196 = arith.mulf %186, %195 : vector<16x128xf32>
    %197 = vector.broadcast %178 : vector<1x128xf32> to vector<16x128xf32>
    %198 = arith.mulf %196, %197 : vector<16x128xf32>
    %199 = vector.broadcast %180 : vector<1x128xf32> to vector<16x128xf32>
    %200 = arith.addf %198, %199 : vector<16x128xf32>
    %201 = arith.truncf %200 : vector<16x128xf32> to vector<16x128xbf16>
    %c1_81 = arith.constant 1 : index
    %c0_82 = arith.constant 0 : index
    %c0_83 = arith.constant 0 : index
    %202 = vector.load %arg5[%c1_81, %c0_82, %c0_83] : memref<2x128x384xbf16, #tpu.memory_space<vmem>>, vector<1x128x384xbf16>
    %203 = vector.shape_cast %202 : vector<1x128x384xbf16> to vector<128x384xbf16>
    %cst_84 = arith.constant dense<0.000000e+00> : vector<16x384xf32>
    %204 = tpu.matmul %201, %203, %cst_84 {dimension_numbers = #tpu.dot_dimension_numbers<[1], [0], [0], [1], [0, 0, 1, 1], [], []>} : vector<16x128xbf16>, vector<128x384xbf16>, vector<16x384xf32> -> vector<16x384xf32>
    %c1_85 = arith.constant 1 : index
    %c0_86 = arith.constant 0 : index
    %c0_87 = arith.constant 0 : index
    %205 = vector.load %arg6[%c1_85, %c0_86, %c0_87] : memref<2x1x384xf32, #tpu.memory_space<vmem>>, vector<1x1x384xf32>
    %206 = vector.shape_cast %205 : vector<1x1x384xf32> to vector<1x384xf32>
    %207 = vector.broadcast %206 : vector<1x384xf32> to vector<16x384xf32>
    %208 = arith.addf %204, %207 : vector<16x384xf32>
    %209 = vector.extract_strided_slice %208 {offsets = [0, 0], sizes = [16, 128], strides = [1, 1]} : vector<16x384xf32> to vector<16x128xf32>
    %210 = vector.extract_strided_slice %209 {offsets = [0, 0], sizes = [16, 32], strides = [1, 1]} : vector<16x128xf32> to vector<16x32xf32>
    %211 = vector.extract_strided_slice %209 {offsets = [0, 32], sizes = [16, 32], strides = [1, 1]} : vector<16x128xf32> to vector<16x32xf32>
    %212 = vector.extract_strided_slice %209 {offsets = [0, 64], sizes = [16, 32], strides = [1, 1]} : vector<16x128xf32> to vector<16x32xf32>
    %213 = vector.extract_strided_slice %209 {offsets = [0, 96], sizes = [16, 32], strides = [1, 1]} : vector<16x128xf32> to vector<16x32xf32>
    %214 = tpu.concatenate %210, %211, %212, %213 in 0 : vector<16x32xf32>, vector<16x32xf32>, vector<16x32xf32>, vector<16x32xf32> -> vector<64x32xf32>
    %215 = arith.truncf %214 : vector<64x32xf32> to vector<64x32xbf16>
    %216 = vector.extract_strided_slice %208 {offsets = [0, 128], sizes = [16, 128], strides = [1, 1]} : vector<16x384xf32> to vector<16x128xf32>
    %217 = vector.extract_strided_slice %216 {offsets = [0, 0], sizes = [16, 32], strides = [1, 1]} : vector<16x128xf32> to vector<16x32xf32>
    %218 = vector.extract_strided_slice %216 {offsets = [0, 32], sizes = [16, 32], strides = [1, 1]} : vector<16x128xf32> to vector<16x32xf32>
    %219 = vector.extract_strided_slice %216 {offsets = [0, 64], sizes = [16, 32], strides = [1, 1]} : vector<16x128xf32> to vector<16x32xf32>
    %220 = vector.extract_strided_slice %216 {offsets = [0, 96], sizes = [16, 32], strides = [1, 1]} : vector<16x128xf32> to vector<16x32xf32>
    %221 = tpu.concatenate %217, %218, %219, %220 in 0 : vector<16x32xf32>, vector<16x32xf32>, vector<16x32xf32>, vector<16x32xf32> -> vector<64x32xf32>
    %222 = arith.truncf %221 : vector<64x32xf32> to vector<64x32xbf16>
    %223 = vector.extract_strided_slice %208 {offsets = [0, 256], sizes = [16, 128], strides = [1, 1]} : vector<16x384xf32> to vector<16x128xf32>
    %224 = vector.extract_strided_slice %223 {offsets = [0, 0], sizes = [16, 32], strides = [1, 1]} : vector<16x128xf32> to vector<16x32xf32>
    %225 = vector.extract_strided_slice %223 {offsets = [0, 32], sizes = [16, 32], strides = [1, 1]} : vector<16x128xf32> to vector<16x32xf32>
    %226 = vector.extract_strided_slice %223 {offsets = [0, 64], sizes = [16, 32], strides = [1, 1]} : vector<16x128xf32> to vector<16x32xf32>
    %227 = vector.extract_strided_slice %223 {offsets = [0, 96], sizes = [16, 32], strides = [1, 1]} : vector<16x128xf32> to vector<16x32xf32>
    %228 = tpu.concatenate %224, %225, %226, %227 in 0 : vector<16x32xf32>, vector<16x32xf32>, vector<16x32xf32>, vector<16x32xf32> -> vector<64x32xf32>
    %229 = arith.truncf %228 : vector<64x32xf32> to vector<64x32xbf16>
    %cst_88 = arith.constant dense<0.000000e+00> : vector<64x64xf32>
    %230 = tpu.matmul %215, %222, %cst_88 {dimension_numbers = #tpu.dot_dimension_numbers<[1], [1], [0], [0], [0, 0, 1, 0], [], []>} : vector<64x32xbf16>, vector<64x32xbf16>, vector<64x64xf32> -> vector<64x64xf32>
    %cst_89 = arith.constant 0.176776692 : f32
    %231 = vector.broadcast %cst_89 : f32 to vector<64x64xf32>
    %232 = arith.mulf %230, %231 : vector<64x64xf32>
    %233 = arith.addf %232, %34 : vector<64x64xf32>
    %cst_90 = arith.constant dense<0xFF800000> : vector<64xf32>
    %234 = vector.multi_reduction <maximumf>, %233, %cst_90 [1] : vector<64x64xf32> to vector<64xf32>
    %235 = vector.shape_cast %234 : vector<64xf32> to vector<64x1xf32>
    %236 = vector.broadcast %235 : vector<64x1xf32> to vector<64x64xf32>
    %237 = arith.subf %233, %236 : vector<64x64xf32>
    %238 = math.exp %237 : vector<64x64xf32>
    %cst_91 = arith.constant dense<0.000000e+00> : vector<64xf32>
    %239 = vector.multi_reduction <add>, %238, %cst_91 [1] : vector<64x64xf32> to vector<64xf32>
    %240 = vector.shape_cast %239 : vector<64xf32> to vector<64x1xf32>
    %241 = tpu.reciprocal %240 {approx = true} : vector<64x1xf32> -> vector<64x1xf32>
    %242 = vector.broadcast %241 : vector<64x1xf32> to vector<64x64xf32>
    %243 = arith.mulf %238, %242 : vector<64x64xf32>
    %244 = arith.truncf %243 : vector<64x64xf32> to vector<64x64xbf16>
    %cst_92 = arith.constant dense<0.000000e+00> : vector<64x32xf32>
    %245 = tpu.matmul %244, %229, %cst_92 {dimension_numbers = #tpu.dot_dimension_numbers<[1], [0], [0], [1], [0, 0, 1, 1], [], []>} : vector<64x64xbf16>, vector<64x32xbf16>, vector<64x32xf32> -> vector<64x32xf32>
    %c1_93 = arith.constant 1 : index
    %c0_94 = arith.constant 0 : index
    %c0_95 = arith.constant 0 : index
    %246 = vector.load %arg7[%c1_93, %c0_94, %c0_95] : memref<2x128x128xbf16, #tpu.memory_space<vmem>>, vector<1x128x128xbf16>
    %247 = vector.shape_cast %246 : vector<1x128x128xbf16> to vector<128x128xbf16>
    %cst_96 = arith.constant 0.000000e+00 : f32
    %248 = vector.broadcast %cst_96 : f32 to vector<16x128xf32>
    %249 = vector.extract_strided_slice %245 {offsets = [0, 0], sizes = [16, 32], strides = [1, 1]} : vector<64x32xf32> to vector<16x32xf32>
    %250 = arith.truncf %249 : vector<16x32xf32> to vector<16x32xbf16>
    %251 = vector.extract_strided_slice %247 {offsets = [0, 0], sizes = [32, 128], strides = [1, 1]} : vector<128x128xbf16> to vector<32x128xbf16>
    %cst_97 = arith.constant dense<0.000000e+00> : vector<16x128xf32>
    %252 = tpu.matmul %250, %251, %cst_97 {dimension_numbers = #tpu.dot_dimension_numbers<[1], [0], [0], [1], [0, 0, 1, 1], [], []>} : vector<16x32xbf16>, vector<32x128xbf16>, vector<16x128xf32> -> vector<16x128xf32>
    %253 = arith.addf %248, %252 : vector<16x128xf32>
    %254 = vector.extract_strided_slice %245 {offsets = [16, 0], sizes = [16, 32], strides = [1, 1]} : vector<64x32xf32> to vector<16x32xf32>
    %255 = arith.truncf %254 : vector<16x32xf32> to vector<16x32xbf16>
    %256 = vector.extract_strided_slice %247 {offsets = [32, 0], sizes = [32, 128], strides = [1, 1]} : vector<128x128xbf16> to vector<32x128xbf16>
    %cst_98 = arith.constant dense<0.000000e+00> : vector<16x128xf32>
    %257 = tpu.matmul %255, %256, %cst_98 {dimension_numbers = #tpu.dot_dimension_numbers<[1], [0], [0], [1], [0, 0, 1, 1], [], []>} : vector<16x32xbf16>, vector<32x128xbf16>, vector<16x128xf32> -> vector<16x128xf32>
    %258 = arith.addf %253, %257 : vector<16x128xf32>
    %259 = vector.extract_strided_slice %245 {offsets = [32, 0], sizes = [16, 32], strides = [1, 1]} : vector<64x32xf32> to vector<16x32xf32>
    %260 = arith.truncf %259 : vector<16x32xf32> to vector<16x32xbf16>
    %261 = vector.extract_strided_slice %247 {offsets = [64, 0], sizes = [32, 128], strides = [1, 1]} : vector<128x128xbf16> to vector<32x128xbf16>
    %cst_99 = arith.constant dense<0.000000e+00> : vector<16x128xf32>
    %262 = tpu.matmul %260, %261, %cst_99 {dimension_numbers = #tpu.dot_dimension_numbers<[1], [0], [0], [1], [0, 0, 1, 1], [], []>} : vector<16x32xbf16>, vector<32x128xbf16>, vector<16x128xf32> -> vector<16x128xf32>
    %263 = arith.addf %258, %262 : vector<16x128xf32>
    %264 = vector.extract_strided_slice %245 {offsets = [48, 0], sizes = [16, 32], strides = [1, 1]} : vector<64x32xf32> to vector<16x32xf32>
    %265 = arith.truncf %264 : vector<16x32xf32> to vector<16x32xbf16>
    %266 = vector.extract_strided_slice %247 {offsets = [96, 0], sizes = [32, 128], strides = [1, 1]} : vector<128x128xbf16> to vector<32x128xbf16>
    %cst_100 = arith.constant dense<0.000000e+00> : vector<16x128xf32>
    %267 = tpu.matmul %265, %266, %cst_100 {dimension_numbers = #tpu.dot_dimension_numbers<[1], [0], [0], [1], [0, 0, 1, 1], [], []>} : vector<16x32xbf16>, vector<32x128xbf16>, vector<16x128xf32> -> vector<16x128xf32>
    %268 = arith.addf %263, %267 : vector<16x128xf32>
    %c1_101 = arith.constant 1 : index
    %c0_102 = arith.constant 0 : index
    %c0_103 = arith.constant 0 : index
    %269 = vector.load %arg8[%c1_101, %c0_102, %c0_103] : memref<2x1x128xf32, #tpu.memory_space<vmem>>, vector<1x1x128xf32>
    %270 = vector.shape_cast %269 : vector<1x1x128xf32> to vector<1x128xf32>
    %271 = vector.broadcast %270 : vector<1x128xf32> to vector<16x128xf32>
    %272 = arith.addf %268, %271 : vector<16x128xf32>
    %273 = arith.addf %200, %272 : vector<16x128xf32>
    %c1_104 = arith.constant 1 : index
    %c0_105 = arith.constant 0 : index
    %c0_106 = arith.constant 0 : index
    %274 = vector.load %arg9[%c1_104, %c0_105, %c0_106] : memref<2x1x128xf32, #tpu.memory_space<vmem>>, vector<1x1x128xf32>
    %275 = vector.shape_cast %274 : vector<1x1x128xf32> to vector<1x128xf32>
    %c1_107 = arith.constant 1 : index
    %c0_108 = arith.constant 0 : index
    %c0_109 = arith.constant 0 : index
    %276 = vector.load %arg10[%c1_107, %c0_108, %c0_109] : memref<2x1x128xf32, #tpu.memory_space<vmem>>, vector<1x1x128xf32>
    %277 = vector.shape_cast %276 : vector<1x1x128xf32> to vector<1x128xf32>
    %cst_110 = arith.constant dense<0.000000e+00> : vector<16xf32>
    %278 = vector.multi_reduction <add>, %273, %cst_110 [1] : vector<16x128xf32> to vector<16xf32>
    %279 = vector.shape_cast %278 : vector<16xf32> to vector<16x1xf32>
    %cst_111 = arith.constant 1.280000e+02 : f32
    %280 = vector.broadcast %cst_111 : f32 to vector<16x1xf32>
    %281 = arith.divf %279, %280 : vector<16x1xf32>
    %282 = vector.broadcast %281 : vector<16x1xf32> to vector<16x128xf32>
    %283 = arith.subf %273, %282 : vector<16x128xf32>
    %284 = arith.mulf %283, %283 : vector<16x128xf32>
    %cst_112 = arith.constant dense<0.000000e+00> : vector<16xf32>
    %285 = vector.multi_reduction <add>, %284, %cst_112 [1] : vector<16x128xf32> to vector<16xf32>
    %286 = vector.shape_cast %285 : vector<16xf32> to vector<16x1xf32>
    %cst_113 = arith.constant 1.280000e+02 : f32
    %287 = vector.broadcast %cst_113 : f32 to vector<16x1xf32>
    %288 = arith.divf %286, %287 : vector<16x1xf32>
    %cst_114 = arith.constant 9.99999974E-6 : f32
    %289 = vector.broadcast %cst_114 : f32 to vector<16x1xf32>
    %290 = arith.addf %288, %289 : vector<16x1xf32>
    %291 = math.rsqrt %290 : vector<16x1xf32>
    %292 = vector.broadcast %291 : vector<16x1xf32> to vector<16x128xf32>
    %293 = arith.mulf %283, %292 : vector<16x128xf32>
    %294 = vector.broadcast %275 : vector<1x128xf32> to vector<16x128xf32>
    %295 = arith.mulf %293, %294 : vector<16x128xf32>
    %296 = vector.broadcast %277 : vector<1x128xf32> to vector<16x128xf32>
    %297 = arith.addf %295, %296 : vector<16x128xf32>
    %298 = arith.truncf %297 : vector<16x128xf32> to vector<16x128xbf16>
    %c1_115 = arith.constant 1 : index
    %c0_116 = arith.constant 0 : index
    %c0_117 = arith.constant 0 : index
    %299 = vector.load %arg11[%c1_115, %c0_116, %c0_117] : memref<2x128x256xbf16, #tpu.memory_space<vmem>>, vector<1x128x256xbf16>
    %300 = vector.shape_cast %299 : vector<1x128x256xbf16> to vector<128x256xbf16>
    %cst_118 = arith.constant dense<0.000000e+00> : vector<16x256xf32>
    %301 = tpu.matmul %298, %300, %cst_118 {dimension_numbers = #tpu.dot_dimension_numbers<[1], [0], [0], [1], [0, 0, 1, 1], [], []>} : vector<16x128xbf16>, vector<128x256xbf16>, vector<16x256xf32> -> vector<16x256xf32>
    %c1_119 = arith.constant 1 : index
    %c0_120 = arith.constant 0 : index
    %c0_121 = arith.constant 0 : index
    %302 = vector.load %arg12[%c1_119, %c0_120, %c0_121] : memref<2x1x256xf32, #tpu.memory_space<vmem>>, vector<1x1x256xf32>
    %303 = vector.shape_cast %302 : vector<1x1x256xf32> to vector<1x256xf32>
    %304 = vector.broadcast %303 : vector<1x256xf32> to vector<16x256xf32>
    %305 = arith.addf %301, %304 : vector<16x256xf32>
    %cst_122 = arith.constant 0.000000e+00 : f32
    %306 = vector.broadcast %cst_122 : f32 to vector<16x256xf32>
    %307 = arith.maximumf %305, %306 : vector<16x256xf32>
    %308 = arith.truncf %307 : vector<16x256xf32> to vector<16x256xbf16>
    %c1_123 = arith.constant 1 : index
    %c0_124 = arith.constant 0 : index
    %c0_125 = arith.constant 0 : index
    %309 = vector.load %arg13[%c1_123, %c0_124, %c0_125] : memref<2x256x128xbf16, #tpu.memory_space<vmem>>, vector<1x256x128xbf16>
    %310 = vector.shape_cast %309 : vector<1x256x128xbf16> to vector<256x128xbf16>
    %cst_126 = arith.constant dense<0.000000e+00> : vector<16x128xf32>
    %311 = tpu.matmul %308, %310, %cst_126 {dimension_numbers = #tpu.dot_dimension_numbers<[1], [0], [0], [1], [0, 0, 1, 1], [], []>} : vector<16x256xbf16>, vector<256x128xbf16>, vector<16x128xf32> -> vector<16x128xf32>
    %c1_127 = arith.constant 1 : index
    %c0_128 = arith.constant 0 : index
    %c0_129 = arith.constant 0 : index
    %312 = vector.load %arg14[%c1_127, %c0_128, %c0_129] : memref<2x1x128xf32, #tpu.memory_space<vmem>>, vector<1x1x128xf32>
    %313 = vector.shape_cast %312 : vector<1x1x128xf32> to vector<1x128xf32>
    %314 = vector.broadcast %313 : vector<1x128xf32> to vector<16x128xf32>
    %315 = arith.addf %311, %314 : vector<16x128xf32>
    %316 = arith.addf %297, %315 : vector<16x128xf32>
    %c1_130 = arith.constant 1 : index
    %c0_131 = arith.constant 0 : index
    %c0_132 = arith.constant 0 : index
    %317 = vector.load %arg15[%c1_130, %c0_131, %c0_132] : memref<2x1x128xf32, #tpu.memory_space<vmem>>, vector<1x1x128xf32>
    %318 = vector.shape_cast %317 : vector<1x1x128xf32> to vector<1x128xf32>
    %c1_133 = arith.constant 1 : index
    %c0_134 = arith.constant 0 : index
    %c0_135 = arith.constant 0 : index
    %319 = vector.load %arg16[%c1_133, %c0_134, %c0_135] : memref<2x1x128xf32, #tpu.memory_space<vmem>>, vector<1x1x128xf32>
    %320 = vector.shape_cast %319 : vector<1x1x128xf32> to vector<1x128xf32>
    %cst_136 = arith.constant dense<0.000000e+00> : vector<16xf32>
    %321 = vector.multi_reduction <add>, %316, %cst_136 [1] : vector<16x128xf32> to vector<16xf32>
    %322 = vector.shape_cast %321 : vector<16xf32> to vector<16x1xf32>
    %cst_137 = arith.constant 1.280000e+02 : f32
    %323 = vector.broadcast %cst_137 : f32 to vector<16x1xf32>
    %324 = arith.divf %322, %323 : vector<16x1xf32>
    %325 = vector.broadcast %324 : vector<16x1xf32> to vector<16x128xf32>
    %326 = arith.subf %316, %325 : vector<16x128xf32>
    %327 = arith.mulf %326, %326 : vector<16x128xf32>
    %cst_138 = arith.constant dense<0.000000e+00> : vector<16xf32>
    %328 = vector.multi_reduction <add>, %327, %cst_138 [1] : vector<16x128xf32> to vector<16xf32>
    %329 = vector.shape_cast %328 : vector<16xf32> to vector<16x1xf32>
    %cst_139 = arith.constant 1.280000e+02 : f32
    %330 = vector.broadcast %cst_139 : f32 to vector<16x1xf32>
    %331 = arith.divf %329, %330 : vector<16x1xf32>
    %cst_140 = arith.constant 9.99999974E-6 : f32
    %332 = vector.broadcast %cst_140 : f32 to vector<16x1xf32>
    %333 = arith.addf %331, %332 : vector<16x1xf32>
    %334 = math.rsqrt %333 : vector<16x1xf32>
    %335 = vector.broadcast %334 : vector<16x1xf32> to vector<16x128xf32>
    %336 = arith.mulf %326, %335 : vector<16x128xf32>
    %337 = vector.broadcast %318 : vector<1x128xf32> to vector<16x128xf32>
    %338 = arith.mulf %336, %337 : vector<16x128xf32>
    %339 = vector.broadcast %320 : vector<1x128xf32> to vector<16x128xf32>
    %340 = arith.addf %338, %339 : vector<16x128xf32>
    %c0_141 = arith.constant 0 : index
    %c0_142 = arith.constant 0 : index
    %341 = vector.load %arg17[%c0_141, %c0_142] : memref<1x128xf32, #tpu.memory_space<vmem>>, vector<1x128xf32>
    %c0_143 = arith.constant 0 : index
    %c0_144 = arith.constant 0 : index
    %342 = vector.load %arg18[%c0_143, %c0_144] : memref<1x128xf32, #tpu.memory_space<vmem>>, vector<1x128xf32>
    %cst_145 = arith.constant dense<0.000000e+00> : vector<16xf32>
    %343 = vector.multi_reduction <add>, %340, %cst_145 [1] : vector<16x128xf32> to vector<16xf32>
    %344 = vector.shape_cast %343 : vector<16xf32> to vector<16x1xf32>
    %cst_146 = arith.constant 1.280000e+02 : f32
    %345 = vector.broadcast %cst_146 : f32 to vector<16x1xf32>
    %346 = arith.divf %344, %345 : vector<16x1xf32>
    %347 = vector.broadcast %346 : vector<16x1xf32> to vector<16x128xf32>
    %348 = arith.subf %340, %347 : vector<16x128xf32>
    %349 = arith.mulf %348, %348 : vector<16x128xf32>
    %cst_147 = arith.constant dense<0.000000e+00> : vector<16xf32>
    %350 = vector.multi_reduction <add>, %349, %cst_147 [1] : vector<16x128xf32> to vector<16xf32>
    %351 = vector.shape_cast %350 : vector<16xf32> to vector<16x1xf32>
    %cst_148 = arith.constant 1.280000e+02 : f32
    %352 = vector.broadcast %cst_148 : f32 to vector<16x1xf32>
    %353 = arith.divf %351, %352 : vector<16x1xf32>
    %cst_149 = arith.constant 9.99999974E-6 : f32
    %354 = vector.broadcast %cst_149 : f32 to vector<16x1xf32>
    %355 = arith.addf %353, %354 : vector<16x1xf32>
    %356 = math.rsqrt %355 : vector<16x1xf32>
    %357 = vector.broadcast %356 : vector<16x1xf32> to vector<16x128xf32>
    %358 = arith.mulf %348, %357 : vector<16x128xf32>
    %359 = vector.broadcast %341 : vector<1x128xf32> to vector<16x128xf32>
    %360 = arith.mulf %358, %359 : vector<16x128xf32>
    %361 = vector.broadcast %342 : vector<1x128xf32> to vector<16x128xf32>
    %362 = arith.addf %360, %361 : vector<16x128xf32>
    %cst_150 = arith.constant -1.000000e+30 : f32
    %363 = vector.shape_cast %51 : vector<16x1xi1> to vector<16x1xi1>
    %364 = vector.broadcast %363 : vector<16x1xi1> to vector<16x128xi1>
    %365 = vector.broadcast %cst_150 : f32 to vector<16x128xf32>
    %366 = arith.select %364, %362, %365 : vector<16x128xi1>, vector<16x128xf32>
    %367 = vector.shape_cast %366 : vector<16x128xf32> to vector<2x8x128xf32>
    %cst_151 = arith.constant dense<0xFF800000> : vector<2x128xf32>
    %368 = vector.multi_reduction <maximumf>, %367, %cst_151 [1] : vector<2x8x128xf32> to vector<2x128xf32>
    %369 = arith.truncf %368 : vector<2x128xf32> to vector<2x128xbf16>
    %c0_152 = arith.constant 0 : index
    %c0_153 = arith.constant 0 : index
    %370 = vector.load %arg19[%c0_152, %c0_153] : memref<128x128xbf16, #tpu.memory_space<vmem>>, vector<128x128xbf16>
    %cst_154 = arith.constant dense<0.000000e+00> : vector<2x128xf32>
    %371 = tpu.matmul %369, %370, %cst_154 {dimension_numbers = #tpu.dot_dimension_numbers<[1], [0], [0], [1], [0, 0, 1, 1], [], []>} : vector<2x128xbf16>, vector<128x128xbf16>, vector<2x128xf32> -> vector<2x128xf32>
    %c0_155 = arith.constant 0 : index
    %c0_156 = arith.constant 0 : index
    %372 = vector.load %arg20[%c0_155, %c0_156] : memref<1x128xf32, #tpu.memory_space<vmem>>, vector<1x128xf32>
    %373 = vector.broadcast %372 : vector<1x128xf32> to vector<2x128xf32>
    %374 = arith.addf %371, %373 : vector<2x128xf32>
    %375 = tpu.iota {dimensions = array<i32: 1>} : vector<2x128xi32>
    %c32_i32 = arith.constant 32 : i32
    %376 = vector.broadcast %c32_i32 : i32 to vector<2x128xi32>
    %377 = arith.cmpi slt, %375, %376 : vector<2x128xi32>
    %cst_157 = arith.constant 5.000000e-01 : f32
    %378 = vector.broadcast %cst_157 : f32 to vector<2x128xf32>
    %379 = arith.mulf %378, %374 : vector<2x128xf32>
    %380 = math.exp %379 : vector<2x128xf32>
    %381 = arith.select %377, %374, %380 : vector<2x128xi1>, vector<2x128xf32>
    %c0_158 = arith.constant 0 : index
    %c0_159 = arith.constant 0 : index
    %382 = vector.load %arg21[%c0_158, %c0_159] : memref<2x128xf32, #tpu.memory_space<vmem>>, vector<2x128xf32>
    tpu.vector_store %arg21[%c0_158, %c0_159], %381 {strides = array<i32>} : memref<2x128xf32, #tpu.memory_space<vmem>>, vector<2x128xf32>,
    return
  }
}

</mosaic_0001>

<llo_original>
// kernel: _forward_jit.1
$region0: #{_forward_jit.1}
  #allocation0 [shape = 'u32[]', space=smem, size = 0x4, offset = 0x4, fixed_abs, tag = 'smem constant byte address 0x4 - core index']
  #allocation1 [shape = 'u32[144,128]{1,0:T(1,128)}', space=vmem, size = 0x12000, scoped, tag = 'internal scratch']
  %s0 = inlined_call_operand.vmem [shape: s32[2], index: 0, kind: input, shape index: {}]
  %s1 = inlined_call_operand.vmem [shape: f32[16,5], index: 1, kind: input, shape index: {}]
  %s2 = inlined_call_operand.vmem [shape: f32[16,128], index: 2, kind: input, shape index: {}]
  %s3 = inlined_call_operand.vmem [shape: bf16[5,128], index: 3, kind: input, shape index: {}]
  %s4 = inlined_call_operand.vmem [shape: f32[1,128], index: 4, kind: input, shape index: {}]
  %s5 = inlined_call_operand.vmem [shape: bf16[2,128,384], index: 5, kind: input, shape index: {}]
  %s6 = inlined_call_operand.vmem [shape: f32[2,1,384], index: 6, kind: input, shape index: {}]
  %s7 = inlined_call_operand.vmem [shape: bf16[2,128,128], index: 7, kind: input, shape index: {}]
  %s8 = inlined_call_operand.vmem [shape: f32[2,1,128], index: 8, kind: input, shape index: {}]
  %s9 = inlined_call_operand.vmem [shape: f32[2,1,128], index: 9, kind: input, shape index: {}]
  %s10 = inlined_call_operand.vmem [shape: f32[2,1,128], index: 10, kind: input, shape index: {}]
  %s11 = inlined_call_operand.vmem [shape: bf16[2,128,256], index: 11, kind: input, shape index: {}]
  %s12 = inlined_call_operand.vmem [shape: f32[2,1,256], index: 12, kind: input, shape index: {}]
  %s13 = inlined_call_operand.vmem [shape: bf16[2,256,128], index: 13, kind: input, shape index: {}]
  %s14 = inlined_call_operand.vmem [shape: f32[2,1,128], index: 14, kind: input, shape index: {}]
  %s15 = inlined_call_operand.vmem [shape: f32[2,1,128], index: 15, kind: input, shape index: {}]
  %s16 = inlined_call_operand.vmem [shape: f32[2,1,128], index: 16, kind: input, shape index: {}]
  %s17 = inlined_call_operand.vmem [shape: f32[1,128], index: 17, kind: input, shape index: {}]
  %s18 = inlined_call_operand.vmem [shape: f32[1,128], index: 18, kind: input, shape index: {}]
  %s19 = inlined_call_operand.vmem [shape: bf16[128,128], index: 19, kind: input, shape index: {}]
  %s20 = inlined_call_operand.vmem [shape: f32[1,128], index: 20, kind: input, shape index: {}]
  %s21 = inlined_call_operand.vmem [shape: f32[2,128], index: 21, kind: output, shape index: {}]
  %s22 = sld [smem:[#allocation0]]
  $region98: #{_forward_jit.1} parent=0
    _
  %s24 = ssub.s32 1, %s22
  %s25 = scalar_select 0, %s24, %s22
  $region1: #{_forward_jit.1} parent=0
    #allocation2 [shape = 'u8[512]{0}', space=smem, size = 0x200, scoped, tag = 'input window, operand 0, single buffered']
    #allocation3 [shape = 's32[1]{0}', space=sflag, size = 0x4, scoped, tag = 'scoped memory for _forward_jit.1']
    %26 = vsyncpa [#allocation3], 0
    // Predicated region
    $region2: #{_forward_jit.1} parent=1 // pred_check
      _
    $region3: #{_forward_jit.1} parent=1 // pred_check_branch
      %28 = sbr.rel (0) target = $region5
    $region4: #{_forward_jit.1} parent=1 // pred_region
      %s30 = ssub.s32 16, 16
      %31 = vsyncadd [#allocation3], %s30
      %s33 = sshll.u32 %s0, 4
      %s34 = int_to_ptr.vmem [resolvable:$true] %s33
      %36 = dma.vmem_to_smem %s34, 16, [#allocation2], [#allocation3]
    $region5: #{_forward_jit.1} parent=1 // pred_fallthru
      _
    // Predicated region
    $region6: #{_forward_jit.1} parent=1 // pred_check
      _
    $region7: #{_forward_jit.1} parent=1 // pred_check_branch
      %38 = sbr.rel (0) target = $region9
    $region8: #{_forward_jit.1} parent=1 // pred_region
      _
    $region9: #{_forward_jit.1} parent=1 // pred_fallthru
      _
    // Predicated region
    $region10: #{_forward_jit.1} parent=1 // pred_check
      _
    $region11: #{_forward_jit.1} parent=1 // pred_check_branch
      %40 = sbr.rel (0) target = $region13
    $region12: #{_forward_jit.1} parent=1 // pred_region
      _
    $region13: #{_forward_jit.1} parent=1 // pred_fallthru
      _
    // Predicated region
    $region14: #{_forward_jit.1} parent=1 // pred_check
      _
    $region15: #{_forward_jit.1} parent=1 // pred_check_branch
      %42 = sbr.rel (0) target = $region17
    $region16: #{_forward_jit.1} parent=1 // pred_region
      _
    $region17: #{_forward_jit.1} parent=1 // pred_fallthru
      _
    // Predicated region
    $region18: #{_forward_jit.1} parent=1 // pred_check
      _
    $region19: #{_forward_jit.1} parent=1 // pred_check_branch
      %44 = sbr.rel (0) target = $region21
    $region20: #{_forward_jit.1} parent=1 // pred_region
      _
    $region21: #{_forward_jit.1} parent=1 // pred_fallthru
      _
    // Predicated region
    $region22: #{_forward_jit.1} parent=1 // pred_check
      _
    $region23: #{_forward_jit.1} parent=1 // pred_check_branch
      %46 = sbr.rel (0) target = $region25
    $region24: #{_forward_jit.1} parent=1 // pred_region
      _
    $region25: #{_forward_jit.1} parent=1 // pred_fallthru
      _
    // Predicated region
    $region26: #{_forward_jit.1} parent=1 // pred_check
      _
    $region27: #{_forward_jit.1} parent=1 // pred_check_branch
      %48 = sbr.rel (0) target = $region29
    $region28: #{_forward_jit.1} parent=1 // pred_region
      _
    $region29: #{_forward_jit.1} parent=1 // pred_fallthru
      _
    // Predicated region
    $region30: #{_forward_jit.1} parent=1 // pred_check
      _
    $region31: #{_forward_jit.1} parent=1 // pred_check_branch
      %50 = sbr.rel (0) target = $region33
    $region32: #{_forward_jit.1} parent=1 // pred_region
      _
    $region33: #{_forward_jit.1} parent=1 // pred_fallthru
      _
    // Predicated region
    $region34: #{_forward_jit.1} parent=1 // pred_check
      _
    $region35: #{_forward_jit.1} parent=1 // pred_check_branch
      %52 = sbr.rel (0) target = $region37
    $region36: #{_forward_jit.1} parent=1 // pred_region
      _
    $region37: #{_forward_jit.1} parent=1 // pred_fallthru
      _
    // Predicated region
    $region38: #{_forward_jit.1} parent=1 // pred_check
      _
    $region39: #{_forward_jit.1} parent=1 // pred_check_branch
      %54 = sbr.rel (0) target = $region41
    $region40: #{_forward_jit.1} parent=1 // pred_region
      _
    $region41: #{_forward_jit.1} parent=1 // pred_fallthru
      _
    // Predicated region
    $region42: #{_forward_jit.1} parent=1 // pred_check
      _
    $region43: #{_forward_jit.1} parent=1 // pred_check_branch
      %56 = sbr.rel (0) target = $region45
    $region44: #{_forward_jit.1} parent=1 // pred_region
      _
    $region45: #{_forward_jit.1} parent=1 // pred_fallthru
      _
    // Predicated region
    $region46: #{_forward_jit.1} parent=1 // pred_check
      _
    $region47: #{_forward_jit.1} parent=1 // pred_check_branch
      %58 = sbr.rel (0) target = $region49
    $region48: #{_forward_jit.1} parent=1 // pred_region
      _
    $region49: #{_forward_jit.1} parent=1 // pred_fallthru
      _
    // Predicated region
    $region50: #{_forward_jit.1} parent=1 // pred_check
      _
    $region51: #{_forward_jit.1} parent=1 // pred_check_branch
      %60 = sbr.rel (0) target = $region53
    $region52: #{_forward_jit.1} parent=1 // pred_region
      _
    $region53: #{_forward_jit.1} parent=1 // pred_fallthru
      _
    // Predicated region
    $region54: #{_forward_jit.1} parent=1 // pred_check
      _
    $region55: #{_forward_jit.1} parent=1 // pred_check_branch
      %62 = sbr.rel (0) target = $region57
    $region56: #{_forward_jit.1} parent=1 // pred_region
      _
    $region57: #{_forward_jit.1} parent=1 // pred_fallthru
      _
    // Predicated region
    $region58: #{_forward_jit.1} parent=1 // pred_check
      _
    $region59: #{_forward_jit.1} parent=1 // pred_check_branch
      %64 = sbr.rel (0) target = $region61
    $region60: #{_forward_jit.1} parent=1 // pred_region
      _
    $region61: #{_forward_jit.1} parent=1 // pred_fallthru
      _
    // Predicated region
    $region62: #{_forward_jit.1} parent=1 // pred_check
      _
    $region63: #{_forward_jit.1} parent=1 // pred_check_branch
      %66 = sbr.rel (0) target = $region65
    $region64: #{_forward_jit.1} parent=1 // pred_region
      _
    $region65: #{_forward_jit.1} parent=1 // pred_fallthru
      _
    // Predicated region
    $region66: #{_forward_jit.1} parent=1 // pred_check
      _
    $region67: #{_forward_jit.1} parent=1 // pred_check_branch
      %68 = sbr.rel (0) target = $region69
    $region68: #{_forward_jit.1} parent=1 // pred_region
      _
    $region69: #{_forward_jit.1} parent=1 // pred_fallthru
      _
    // Predicated region
    $region70: #{_forward_jit.1} parent=1 // pred_check
      _
    $region71: #{_forward_jit.1} parent=1 // pred_check_branch
      %70 = sbr.rel (0) target = $region73
    $region72: #{_forward_jit.1} parent=1 // pred_region
      _
    $region73: #{_forward_jit.1} parent=1 // pred_fallthru
      _
    // Predicated region
    $region74: #{_forward_jit.1} parent=1 // pred_check
      _
    $region75: #{_forward_jit.1} parent=1 // pred_check_branch
      %72 = sbr.rel (0) target = $region77
    $region76: #{_forward_jit.1} parent=1 // pred_region
      _
    $region77: #{_forward_jit.1} parent=1 // pred_fallthru
      _
    // Predicated region
    $region78: #{_forward_jit.1} parent=1 // pred_check
      _
    $region79: #{_forward_jit.1} parent=1 // pred_check_branch
      %74 = sbr.rel (0) target = $region81
    $region80: #{_forward_jit.1} parent=1 // pred_region
      _
    $region81: #{_forward_jit.1} parent=1 // pred_fallthru
      _
    // Predicated region
    $region82: #{_forward_jit.1} parent=1 // pred_check
      _
    $region83: #{_forward_jit.1} parent=1 // pred_check_branch
      %76 = sbr.rel (0) target = $region85
    $region84: #{_forward_jit.1} parent=1 // pred_region
      _
    $region85: #{_forward_jit.1} parent=1 // pred_fallthru
      _
    // Predicated region
    $region86: #{_forward_jit.1} parent=1 // pred_check
      _
    $region87: #{_forward_jit.1} parent=1 // pred_check_branch
      %78 = sbr.rel (0) target = $region89
    $region88: #{_forward_jit.1} parent=1 // pred_region
      %79 = dma.done [#allocation3], 16
    $region89: #{_forward_jit.1} parent=1 // pred_fallthru
      _
    %80 = sfence
    %v82 = vlaneseq
    %v83 = vshrl.u32 %v82, 7
    %v84 = vadd.s32 %v83, 8
    %v85 = vadd.s32 %v83, 16
    %v86 = vadd.s32 %v83, 24
    %v87 = vadd.s32 %v83, 32
    %v88 = vadd.s32 %v83, 40
    %v89 = vadd.s32 %v83, 48
    %v90 = vadd.s32 %v83, 56
    %v91 = vlaneseq
    %v92 = vand.u32 %v91, 127
    %v93 = vand.u32 %v83, 15
    %v94 = vand.u32 %v84, 15
    %v95 = vand.u32 %v85, 15
    %v96 = vand.u32 %v86, 15
    %v97 = vand.u32 %v87, 15
    %v98 = vand.u32 %v88, 15
    %v99 = vand.u32 %v89, 15
    %v100 = vand.u32 %v90, 15
    %v101 = vand.u32 %v92, 15
    %v102 = vshra.s32 %v83, 4
    %v103 = vshra.s32 %v84, 4
    %v104 = vshra.s32 %v85, 4
    %v105 = vshra.s32 %v86, 4
    %v106 = vshra.s32 %v87, 4
    %v107 = vshra.s32 %v88, 4
    %v108 = vshra.s32 %v89, 4
    %v109 = vshra.s32 %v90, 4
    %v110 = vshra.s32 %v92, 4
    %vm111 = vcmp.eq.s32.totalorder %v102, %v110
    %vm112 = vcmp.eq.s32.totalorder %v103, %v110
    %vm113 = vcmp.eq.s32.totalorder %v104, %v110
    %vm114 = vcmp.eq.s32.totalorder %v105, %v110
    %vm115 = vcmp.eq.s32.totalorder %v106, %v110
    %vm116 = vcmp.eq.s32.totalorder %v107, %v110
    %vm117 = vcmp.eq.s32.totalorder %v108, %v110
    %vm118 = vcmp.eq.s32.totalorder %v109, %v110
    %v119 = vshra.s32 %v93, 3
    %v120 = vshra.s32 %v94, 3
    %v121 = vshra.s32 %v95, 3
    %v122 = vshra.s32 %v96, 3
    %v123 = vshra.s32 %v97, 3
    %v124 = vshra.s32 %v98, 3
    %v125 = vshra.s32 %v99, 3
    %v126 = vshra.s32 %v100, 3
    %v127 = vshra.s32 %v101, 3
    %v128 = vand.u32 %v101, 7
    %vm129 = vcmp.eq.s32.totalorder %v127, 0
    %s130 = sld [smem:[#allocation2]]
    %v131 = vstv %s130
    %v132 = vsel %vm129, %v131, 0
    %vm133 = vcmp.eq.s32.totalorder %v127, 1
    %s134 = sld [smem:[#allocation2 + $0x1]]
    %v135 = vstv %s134
    %v136 = vsel %vm133, %v135, %v132
    %vm137 = vcmp.eq.s32.totalorder %v119, %v127
    %vm138 = vcmp.eq.s32.totalorder %v120, %v127
    %vm139 = vcmp.eq.s32.totalorder %v121, %v127
    %vm140 = vcmp.eq.s32.totalorder %v122, %v127
    %vm141 = vcmp.eq.s32.totalorder %v123, %v127
    %vm142 = vcmp.eq.s32.totalorder %v124, %v127
    %vm143 = vcmp.eq.s32.totalorder %v125, %v127
    %vm144 = vcmp.eq.s32.totalorder %v126, %v127
    %vm145 = vmand %vm111, %vm137
    %vm146 = vmand %vm112, %vm138
    %vm147 = vmand %vm113, %vm139
    %vm148 = vmand %vm114, %vm140
    %vm149 = vmand %vm115, %vm141
    %vm150 = vmand %vm116, %vm142
    %vm151 = vmand %vm117, %vm143
    %vm152 = vmand %vm118, %vm144
    %vm153 = vcmp.lt.s32.totalorder %v128, %v136
    %vm154 = vmand %vm145, %vm153
    %vm155 = vmand %vm146, %vm153
    %vm156 = vmand %vm147, %vm153
    %vm157 = vmand %vm148, %vm153
    %vm158 = vmand %vm149, %vm153
    %vm159 = vmand %vm150, %vm153
    %vm160 = vmand %vm151, %vm153
    %vm161 = vmand %vm152, %vm153
    %v162 = vsel %vm154, 0.0, -1e+09
    %v163 = vsel %vm155, 0.0, -1e+09
    %v164 = vsel %vm156, 0.0, -1e+09
    %v165 = vsel %vm157, 0.0, -1e+09
    %v166 = vsel %vm158, 0.0, -1e+09
    %v167 = vsel %vm159, 0.0, -1e+09
    %v168 = vsel %vm160, 0.0, -1e+09
    %v169 = vsel %vm161, 0.0, -1e+09
    %v170 = vshra.s32 %v83, 3
    %v171 = vshra.s32 %v84, 3
    %v172 = vand.u32 %v83, 7
    %v173 = vand.u32 %v84, 7
    %vm174 = vcmp.eq.s32.totalorder %v170, 0
    %vm175 = vcmp.eq.s32.totalorder %v171, 0
    %v176 = vsel %vm174, %v131, 0
    %v177 = vsel %vm175, %v131, 0
    %vm178 = vcmp.eq.s32.totalorder %v170, 1
    %vm179 = vcmp.eq.s32.totalorder %v171, 1
    %v180 = vsel %vm178, %v135, %v176
    %v181 = vsel %vm179, %v135, %v177
    %vm182 = vcmp.lt.s32.totalorder %v172, %v180
    %vm183 = vcmp.lt.s32.totalorder %v173, %v181
    %v184 = vld [vmem:[%s1] sm:$0xff]
    %v185 = vld [vmem:[%s1 + $0x8] sm:$0xff]
    %v186 = vpack.c.bf16 %v185, %v184
    %v187 = vld [vmem:[%s3] sm:$0x7]
    %v188 = vld [vmem:[%s4] sm:$0x1]
    %v190 = vlaneseq
    %v191 = vshrl.u32 %v190, 7
    %v192 = vsub.s32 0, %v191
    %v193 = vrot.slane %v188, %v192
    %vm195 = vcmask 39936
    %v197 = vsel %vm195, %v186, 0
    %vm199 = vcmask 1041408
    %vm200 = vcmask 1042432
    %v201 = vsel %vm199, 4294967295, 65535
    %v202 = vsel %vm200, %v201, 0
    %v204 = vand.u32 %v187, %v202
    %206 = vmatprep.subr.bf16.mxu0 0
    %207 = vmatpush1.bf16.msra.mxu0 %v204
    %208 = vmatprep.subr.bf16.mxu0 0
    %209 = vmatpush1.bf16.msra.mxu0 0
    %210 = vmatprep.subr.bf16.mxu0 0
    %211 = vmatpush1.bf16.msra.mxu0 0
    %212 = vmatprep.subr.bf16.mxu0 0
    %213 = vmatpush1.bf16.msra.mxu0 0
    %214 = vmatprep.subr.bf16.mxu0 0
    %215 = vmatpush1.bf16.msra.mxu0 0
    %216 = vmatprep.subr.bf16.mxu0 0
    %217 = vmatpush1.bf16.msra.mxu0 0
    %218 = vmatprep.subr.bf16.mxu0 0
    %219 = vmatpush1.bf16.msra.mxu0 0
    %220 = vmatprep.subr.bf16.mxu0 0
    %221 = vmatpush1.bf16.msra.mxu0 0
    %222 = vmatprep.subr.bf16.mxu0 0
    %223 = vmatpush1.bf16.msra.mxu0 0
    %224 = vmatprep.subr.bf16.mxu0 0
    %225 = vmatpush1.bf16.msra.mxu0 0
    %226 = vmatprep.subr.bf16.mxu0 0
    %227 = vmatpush1.bf16.msra.mxu0 0
    %228 = vmatprep.subr.bf16.mxu0 0
    %229 = vmatpush1.bf16.msra.mxu0 0
    %230 = vmatprep.subr.bf16.mxu0 0
    %231 = vmatpush1.bf16.msra.mxu0 0
    %232 = vmatprep.subr.bf16.mxu0 0
    %233 = vmatpush1.bf16.msra.mxu0 0
    %234 = vmatprep.subr.bf16.mxu0 0
    %235 = vmatpush1.bf16.msra.mxu0 0
    %236 = vmatprep.subr.bf16.mxu0 0
    %237 = vmatpush1.bf16.msra.mxu0 0
    %238 = vmatprep.mubr.bf16.mxu0 0
    %239 = vmatmul.mubr.bf16.gmra.mrb[0].mxu0 %v197
    %v240 = vpop.f32.mrb[0].mxu0
    %v241 = vadd.f32 %v193, %v240
    %v242 = vpop.f32.mrb[0].mxu0
    %v243 = vpop.f32.mrb[0].mxu0
    %v244 = vadd.f32 %v193, %v243
    %v245 = vpop.f32.mrb[0].mxu0
    %246 = vdwg.mxu0
    %v247 = vld [vmem:[%s2] sm:$0xff]
    %v248 = vld [vmem:[%s2 + $0x8] sm:$0xff]
    %v249 = vadd.f32 %v241, %v247
    %v250 = vadd.f32 %v244, %v248
    %v251 = vpack.c.bf16 %v250, %v249
    %v252 = vld [vmem:[%s5] sm:$0xff]
    %v253 = vld [vmem:[%s5 + $0x8] sm:$0xf]
    %v254 = vld [vmem:[%s5 + $0xc] sm:$0xff]
    %v255 = vld [vmem:[%s5 + $0x14] sm:$0xf]
    %v256 = vld [vmem:[%s5 + $0x18] sm:$0xff]
    %v257 = vld [vmem:[%s5 + $0x20] sm:$0xf]
    %v258 = vld [vmem:[%s5 + $0x24] sm:$0xff]
    %v259 = vld [vmem:[%s5 + $0x2c] sm:$0xf]
    %v260 = vld [vmem:[%s5 + $0x30] sm:$0xff]
    %v261 = vld [vmem:[%s5 + $0x38] sm:$0xf]
    %v262 = vld [vmem:[%s5 + $0x3c] sm:$0xff]
    %v263 = vld [vmem:[%s5 + $0x44] sm:$0xf]
    %v264 = vld [vmem:[%s5 + $0x48] sm:$0xff]
    %v265 = vld [vmem:[%s5 + $0x50] sm:$0xf]
    %v266 = vld [vmem:[%s5 + $0x54] sm:$0xff]
    %v267 = vld [vmem:[%s5 + $0x5c] sm:$0xf]
    %v268 = vld [vmem:[%s5 + $0x60] sm:$0xff]
    %v269 = vld [vmem:[%s5 + $0x68] sm:$0xf]
    %v270 = vld [vmem:[%s5 + $0x6c] sm:$0xff]
    %v271 = vld [vmem:[%s5 + $0x74] sm:$0xf]
    %v272 = vld [vmem:[%s5 + $0x78] sm:$0xff]
    %v273 = vld [vmem:[%s5 + $0x80] sm:$0xf]
    %v274 = vld [vmem:[%s5 + $0x84] sm:$0xff]
    %v275 = vld [vmem:[%s5 + $0x8c] sm:$0xf]
    %v276 = vld [vmem:[%s5 + $0x90] sm:$0xff]
    %v277 = vld [vmem:[%s5 + $0x98] sm:$0xf]
    %v278 = vld [vmem:[%s5 + $0x9c] sm:$0xff]
    %v279 = vld [vmem:[%s5 + $0xa4] sm:$0xf]
    %v280 = vld [vmem:[%s5 + $0xa8] sm:$0xff]
    %v281 = vld [vmem:[%s5 + $0xb0] sm:$0xf]
    %v282 = vld [vmem:[%s5 + $0xb4] sm:$0xff]
    %v283 = vld [vmem:[%s5 + $0xbc] sm:$0xf]
    %v284 = vld [vmem:[%s6] sm:$0x7]
    %v286 = vlaneseq
    %v287 = vshrl.u32 %v286, 7
    %v288 = vsub.s32 0, %v287
    %v289 = vrot.slane %v284, %v288
    %v290 = vlaneseq
    %v291 = vshrl.u32 %v290, 7
    %v292 = vsub.s32 1, %v291
    %v293 = vrot.slane %v284, %v292
    %v294 = vlaneseq
    %v295 = vshrl.u32 %v294, 7
    %v296 = vsub.s32 2, %v295
    %v297 = vrot.slane %v284, %v296
    %v333 = vunpack.c.l.b16 %v252
    %v334 = vunpack.c.h.b16 %v252
    %v335 = vunpack.c.l.b16 %v253
    %v336 = vunpack.c.l.b16 %v254
    %v337 = vunpack.c.h.b16 %v254
    %v338 = vunpack.c.l.b16 %v255
    %v339 = vunpack.c.l.b16 %v256
    %v340 = vunpack.c.h.b16 %v256
    %v341 = vunpack.c.l.b16 %v257
    %v342 = vunpack.c.l.b16 %v258
    %v343 = vunpack.c.h.b16 %v258
    %v344 = vunpack.c.l.b16 %v259
    %v345 = vunpack.c.l.b16 %v260
    %v346 = vunpack.c.h.b16 %v260
    %v347 = vunpack.c.l.b16 %v261
    %v348 = vunpack.c.l.b16 %v262
    %v349 = vunpack.c.h.b16 %v262
    %v350 = vunpack.c.l.b16 %v263
    %v351 = vunpack.c.l.b16 %v264
    %v352 = vunpack.c.h.b16 %v264
    %v353 = vunpack.c.l.b16 %v265
    %v354 = vunpack.c.l.b16 %v266
    %v355 = vunpack.c.h.b16 %v266
    %v356 = vunpack.c.l.b16 %v267
    %v357 = vunpack.c.l.b16 %v268
    %v358 = vunpack.c.h.b16 %v268
    %v359 = vunpack.c.l.b16 %v269
    %v360 = vunpack.c.l.b16 %v270
    %v361 = vunpack.c.h.b16 %v270
    %v362 = vunpack.c.l.b16 %v271
    %v363 = vunpack.c.l.b16 %v272
    %v364 = vunpack.c.h.b16 %v272
    %v365 = vunpack.c.l.b16 %v273
    %v366 = vunpack.c.l.b16 %v274
    %v367 = vunpack.c.h.b16 %v274
    %v368 = vunpack.c.l.b16 %v275
    %v369 = vunpack.c.l.b16 %v276
    %v370 = vunpack.c.h.b16 %v276
    %v371 = vunpack.c.l.b16 %v277
    %v372 = vunpack.c.l.b16 %v278
    %v373 = vunpack.c.h.b16 %v278
    %v374 = vunpack.c.l.b16 %v279
    %v375 = vunpack.c.l.b16 %v280
    %v376 = vunpack.c.h.b16 %v280
    %v377 = vunpack.c.l.b16 %v281
    %v378 = vunpack.c.l.b16 %v282
    %v379 = vunpack.c.h.b16 %v282
    %v380 = vunpack.c.l.b16 %v283
    %v381 = vpack.c.b16 %v336, %v333
    %v382 = vpack.c.b16 %v337, %v334
    %v383 = vpack.c.b16 %v338, %v335
    %v384 = vpack.c.b16 %v342, %v339
    %v385 = vpack.c.b16 %v343, %v340
    %v386 = vpack.c.b16 %v344, %v341
    %v387 = vpack.c.b16 %v348, %v345
    %v388 = vpack.c.b16 %v349, %v346
    %v389 = vpack.c.b16 %v350, %v347
    %v390 = vpack.c.b16 %v354, %v351
    %v391 = vpack.c.b16 %v355, %v352
    %v392 = vpack.c.b16 %v356, %v353
    %v393 = vpack.c.b16 %v360, %v357
    %v394 = vpack.c.b16 %v361, %v358
    %v395 = vpack.c.b16 %v362, %v359
    %v396 = vpack.c.b16 %v366, %v363
    %v397 = vpack.c.b16 %v367, %v364
    %v398 = vpack.c.b16 %v368, %v365
    %v399 = vpack.c.b16 %v372, %v369
    %v400 = vpack.c.b16 %v373, %v370
    %v401 = vpack.c.b16 %v374, %v371
    %v402 = vpack.c.b16 %v378, %v375
    %v403 = vpack.c.b16 %v379, %v376
    %v404 = vpack.c.b16 %v380, %v377
    %429 = vmatprep.subr.bf16.mxu0 %v382
    %430 = vmatpush1.bf16.msra.mxu0 %v381
    %431 = vmatprep.subr.bf16.mxu0 %v385
    %432 = vmatpush1.bf16.msra.mxu0 %v384
    %433 = vmatprep.subr.bf16.mxu0 %v388
    %434 = vmatpush1.bf16.msra.mxu0 %v387
    %435 = vmatprep.subr.bf16.mxu0 %v391
    %436 = vmatpush1.bf16.msra.mxu0 %v390
    %437 = vmatprep.subr.bf16.mxu0 %v394
    %438 = vmatpush1.bf16.msra.mxu0 %v393
    %439 = vmatprep.subr.bf16.mxu0 %v397
    %440 = vmatpush1.bf16.msra.mxu0 %v396
    %441 = vmatprep.subr.bf16.mxu0 %v400
    %442 = vmatpush1.bf16.msra.mxu0 %v399
    %443 = vmatprep.subr.bf16.mxu0 %v403
    %444 = vmatpush1.bf16.msra.mxu0 %v402
    %445 = vmatprep.subr.bf16.mxu0 0
    %446 = vmatpush1.bf16.msra.mxu0 0
    %447 = vmatprep.subr.bf16.mxu0 0
    %448 = vmatpush1.bf16.msra.mxu0 0
    %449 = vmatprep.subr.bf16.mxu0 0
    %450 = vmatpush1.bf16.msra.mxu0 0
    %451 = vmatprep.subr.bf16.mxu0 0
    %452 = vmatpush1.bf16.msra.mxu0 0
    %453 = vmatprep.subr.bf16.mxu0 0
    %454 = vmatpush1.bf16.msra.mxu0 0
    %455 = vmatprep.subr.bf16.mxu0 0
    %456 = vmatpush1.bf16.msra.mxu0 0
    %457 = vmatprep.subr.bf16.mxu0 0
    %458 = vmatpush1.bf16.msra.mxu0 0
    %459 = vmatprep.subr.bf16.mxu0 0
    %460 = vmatpush1.bf16.msra.mxu0 0
    %461 = vmatprep.mubr.bf16.mxu0 0
    %462 = vmatmul.mubr.bf16.gmra.mrb[0].mxu0 %v251
    %v463 = vpop.f32.mrb[0].mxu0
    %v464 = vadd.f32 %v289, %v463
    %v465 = vpop.f32.mrb[0].mxu0
    %v466 = vadd.f32 %v293, %v465
    %v467 = vpop.f32.mrb[0].mxu0
    %v468 = vadd.f32 %v289, %v467
    %v469 = vpop.f32.mrb[0].mxu0
    %v470 = vadd.f32 %v293, %v469
    %471 = vdwg.mxu0
    %472 = vmatprep.subr.bf16.mxu0 0
    %473 = vmatpush1.bf16.msra.mxu0 %v383
    %474 = vmatprep.subr.bf16.mxu0 0
    %475 = vmatpush1.bf16.msra.mxu0 %v386
    %476 = vmatprep.subr.bf16.mxu0 0
    %477 = vmatpush1.bf16.msra.mxu0 %v389
    %478 = vmatprep.subr.bf16.mxu0 0
    %479 = vmatpush1.bf16.msra.mxu0 %v392
    %480 = vmatprep.subr.bf16.mxu0 0
    %481 = vmatpush1.bf16.msra.mxu0 %v395
    %482 = vmatprep.subr.bf16.mxu0 0
    %483 = vmatpush1.bf16.msra.mxu0 %v398
    %484 = vmatprep.subr.bf16.mxu0 0
    %485 = vmatpush1.bf16.msra.mxu0 %v401
    %486 = vmatprep.subr.bf16.mxu0 0
    %487 = vmatpush1.bf16.msra.mxu0 %v404
    %488 = vmatprep.subr.bf16.mxu0 0
    %489 = vmatpush1.bf16.msra.mxu0 0
    %490 = vmatprep.subr.bf16.mxu0 0
    %491 = vmatpush1.bf16.msra.mxu0 0
    %492 = vmatprep.subr.bf16.mxu0 0
    %493 = vmatpush1.bf16.msra.mxu0 0
    %494 = vmatprep.subr.bf16.mxu0 0
    %495 = vmatpush1.bf16.msra.mxu0 0
    %496 = vmatprep.subr.bf16.mxu0 0
    %497 = vmatpush1.bf16.msra.mxu0 0
    %498 = vmatprep.subr.bf16.mxu0 0
    %499 = vmatpush1.bf16.msra.mxu0 0
    %500 = vmatprep.subr.bf16.mxu0 0
    %501 = vmatpush1.bf16.msra.mxu0 0
    %502 = vmatprep.subr.bf16.mxu0 0
    %503 = vmatpush1.bf16.msra.mxu0 0
    %504 = vmatprep.mubr.bf16.mxu0 0
    %505 = vmatmul.mubr.bf16.gmra.mrb[0].mxu0 %v251
    %v506 = vpop.f32.mrb[0].mxu0
    %v507 = vadd.f32 %v297, %v506
    %v508 = vpop.f32.mrb[0].mxu0
    %v509 = vpop.f32.mrb[0].mxu0
    %v510 = vadd.f32 %v297, %v509
    %v511 = vpop.f32.mrb[0].mxu0
    %512 = vdwg.mxu0
    %515 = vrot.lane.b32.xlu0 %v464, 96
    %v516 = vpop.permute.xlu0 %515
    %517 = vrot.lane.b32.xlu0 %v468, 96
    %v518 = vpop.permute.xlu0 %517
    %521 = vrot.lane.b32.xlu0 %v464, 64
    %v522 = vpop.permute.xlu0 %521
    %523 = vrot.lane.b32.xlu0 %v468, 64
    %v524 = vpop.permute.xlu0 %523
    %527 = vrot.lane.b32.xlu0 %v464, 32
    %v528 = vpop.permute.xlu0 %527
    %529 = vrot.lane.b32.xlu0 %v468, 32
    %v530 = vpop.permute.xlu0 %529
    %v533 = vpack.c.bf16 %v468, %v464
    %v534 = vpack.c.bf16 %v518, %v516
    %v535 = vpack.c.bf16 %v524, %v522
    %v536 = vpack.c.bf16 %v530, %v528
    %539 = vrot.lane.b32.xlu0 %v466, 96
    %v540 = vpop.permute.xlu0 %539
    %541 = vrot.lane.b32.xlu0 %v470, 96
    %v542 = vpop.permute.xlu0 %541
    %545 = vrot.lane.b32.xlu0 %v466, 64
    %v546 = vpop.permute.xlu0 %545
    %547 = vrot.lane.b32.xlu0 %v470, 64
    %v548 = vpop.permute.xlu0 %547
    %551 = vrot.lane.b32.xlu0 %v466, 32
    %v552 = vpop.permute.xlu0 %551
    %553 = vrot.lane.b32.xlu0 %v470, 32
    %v554 = vpop.permute.xlu0 %553
    %v557 = vpack.c.bf16 %v470, %v466
    %v558 = vpack.c.bf16 %v542, %v540
    %v559 = vpack.c.bf16 %v548, %v546
    %v560 = vpack.c.bf16 %v554, %v552
    %563 = vrot.lane.b32.xlu0 %v507, 96
    %v564 = vpop.permute.xlu0 %563
    %565 = vrot.lane.b32.xlu0 %v510, 96
    %v566 = vpop.permute.xlu0 %565
    %569 = vrot.lane.b32.xlu0 %v507, 64
    %v570 = vpop.permute.xlu0 %569
    %571 = vrot.lane.b32.xlu0 %v510, 64
    %v572 = vpop.permute.xlu0 %571
    %575 = vrot.lane.b32.xlu0 %v507, 32
    %v576 = vpop.permute.xlu0 %575
    %577 = vrot.lane.b32.xlu0 %v510, 32
    %v578 = vpop.permute.xlu0 %577
    %v581 = vpack.c.bf16 %v510, %v507
    %v582 = vpack.c.bf16 %v566, %v564
    %v583 = vpack.c.bf16 %v572, %v570
    %v584 = vpack.c.bf16 %v578, %v576
    %vm585 = vcmask 261120
    %v587 = vsel %vm585, %v533, 0
    %v590 = vsel %vm585, %v534, 0
    %v593 = vsel %vm585, %v535, 0
    %v596 = vsel %vm585, %v536, 0
    %v599 = vsel %vm585, %v557, 0
    %v602 = vsel %vm585, %v558, 0
    %v605 = vsel %vm585, %v559, 0
    %v608 = vsel %vm585, %v560, 0
    %610 = vmatprep.subr.bf16.mxu0 0
    %611 = vmatpush1.bf16.xpose.msra.mxu0 %v599
    %612 = vmatprep.subr.bf16.mxu0 0
    %613 = vmatpush1.bf16.xpose.msra.mxu0 %v602
    %614 = vmatprep.subr.bf16.mxu0 0
    %615 = vmatpush1.bf16.xpose.msra.mxu0 %v605
    %616 = vmatprep.subr.bf16.mxu0 0
    %617 = vmatpush1.bf16.xpose.msra.mxu0 %v608
    %618 = vmatprep.subr.bf16.mxu0 0
    %619 = vmatpush1.bf16.xpose.msra.mxu0 0
    %620 = vmatprep.subr.bf16.mxu0 0
    %621 = vmatpush1.bf16.xpose.msra.mxu0 0
    %622 = vmatprep.subr.bf16.mxu0 0
    %623 = vmatpush1.bf16.xpose.msra.mxu0 0
    %624 = vmatprep.subr.bf16.mxu0 0
    %625 = vmatpush1.bf16.xpose.msra.mxu0 0
    %626 = vmatprep.subr.bf16.mxu0 0
    %627 = vmatpush1.bf16.xpose.msra.mxu0 0
    %628 = vmatprep.subr.bf16.mxu0 0
    %629 = vmatpush1.bf16.xpose.msra.mxu0 0
    %630 = vmatprep.subr.bf16.mxu0 0
    %631 = vmatpush1.bf16.xpose.msra.mxu0 0
    %632 = vmatprep.subr.bf16.mxu0 0
    %633 = vmatpush1.bf16.xpose.msra.mxu0 0
    %634 = vmatprep.subr.bf16.mxu0 0
    %635 = vmatpush1.bf16.xpose.msra.mxu0 0
    %636 = vmatprep.subr.bf16.mxu0 0
    %637 = vmatpush1.bf16.xpose.msra.mxu0 0
    %638 = vmatprep.subr.bf16.mxu0 0
    %639 = vmatpush1.bf16.xpose.msra.mxu0 0
    %640 = vmatprep.subr.bf16.mxu0 0
    %641 = vmatpush1.bf16.xpose.msra.mxu0 0
    %642 = vmatprep.mubr.bf16.mxu0 0
    %643 = vmatmul.mubr.bf16.gmra.mrb[0].mxu0 %v587
    %v644 = vpop.f32.mrb[0].mxu0
    %v645 = vadd.f32 0.0, %v644
    %v646 = vpop.f32.mrb[0].mxu0
    %v647 = vpop.f32.mrb[0].mxu0
    %v648 = vadd.f32 0.0, %v647
    %v649 = vpop.f32.mrb[0].mxu0
    %650 = vmatprep.mubr.bf16.mxu0 0
    %651 = vmatmul.mubr.bf16.gmra.mrb[0].mxu0 %v590
    %v652 = vpop.f32.mrb[0].mxu0
    %v653 = vadd.f32 0.0, %v652
    %v654 = vpop.f32.mrb[0].mxu0
    %v655 = vpop.f32.mrb[0].mxu0
    %v656 = vadd.f32 0.0, %v655
    %v657 = vpop.f32.mrb[0].mxu0
    %658 = vmatprep.mubr.bf16.mxu0 0
    %659 = vmatmul.mubr.bf16.gmra.mrb[0].mxu0 %v593
    %v660 = vpop.f32.mrb[0].mxu0
    %v661 = vadd.f32 0.0, %v660
    %v662 = vpop.f32.mrb[0].mxu0
    %v663 = vpop.f32.mrb[0].mxu0
    %v664 = vadd.f32 0.0, %v663
    %v665 = vpop.f32.mrb[0].mxu0
    %666 = vmatprep.mubr.bf16.mxu0 0
    %667 = vmatmul.mubr.bf16.gmra.mrb[0].mxu0 %v596
    %v668 = vpop.f32.mrb[0].mxu0
    %v669 = vadd.f32 0.0, %v668
    %v670 = vpop.f32.mrb[0].mxu0
    %v671 = vpop.f32.mrb[0].mxu0
    %v672 = vadd.f32 0.0, %v671
    %v673 = vpop.f32.mrb[0].mxu0
    %674 = vdwg.mxu0
    %v675 = vmul.f32 %v645, 0.17677669
    %v676 = vmul.f32 %v648, 0.17677669
    %v677 = vmul.f32 %v653, 0.17677669
    %v678 = vmul.f32 %v656, 0.17677669
    %v679 = vmul.f32 %v661, 0.17677669
    %v680 = vmul.f32 %v664, 0.17677669
    %v681 = vmul.f32 %v669, 0.17677669
    %v682 = vmul.f32 %v672, 0.17677669
    %v683 = vadd.f32 %v675, %v162
    %v684 = vadd.f32 %v676, %v163
    %v685 = vadd.f32 %v677, %v164
    %v686 = vadd.f32 %v678, %v165
    %v687 = vadd.f32 %v679, %v166
    %v688 = vadd.f32 %v680, %v167
    %v689 = vadd.f32 %v681, %v168
    %v690 = vadd.f32 %v682, %v169
    %vm691 = vcmask 523264
    %v692 = vsel %vm691, %v683, -inf
    %693 = vmax.xlane.f32.xlu0 %v692
    %v694 = vpop.xlane.xlu0 %693
    %v695 = vsel %vm691, %v684, -inf
    %696 = vmax.xlane.f32.xlu0 %v695
    %v697 = vpop.xlane.xlu0 %696
    %v698 = vsel %vm691, %v685, -inf
    %699 = vmax.xlane.f32.xlu0 %v698
    %v700 = vpop.xlane.xlu0 %699
    %v701 = vsel %vm691, %v686, -inf
    %702 = vmax.xlane.f32.xlu0 %v701
    %v703 = vpop.xlane.xlu0 %702
    %v704 = vsel %vm691, %v687, -inf
    %705 = vmax.xlane.f32.xlu0 %v704
    %v706 = vpop.xlane.xlu0 %705
    %v707 = vsel %vm691, %v688, -inf
    %708 = vmax.xlane.f32.xlu0 %v707
    %v709 = vpop.xlane.xlu0 %708
    %v710 = vsel %vm691, %v689, -inf
    %711 = vmax.xlane.f32.xlu0 %v710
    %v712 = vpop.xlane.xlu0 %711
    %v713 = vsel %vm691, %v690, -inf
    %714 = vmax.xlane.f32.xlu0 %v713
    %v715 = vpop.xlane.xlu0 %714
    %v716 = vsub.f32 %v683, %v694
    %v717 = vsub.f32 %v684, %v697
    %v718 = vsub.f32 %v685, %v700
    %v719 = vsub.f32 %v686, %v703
    %v720 = vsub.f32 %v687, %v706
    %v721 = vsub.f32 %v688, %v709
    %v722 = vsub.f32 %v689, %v712
    %v723 = vsub.f32 %v690, %v715
    %v724 = vmul.f32 %v716, 1.442695
    %v725 = vpow.pop %v724
    %v726 = vmul.f32 %v717, 1.442695
    %v727 = vpow.pop %v726
    %v728 = vmul.f32 %v718, 1.442695
    %v729 = vpow.pop %v728
    %v730 = vmul.f32 %v719, 1.442695
    %v731 = vpow.pop %v730
    %v732 = vmul.f32 %v720, 1.442695
    %v733 = vpow.pop %v732
    %v734 = vmul.f32 %v721, 1.442695
    %v735 = vpow.pop %v734
    %v736 = vmul.f32 %v722, 1.442695
    %v737 = vpow.pop %v736
    %v738 = vmul.f32 %v723, 1.442695
    %v739 = vpow.pop %v738
    %v740 = vsel %vm691, %v725, 0.0
    %741 = vadd.xlane.f32.xlu0 %v740
    %v742 = vpop.xlane.xlu0 %741
    %v743 = vsel %vm691, %v727, 0.0
    %744 = vadd.xlane.f32.xlu0 %v743
    %v745 = vpop.xlane.xlu0 %744
    %v746 = vsel %vm691, %v729, 0.0
    %747 = vadd.xlane.f32.xlu0 %v746
    %v748 = vpop.xlane.xlu0 %747
    %v749 = vsel %vm691, %v731, 0.0
    %750 = vadd.xlane.f32.xlu0 %v749
    %v751 = vpop.xlane.xlu0 %750
    %v752 = vsel %vm691, %v733, 0.0
    %753 = vadd.xlane.f32.xlu0 %v752
    %v754 = vpop.xlane.xlu0 %753
    %v755 = vsel %vm691, %v735, 0.0
    %756 = vadd.xlane.f32.xlu0 %v755
    %v757 = vpop.xlane.xlu0 %756
    %v758 = vsel %vm691, %v737, 0.0
    %759 = vadd.xlane.f32.xlu0 %v758
    %v760 = vpop.xlane.xlu0 %759
    %v761 = vsel %vm691, %v739, 0.0
    %762 = vadd.xlane.f32.xlu0 %v761
    %v763 = vpop.xlane.xlu0 %762
    %v764 = vrcp.pop %v742
    %v765 = vrcp.pop %v745
    %v766 = vrcp.pop %v748
    %v767 = vrcp.pop %v751
    %v768 = vrcp.pop %v754
    %v769 = vrcp.pop %v757
    %v770 = vrcp.pop %v760
    %v771 = vrcp.pop %v763
    %v772 = vmul.f32 %v725, %v764
    %v773 = vmul.f32 %v727, %v765
    %v774 = vmul.f32 %v729, %v766
    %v775 = vmul.f32 %v731, %v767
    %v776 = vmul.f32 %v733, %v768
    %v777 = vmul.f32 %v735, %v769
    %v778 = vmul.f32 %v737, %v770
    %v779 = vmul.f32 %v739, %v771
    %v780 = vpack.c.bf16 %v773, %v772
    %v781 = vpack.c.bf16 %v775, %v774
    %v782 = vpack.c.bf16 %v777, %v776
    %v783 = vpack.c.bf16 %v779, %v778
    %v785 = vsel %vm691, %v780, 0
    %v788 = vsel %vm691, %v781, 0
    %v791 = vsel %vm691, %v782, 0
    %v794 = vsel %vm691, %v783, 0
    %796 = vmatprep.subr.bf16.mxu0 0
    %797 = vmatpush1.bf16.msra.mxu0 %v581
    %798 = vmatprep.subr.bf16.mxu0 0
    %799 = vmatpush1.bf16.msra.mxu0 %v582
    %800 = vmatprep.subr.bf16.mxu0 0
    %801 = vmatpush1.bf16.msra.mxu0 %v583
    %802 = vmatprep.subr.bf16.mxu0 0
    %803 = vmatpush1.bf16.msra.mxu0 %v584
    %804 = vmatprep.subr.bf16.mxu0 0
    %805 = vmatpush1.bf16.msra.mxu0 0
    %806 = vmatprep.subr.bf16.mxu0 0
    %807 = vmatpush1.bf16.msra.mxu0 0
    %808 = vmatprep.subr.bf16.mxu0 0
    %809 = vmatpush1.bf16.msra.mxu0 0
    %810 = vmatprep.subr.bf16.mxu0 0
    %811 = vmatpush1.bf16.msra.mxu0 0
    %812 = vmatprep.subr.bf16.mxu0 0
    %813 = vmatpush1.bf16.msra.mxu0 0
    %814 = vmatprep.subr.bf16.mxu0 0
    %815 = vmatpush1.bf16.msra.mxu0 0
    %816 = vmatprep.subr.bf16.mxu0 0
    %817 = vmatpush1.bf16.msra.mxu0 0
    %818 = vmatprep.subr.bf16.mxu0 0
    %819 = vmatpush1.bf16.msra.mxu0 0
    %820 = vmatprep.subr.bf16.mxu0 0
    %821 = vmatpush1.bf16.msra.mxu0 0
    %822 = vmatprep.subr.bf16.mxu0 0
    %823 = vmatpush1.bf16.msra.mxu0 0
    %824 = vmatprep.subr.bf16.mxu0 0
    %825 = vmatpush1.bf16.msra.mxu0 0
    %826 = vmatprep.subr.bf16.mxu0 0
    %827 = vmatpush1.bf16.msra.mxu0 0
    %828 = vmatprep.mubr.bf16.mxu0 0
    %829 = vmatmul.mubr.bf16.gmra.mrb[0].mxu0 %v785
    %v830 = vpop.f32.mrb[0].mxu0
    %v831 = vadd.f32 0.0, %v830
    %v832 = vpop.f32.mrb[0].mxu0
    %v833 = vpop.f32.mrb[0].mxu0
    %v834 = vadd.f32 0.0, %v833
    %v835 = vpop.f32.mrb[0].mxu0
    %836 = vmatprep.mubr.bf16.mxu0 0
    %837 = vmatmul.mubr.bf16.gmra.mrb[0].mxu0 %v788
    %v838 = vpop.f32.mrb[0].mxu0
    %v839 = vadd.f32 0.0, %v838
    %v840 = vpop.f32.mrb[0].mxu0
    %v841 = vpop.f32.mrb[0].mxu0
    %v842 = vadd.f32 0.0, %v841
    %v843 = vpop.f32.mrb[0].mxu0
    %844 = vmatprep.mubr.bf16.mxu0 0
    %845 = vmatmul.mubr.bf16.gmra.mrb[0].mxu0 %v791
    %v846 = vpop.f32.mrb[0].mxu0
    %v847 = vadd.f32 0.0, %v846
    %v848 = vpop.f32.mrb[0].mxu0
    %v849 = vpop.f32.mrb[0].mxu0
    %v850 = vadd.f32 0.0, %v849
    %v851 = vpop.f32.mrb[0].mxu0
    %852 = vmatprep.mubr.bf16.mxu0 0
    %853 = vmatmul.mubr.bf16.gmra.mrb[0].mxu0 %v794
    %v854 = vpop.f32.mrb[0].mxu0
    %v855 = vadd.f32 0.0, %v854
    %v856 = vpop.f32.mrb[0].mxu0
    %v857 = vpop.f32.mrb[0].mxu0
    %v858 = vadd.f32 0.0, %v857
    %v859 = vpop.f32.mrb[0].mxu0
    %860 = vdwg.mxu0
    %v861 = vld [vmem:[%s7] sm:$0xf]
    %v862 = vld [vmem:[%s7 + $0x4] sm:$0xf]
    %v863 = vld [vmem:[%s7 + $0x8] sm:$0xf]
    %v864 = vld [vmem:[%s7 + $0xc] sm:$0xf]
    %v865 = vld [vmem:[%s7 + $0x10] sm:$0xf]
    %v866 = vld [vmem:[%s7 + $0x14] sm:$0xf]
    %v867 = vld [vmem:[%s7 + $0x18] sm:$0xf]
    %v868 = vld [vmem:[%s7 + $0x1c] sm:$0xf]
    %v869 = vld [vmem:[%s7 + $0x20] sm:$0xf]
    %v870 = vld [vmem:[%s7 + $0x24] sm:$0xf]
    %v871 = vld [vmem:[%s7 + $0x28] sm:$0xf]
    %v872 = vld [vmem:[%s7 + $0x2c] sm:$0xf]
    %v873 = vld [vmem:[%s7 + $0x30] sm:$0xf]
    %v874 = vld [vmem:[%s7 + $0x34] sm:$0xf]
    %v875 = vld [vmem:[%s7 + $0x38] sm:$0xf]
    %v876 = vld [vmem:[%s7 + $0x3c] sm:$0xf]
    %v877 = vpack.c.bf16 %v834, %v831
    %v878 = vpack.c.bf16 %v842, %v839
    %v883 = vunpack.c.l.b16 %v865
    %v884 = vunpack.c.l.b16 %v866
    %v885 = vunpack.c.l.b16 %v867
    %v886 = vunpack.c.l.b16 %v868
    %v887 = vpack.c.b16 %v884, %v883
    %v888 = vpack.c.b16 %v886, %v885
    %v892 = vsel %vm585, %v878, 0
    %894 = vmatprep.subr.bf16.mxu0 0
    %895 = vmatpush1.bf16.msra.mxu0 %v887
    %896 = vmatprep.subr.bf16.mxu0 0
    %897 = vmatpush1.bf16.msra.mxu0 %v888
    %898 = vmatprep.subr.bf16.mxu0 0
    %899 = vmatpush1.bf16.msra.mxu0 0
    %900 = vmatprep.subr.bf16.mxu0 0
    %901 = vmatpush1.bf16.msra.mxu0 0
    %902 = vmatprep.subr.bf16.mxu0 0
    %903 = vmatpush1.bf16.msra.mxu0 0
    %904 = vmatprep.subr.bf16.mxu0 0
    %905 = vmatpush1.bf16.msra.mxu0 0
    %906 = vmatprep.subr.bf16.mxu0 0
    %907 = vmatpush1.bf16.msra.mxu0 0
    %908 = vmatprep.subr.bf16.mxu0 0
    %909 = vmatpush1.bf16.msra.mxu0 0
    %910 = vmatprep.subr.bf16.mxu0 0
    %911 = vmatpush1.bf16.msra.mxu0 0
    %912 = vmatprep.subr.bf16.mxu0 0
    %913 = vmatpush1.bf16.msra.mxu0 0
    %914 = vmatprep.subr.bf16.mxu0 0
    %915 = vmatpush1.bf16.msra.mxu0 0
    %916 = vmatprep.subr.bf16.mxu0 0
    %917 = vmatpush1.bf16.msra.mxu0 0
    %918 = vmatprep.subr.bf16.mxu0 0
    %919 = vmatpush1.bf16.msra.mxu0 0
    %920 = vmatprep.subr.bf16.mxu0 0
    %921 = vmatpush1.bf16.msra.mxu0 0
    %922 = vmatprep.subr.bf16.mxu0 0
    %923 = vmatpush1.bf16.msra.mxu0 0
    %924 = vmatprep.subr.bf16.mxu0 0
    %925 = vmatpush1.bf16.msra.mxu0 0
    %926 = vmatprep.mubr.bf16.mxu0 0
    %927 = vmatmul.mubr.bf16.gmra.mrb[0].mxu0 %v892
    %v928 = vpop.f32.mrb[0].mxu0
    %v929 = vadd.f32 0.0, %v928
    %v930 = vpop.f32.mrb[0].mxu0
    %v931 = vpop.f32.mrb[0].mxu0
    %v932 = vadd.f32 0.0, %v931
    %v933 = vpop.f32.mrb[0].mxu0
    %934 = vdwg.mxu0
    %v939 = vunpack.c.l.b16 %v861
    %v940 = vunpack.c.l.b16 %v862
    %v941 = vunpack.c.l.b16 %v863
    %v942 = vunpack.c.l.b16 %v864
    %v943 = vpack.c.b16 %v940, %v939
    %v944 = vpack.c.b16 %v942, %v941
    %v948 = vsel %vm585, %v877, 0
    %950 = vmatprep.subr.bf16.mxu0 0
    %951 = vmatpush1.bf16.msra.mxu0 %v943
    %952 = vmatprep.subr.bf16.mxu0 0
    %953 = vmatpush1.bf16.msra.mxu0 %v944
    %954 = vmatprep.subr.bf16.mxu0 0
    %955 = vmatpush1.bf16.msra.mxu0 0
    %956 = vmatprep.subr.bf16.mxu0 0
    %957 = vmatpush1.bf16.msra.mxu0 0
    %958 = vmatprep.subr.bf16.mxu0 0
    %959 = vmatpush1.bf16.msra.mxu0 0
    %960 = vmatprep.subr.bf16.mxu0 0
    %961 = vmatpush1.bf16.msra.mxu0 0
    %962 = vmatprep.subr.bf16.mxu0 0
    %963 = vmatpush1.bf16.msra.mxu0 0
    %964 = vmatprep.subr.bf16.mxu0 0
    %965 = vmatpush1.bf16.msra.mxu0 0
    %966 = vmatprep.subr.bf16.mxu0 0
    %967 = vmatpush1.bf16.msra.mxu0 0
    %968 = vmatprep.subr.bf16.mxu0 0
    %969 = vmatpush1.bf16.msra.mxu0 0
    %970 = vmatprep.subr.bf16.mxu0 0
    %971 = vmatpush1.bf16.msra.mxu0 0
    %972 = vmatprep.subr.bf16.mxu0 0
    %973 = vmatpush1.bf16.msra.mxu0 0
    %974 = vmatprep.subr.bf16.mxu0 0
    %975 = vmatpush1.bf16.msra.mxu0 0
    %976 = vmatprep.subr.bf16.mxu0 0
    %977 = vmatpush1.bf16.msra.mxu0 0
    %978 = vmatprep.subr.bf16.mxu0 0
    %979 = vmatpush1.bf16.msra.mxu0 0
    %980 = vmatprep.subr.bf16.mxu0 0
    %981 = vmatpush1.bf16.msra.mxu0 0
    %982 = vmatprep.mubr.bf16.mxu0 0
    %983 = vmatmul.mubr.bf16.gmra.mrb[0].mxu0 %v948
    %v984 = vpop.f32.mrb[0].mxu0
    %v985 = vadd.f32 %v929, %v984
    %v986 = vpop.f32.mrb[0].mxu0
    %v987 = vpop.f32.mrb[0].mxu0
    %v988 = vadd.f32 %v932, %v987
    %v989 = vpop.f32.mrb[0].mxu0
    %990 = vdwg.mxu0
    %v991 = vpack.c.bf16 %v850, %v847
    %v996 = vunpack.c.l.b16 %v869
    %v997 = vunpack.c.l.b16 %v870
    %v998 = vunpack.c.l.b16 %v871
    %v999 = vunpack.c.l.b16 %v872
    %v1000 = vpack.c.b16 %v997, %v996
    %v1001 = vpack.c.b16 %v999, %v998
    %v1005 = vsel %vm585, %v991, 0
    %1007 = vmatprep.subr.bf16.mxu0 0
    %1008 = vmatpush1.bf16.msra.mxu0 %v1000
    %1009 = vmatprep.subr.bf16.mxu0 0
    %1010 = vmatpush1.bf16.msra.mxu0 %v1001
    %1011 = vmatprep.subr.bf16.mxu0 0
    %1012 = vmatpush1.bf16.msra.mxu0 0
    %1013 = vmatprep.subr.bf16.mxu0 0
    %1014 = vmatpush1.bf16.msra.mxu0 0
    %1015 = vmatprep.subr.bf16.mxu0 0
    %1016 = vmatpush1.bf16.msra.mxu0 0
    %1017 = vmatprep.subr.bf16.mxu0 0
    %1018 = vmatpush1.bf16.msra.mxu0 0
    %1019 = vmatprep.subr.bf16.mxu0 0
    %1020 = vmatpush1.bf16.msra.mxu0 0
    %1021 = vmatprep.subr.bf16.mxu0 0
    %1022 = vmatpush1.bf16.msra.mxu0 0
    %1023 = vmatprep.subr.bf16.mxu0 0
    %1024 = vmatpush1.bf16.msra.mxu0 0
    %1025 = vmatprep.subr.bf16.mxu0 0
    %1026 = vmatpush1.bf16.msra.mxu0 0
    %1027 = vmatprep.subr.bf16.mxu0 0
    %1028 = vmatpush1.bf16.msra.mxu0 0
    %1029 = vmatprep.subr.bf16.mxu0 0
    %1030 = vmatpush1.bf16.msra.mxu0 0
    %1031 = vmatprep.subr.bf16.mxu0 0
    %1032 = vmatpush1.bf16.msra.mxu0 0
    %1033 = vmatprep.subr.bf16.mxu0 0
    %1034 = vmatpush1.bf16.msra.mxu0 0
    %1035 = vmatprep.subr.bf16.mxu0 0
    %1036 = vmatpush1.bf16.msra.mxu0 0
    %1037 = vmatprep.subr.bf16.mxu0 0
    %1038 = vmatpush1.bf16.msra.mxu0 0
    %1039 = vmatprep.mubr.bf16.mxu0 0
    %1040 = vmatmul.mubr.bf16.gmra.mrb[0].mxu0 %v1005
    %v1041 = vpop.f32.mrb[0].mxu0
    %v1042 = vadd.f32 0.0, %v1041
    %v1043 = vpop.f32.mrb[0].mxu0
    %v1044 = vpop.f32.mrb[0].mxu0
    %v1045 = vadd.f32 0.0, %v1044
    %v1046 = vpop.f32.mrb[0].mxu0
    %1047 = vdwg.mxu0
    %v1048 = vadd.f32 %v985, %v1042
    %v1049 = vadd.f32 %v988, %v1045
    %v1050 = vpack.c.bf16 %v858, %v855
    %v1055 = vunpack.c.l.b16 %v873
    %v1056 = vunpack.c.l.b16 %v874
    %v1057 = vunpack.c.l.b16 %v875
    %v1058 = vunpack.c.l.b16 %v876
    %v1059 = vpack.c.b16 %v1056, %v1055
    %v1060 = vpack.c.b16 %v1058, %v1057
    %v1064 = vsel %vm585, %v1050, 0
    %1066 = vmatprep.subr.bf16.mxu0 0
    %1067 = vmatpush1.bf16.msra.mxu0 %v1059
    %1068 = vmatprep.subr.bf16.mxu0 0
    %1069 = vmatpush1.bf16.msra.mxu0 %v1060
    %1070 = vmatprep.subr.bf16.mxu0 0
    %1071 = vmatpush1.bf16.msra.mxu0 0
    %1072 = vmatprep.subr.bf16.mxu0 0
    %1073 = vmatpush1.bf16.msra.mxu0 0
    %1074 = vmatprep.subr.bf16.mxu0 0
    %1075 = vmatpush1.bf16.msra.mxu0 0
    %1076 = vmatprep.subr.bf16.mxu0 0
    %1077 = vmatpush1.bf16.msra.mxu0 0
    %1078 = vmatprep.subr.bf16.mxu0 0
    %1079 = vmatpush1.bf16.msra.mxu0 0
    %1080 = vmatprep.subr.bf16.mxu0 0
    %1081 = vmatpush1.bf16.msra.mxu0 0
    %1082 = vmatprep.subr.bf16.mxu0 0
    %1083 = vmatpush1.bf16.msra.mxu0 0
    %1084 = vmatprep.subr.bf16.mxu0 0
    %1085 = vmatpush1.bf16.msra.mxu0 0
    %1086 = vmatprep.subr.bf16.mxu0 0
    %1087 = vmatpush1.bf16.msra.mxu0 0
    %1088 = vmatprep.subr.bf16.mxu0 0
    %1089 = vmatpush1.bf16.msra.mxu0 0
    %1090 = vmatprep.subr.bf16.mxu0 0
    %1091 = vmatpush1.bf16.msra.mxu0 0
    %1092 = vmatprep.subr.bf16.mxu0 0
    %1093 = vmatpush1.bf16.msra.mxu0 0
    %1094 = vmatprep.subr.bf16.mxu0 0
    %1095 = vmatpush1.bf16.msra.mxu0 0
    %1096 = vmatprep.subr.bf16.mxu0 0
    %1097 = vmatpush1.bf16.msra.mxu0 0
    %1098 = vmatprep.mubr.bf16.mxu0 0
    %1099 = vmatmul.mubr.bf16.gmra.mrb[0].mxu0 %v1064
    %v1100 = vpop.f32.mrb[0].mxu0
    %v1101 = vadd.f32 0.0, %v1100
    %v1102 = vpop.f32.mrb[0].mxu0
    %v1103 = vpop.f32.mrb[0].mxu0
    %v1104 = vadd.f32 0.0, %v1103
    %v1105 = vpop.f32.mrb[0].mxu0
    %1106 = vdwg.mxu0
    %v1107 = vadd.f32 %v1048, %v1101
    %v1108 = vadd.f32 %v1049, %v1104
    %v1109 = vld [vmem:[%s8] sm:$0x1]
    %v1111 = vlaneseq
    %v1112 = vshrl.u32 %v1111, 7
    %v1113 = vsub.s32 0, %v1112
    %v1114 = vrot.slane %v1109, %v1113
    %v1116 = vadd.f32 %v1107, %v1114
    %v1117 = vadd.f32 %v1108, %v1114
    %v1118 = vadd.f32 %v249, %v1116
    %v1119 = vadd.f32 %v250, %v1117
    %v1120 = vld [vmem:[%s9] sm:$0x1]
    %v1121 = vld [vmem:[%s10] sm:$0x1]
    %1122 = vadd.xlane.f32.xlu0 %v1118
    %v1123 = vpop.xlane.xlu0 %1122
    %1124 = vadd.xlane.f32.xlu0 %v1119
    %v1125 = vpop.xlane.xlu0 %1124
    %v1126 = vrcp.pop 128.0
    %v1127 = vmul.f32 %v1123, %v1126
    %v1128 = vmul.f32 %v1125, %v1126
    %v1129 = vsub.f32 %v1118, %v1127
    %v1130 = vsub.f32 %v1119, %v1128
    %v1131 = vmul.f32 %v1129, %v1129
    %v1132 = vmul.f32 %v1130, %v1130
    %1133 = vadd.xlane.f32.xlu0 %v1131
    %v1134 = vpop.xlane.xlu0 %1133
    %1135 = vadd.xlane.f32.xlu0 %v1132
    %v1136 = vpop.xlane.xlu0 %1135
    %v1137 = vmul.f32 %v1134, %v1126
    %v1138 = vmul.f32 %v1136, %v1126
    %v1139 = vadd.f32 %v1137, 1e-05
    %v1140 = vadd.f32 %v1138, 1e-05
    %v1141 = vrsqrt.pop %v1139
    %v1142 = vrsqrt.pop %v1140
    %v1143 = vmul.f32 %v1129, %v1141
    %v1144 = vmul.f32 %v1130, %v1142
    %v1146 = vlaneseq
    %v1147 = vshrl.u32 %v1146, 7
    %v1148 = vsub.s32 0, %v1147
    %v1149 = vrot.slane %v1120, %v1148
    %v1151 = vmul.f32 %v1143, %v1149
    %v1152 = vmul.f32 %v1144, %v1149
    %v1154 = vlaneseq
    %v1155 = vshrl.u32 %v1154, 7
    %v1156 = vsub.s32 0, %v1155
    %v1157 = vrot.slane %v1121, %v1156
    %v1159 = vadd.f32 %v1151, %v1157
    %v1160 = vadd.f32 %v1152, %v1157
    %v1161 = vpack.c.bf16 %v1160, %v1159
    %v1162 = vld [vmem:[%s11] sm:$0xff]
    %v1163 = vld [vmem:[%s11 + $0x8] sm:$0xff]
    %v1164 = vld [vmem:[%s11 + $0x10] sm:$0xff]
    %v1165 = vld [vmem:[%s11 + $0x18] sm:$0xff]
    %v1166 = vld [vmem:[%s11 + $0x20] sm:$0xff]
    %v1167 = vld [vmem:[%s11 + $0x28] sm:$0xff]
    %v1168 = vld [vmem:[%s11 + $0x30] sm:$0xff]
    %v1169 = vld [vmem:[%s11 + $0x38] sm:$0xff]
    %v1170 = vld [vmem:[%s11 + $0x40] sm:$0xff]
    %v1171 = vld [vmem:[%s11 + $0x48] sm:$0xff]
    %v1172 = vld [vmem:[%s11 + $0x50] sm:$0xff]
    %v1173 = vld [vmem:[%s11 + $0x58] sm:$0xff]
    %v1174 = vld [vmem:[%s11 + $0x60] sm:$0xff]
    %v1175 = vld [vmem:[%s11 + $0x68] sm:$0xff]
    %v1176 = vld [vmem:[%s11 + $0x70] sm:$0xff]
    %v1177 = vld [vmem:[%s11 + $0x78] sm:$0xff]
    %v1178 = vld [vmem:[%s12] sm:$0x3]
    %v1180 = vlaneseq
    %v1181 = vshrl.u32 %v1180, 7
    %v1182 = vsub.s32 0, %v1181
    %v1183 = vrot.slane %v1178, %v1182
    %v1184 = vlaneseq
    %v1185 = vshrl.u32 %v1184, 7
    %v1186 = vsub.s32 1, %v1185
    %v1187 = vrot.slane %v1178, %v1186
    %v1206 = vunpack.c.l.b16 %v1162
    %v1207 = vunpack.c.h.b16 %v1162
    %v1208 = vunpack.c.l.b16 %v1163
    %v1209 = vunpack.c.h.b16 %v1163
    %v1210 = vunpack.c.l.b16 %v1164
    %v1211 = vunpack.c.h.b16 %v1164
    %v1212 = vunpack.c.l.b16 %v1165
    %v1213 = vunpack.c.h.b16 %v1165
    %v1214 = vunpack.c.l.b16 %v1166
    %v1215 = vunpack.c.h.b16 %v1166
    %v1216 = vunpack.c.l.b16 %v1167
    %v1217 = vunpack.c.h.b16 %v1167
    %v1218 = vunpack.c.l.b16 %v1168
    %v1219 = vunpack.c.h.b16 %v1168
    %v1220 = vunpack.c.l.b16 %v1169
    %v1221 = vunpack.c.h.b16 %v1169
    %v1222 = vunpack.c.l.b16 %v1170
    %v1223 = vunpack.c.h.b16 %v1170
    %v1224 = vunpack.c.l.b16 %v1171
    %v1225 = vunpack.c.h.b16 %v1171
    %v1226 = vunpack.c.l.b16 %v1172
    %v1227 = vunpack.c.h.b16 %v1172
    %v1228 = vunpack.c.l.b16 %v1173
    %v1229 = vunpack.c.h.b16 %v1173
    %v1230 = vunpack.c.l.b16 %v1174
    %v1231 = vunpack.c.h.b16 %v1174
    %v1232 = vunpack.c.l.b16 %v1175
    %v1233 = vunpack.c.h.b16 %v1175
    %v1234 = vunpack.c.l.b16 %v1176
    %v1235 = vunpack.c.h.b16 %v1176
    %v1236 = vunpack.c.l.b16 %v1177
    %v1237 = vunpack.c.h.b16 %v1177
    %v1238 = vpack.c.b16 %v1208, %v1206
    %v1239 = vpack.c.b16 %v1209, %v1207
    %v1240 = vpack.c.b16 %v1212, %v1210
    %v1241 = vpack.c.b16 %v1213, %v1211
    %v1242 = vpack.c.b16 %v1216, %v1214
    %v1243 = vpack.c.b16 %v1217, %v1215
    %v1244 = vpack.c.b16 %v1220, %v1218
    %v1245 = vpack.c.b16 %v1221, %v1219
    %v1246 = vpack.c.b16 %v1224, %v1222
    %v1247 = vpack.c.b16 %v1225, %v1223
    %v1248 = vpack.c.b16 %v1228, %v1226
    %v1249 = vpack.c.b16 %v1229, %v1227
    %v1250 = vpack.c.b16 %v1232, %v1230
    %v1251 = vpack.c.b16 %v1233, %v1231
    %v1252 = vpack.c.b16 %v1236, %v1234
    %v1253 = vpack.c.b16 %v1237, %v1235
    %1270 = vmatprep.subr.bf16.mxu0 %v1239
    %1271 = vmatpush1.bf16.msra.mxu0 %v1238
    %1272 = vmatprep.subr.bf16.mxu0 %v1241
    %1273 = vmatpush1.bf16.msra.mxu0 %v1240
    %1274 = vmatprep.subr.bf16.mxu0 %v1243
    %1275 = vmatpush1.bf16.msra.mxu0 %v1242
    %1276 = vmatprep.subr.bf16.mxu0 %v1245
    %1277 = vmatpush1.bf16.msra.mxu0 %v1244
    %1278 = vmatprep.subr.bf16.mxu0 %v1247
    %1279 = vmatpush1.bf16.msra.mxu0 %v1246
    %1280 = vmatprep.subr.bf16.mxu0 %v1249
    %1281 = vmatpush1.bf16.msra.mxu0 %v1248
    %1282 = vmatprep.subr.bf16.mxu0 %v1251
    %1283 = vmatpush1.bf16.msra.mxu0 %v1250
    %1284 = vmatprep.subr.bf16.mxu0 %v1253
    %1285 = vmatpush1.bf16.msra.mxu0 %v1252
    %1286 = vmatprep.subr.bf16.mxu0 0
    %1287 = vmatpush1.bf16.msra.mxu0 0
    %1288 = vmatprep.subr.bf16.mxu0 0
    %1289 = vmatpush1.bf16.msra.mxu0 0
    %1290 = vmatprep.subr.bf16.mxu0 0
    %1291 = vmatpush1.bf16.msra.mxu0 0
    %1292 = vmatprep.subr.bf16.mxu0 0
    %1293 = vmatpush1.bf16.msra.mxu0 0
    %1294 = vmatprep.subr.bf16.mxu0 0
    %1295 = vmatpush1.bf16.msra.mxu0 0
    %1296 = vmatprep.subr.bf16.mxu0 0
    %1297 = vmatpush1.bf16.msra.mxu0 0
    %1298 = vmatprep.subr.bf16.mxu0 0
    %1299 = vmatpush1.bf16.msra.mxu0 0
    %1300 = vmatprep.subr.bf16.mxu0 0
    %1301 = vmatpush1.bf16.msra.mxu0 0
    %1302 = vmatprep.mubr.bf16.mxu0 0
    %1303 = vmatmul.mubr.bf16.gmra.mrb[0].mxu0 %v1161
    %v1304 = vpop.f32.mrb[0].mxu0
    %v1305 = vadd.f32 %v1183, %v1304
    %v1306 = vpop.f32.mrb[0].mxu0
    %v1307 = vadd.f32 %v1187, %v1306
    %v1308 = vpop.f32.mrb[0].mxu0
    %v1309 = vadd.f32 %v1183, %v1308
    %v1310 = vpop.f32.mrb[0].mxu0
    %v1311 = vadd.f32 %v1187, %v1310
    %1312 = vdwg.mxu0
    %v1313 = vmax.f32 %v1305, 0.0
    %v1314 = vmax.f32 %v1307, 0.0
    %v1315 = vmax.f32 %v1309, 0.0
    %v1316 = vmax.f32 %v1311, 0.0
    %v1317 = vpack.c.bf16 %v1315, %v1313
    %v1318 = vpack.c.bf16 %v1316, %v1314
    %v1319 = vld [vmem:[%s13] sm:$0xf]
    %v1320 = vld [vmem:[%s13 + $0x4] sm:$0xf]
    %v1321 = vld [vmem:[%s13 + $0x8] sm:$0xf]
    %v1322 = vld [vmem:[%s13 + $0xc] sm:$0xf]
    %v1323 = vld [vmem:[%s13 + $0x10] sm:$0xf]
    %v1324 = vld [vmem:[%s13 + $0x14] sm:$0xf]
    %v1325 = vld [vmem:[%s13 + $0x18] sm:$0xf]
    %v1326 = vld [vmem:[%s13 + $0x1c] sm:$0xf]
    %v1327 = vld [vmem:[%s13 + $0x20] sm:$0xf]
    %v1328 = vld [vmem:[%s13 + $0x24] sm:$0xf]
    %v1329 = vld [vmem:[%s13 + $0x28] sm:$0xf]
    %v1330 = vld [vmem:[%s13 + $0x2c] sm:$0xf]
    %v1331 = vld [vmem:[%s13 + $0x30] sm:$0xf]
    %v1332 = vld [vmem:[%s13 + $0x34] sm:$0xf]
    %v1333 = vld [vmem:[%s13 + $0x38] sm:$0xf]
    %v1334 = vld [vmem:[%s13 + $0x3c] sm:$0xf]
    %v1335 = vld [vmem:[%s13 + $0x40] sm:$0xf]
    %v1336 = vld [vmem:[%s13 + $0x44] sm:$0xf]
    %v1337 = vld [vmem:[%s13 + $0x48] sm:$0xf]
    %v1338 = vld [vmem:[%s13 + $0x4c] sm:$0xf]
    %v1339 = vld [vmem:[%s13 + $0x50] sm:$0xf]
    %v1340 = vld [vmem:[%s13 + $0x54] sm:$0xf]
    %v1341 = vld [vmem:[%s13 + $0x58] sm:$0xf]
    %v1342 = vld [vmem:[%s13 + $0x5c] sm:$0xf]
    %v1343 = vld [vmem:[%s13 + $0x60] sm:$0xf]
    %v1344 = vld [vmem:[%s13 + $0x64] sm:$0xf]
    %v1345 = vld [vmem:[%s13 + $0x68] sm:$0xf]
    %v1346 = vld [vmem:[%s13 + $0x6c] sm:$0xf]
    %v1347 = vld [vmem:[%s13 + $0x70] sm:$0xf]
    %v1348 = vld [vmem:[%s13 + $0x74] sm:$0xf]
    %v1349 = vld [vmem:[%s13 + $0x78] sm:$0xf]
    %v1350 = vld [vmem:[%s13 + $0x7c] sm:$0xf]
    %v1351 = vld [vmem:[%s14] sm:$0x1]
    %v1353 = vlaneseq
    %v1354 = vshrl.u32 %v1353, 7
    %v1355 = vsub.s32 0, %v1354
    %v1356 = vrot.slane %v1351, %v1355
    %v1390 = vunpack.c.l.b16 %v1319
    %v1391 = vunpack.c.l.b16 %v1320
    %v1392 = vunpack.c.l.b16 %v1321
    %v1393 = vunpack.c.l.b16 %v1322
    %v1394 = vunpack.c.l.b16 %v1323
    %v1395 = vunpack.c.l.b16 %v1324
    %v1396 = vunpack.c.l.b16 %v1325
    %v1397 = vunpack.c.l.b16 %v1326
    %v1398 = vunpack.c.l.b16 %v1327
    %v1399 = vunpack.c.l.b16 %v1328
    %v1400 = vunpack.c.l.b16 %v1329
    %v1401 = vunpack.c.l.b16 %v1330
    %v1402 = vunpack.c.l.b16 %v1331
    %v1403 = vunpack.c.l.b16 %v1332
    %v1404 = vunpack.c.l.b16 %v1333
    %v1405 = vunpack.c.l.b16 %v1334
    %v1406 = vunpack.c.l.b16 %v1335
    %v1407 = vunpack.c.l.b16 %v1336
    %v1408 = vunpack.c.l.b16 %v1337
    %v1409 = vunpack.c.l.b16 %v1338
    %v1410 = vunpack.c.l.b16 %v1339
    %v1411 = vunpack.c.l.b16 %v1340
    %v1412 = vunpack.c.l.b16 %v1341
    %v1413 = vunpack.c.l.b16 %v1342
    %v1414 = vunpack.c.l.b16 %v1343
    %v1415 = vunpack.c.l.b16 %v1344
    %v1416 = vunpack.c.l.b16 %v1345
    %v1417 = vunpack.c.l.b16 %v1346
    %v1418 = vunpack.c.l.b16 %v1347
    %v1419 = vunpack.c.l.b16 %v1348
    %v1420 = vunpack.c.l.b16 %v1349
    %v1421 = vunpack.c.l.b16 %v1350
    %v1422 = vpack.c.b16 %v1391, %v1390
    %v1423 = vpack.c.b16 %v1393, %v1392
    %v1424 = vpack.c.b16 %v1395, %v1394
    %v1425 = vpack.c.b16 %v1397, %v1396
    %v1426 = vpack.c.b16 %v1399, %v1398
    %v1427 = vpack.c.b16 %v1401, %v1400
    %v1428 = vpack.c.b16 %v1403, %v1402
    %v1429 = vpack.c.b16 %v1405, %v1404
    %v1430 = vpack.c.b16 %v1407, %v1406
    %v1431 = vpack.c.b16 %v1409, %v1408
    %v1432 = vpack.c.b16 %v1411, %v1410
    %v1433 = vpack.c.b16 %v1413, %v1412
    %v1434 = vpack.c.b16 %v1415, %v1414
    %v1435 = vpack.c.b16 %v1417, %v1416
    %v1436 = vpack.c.b16 %v1419, %v1418
    %v1437 = vpack.c.b16 %v1421, %v1420
    %1454 = vmatprep.subr.bf16.mxu0 0
    %1455 = vmatpush1.bf16.msra.mxu0 %v1422
    %1456 = vmatprep.subr.bf16.mxu0 0
    %1457 = vmatpush1.bf16.msra.mxu0 %v1423
    %1458 = vmatprep.subr.bf16.mxu0 0
    %1459 = vmatpush1.bf16.msra.mxu0 %v1424
    %1460 = vmatprep.subr.bf16.mxu0 0
    %1461 = vmatpush1.bf16.msra.mxu0 %v1425
    %1462 = vmatprep.subr.bf16.mxu0 0
    %1463 = vmatpush1.bf16.msra.mxu0 %v1426
    %1464 = vmatprep.subr.bf16.mxu0 0
    %1465 = vmatpush1.bf16.msra.mxu0 %v1427
    %1466 = vmatprep.subr.bf16.mxu0 0
    %1467 = vmatpush1.bf16.msra.mxu0 %v1428
    %1468 = vmatprep.subr.bf16.mxu0 0
    %1469 = vmatpush1.bf16.msra.mxu0 %v1429
    %1470 = vmatprep.subr.bf16.mxu0 0
    %1471 = vmatpush1.bf16.msra.mxu0 %v1430
    %1472 = vmatprep.subr.bf16.mxu0 0
    %1473 = vmatpush1.bf16.msra.mxu0 %v1431
    %1474 = vmatprep.subr.bf16.mxu0 0
    %1475 = vmatpush1.bf16.msra.mxu0 %v1432
    %1476 = vmatprep.subr.bf16.mxu0 0
    %1477 = vmatpush1.bf16.msra.mxu0 %v1433
    %1478 = vmatprep.subr.bf16.mxu0 0
    %1479 = vmatpush1.bf16.msra.mxu0 %v1434
    %1480 = vmatprep.subr.bf16.mxu0 0
    %1481 = vmatpush1.bf16.msra.mxu0 %v1435
    %1482 = vmatprep.subr.bf16.mxu0 0
    %1483 = vmatpush1.bf16.msra.mxu0 %v1436
    %1484 = vmatprep.subr.bf16.mxu0 0
    %1485 = vmatpush1.bf16.msra.mxu0 %v1437
    %1486 = vmatprep.mubr.bf16.mxu0 %v1318
    %1487 = vmatmul.mubr.bf16.gmra.mrb[0].mxu0 %v1317
    %v1488 = vpop.f32.mrb[0].mxu0
    %v1489 = vadd.f32 %v1356, %v1488
    %v1490 = vpop.f32.mrb[0].mxu0
    %v1491 = vpop.f32.mrb[0].mxu0
    %v1492 = vadd.f32 %v1356, %v1491
    %v1493 = vpop.f32.mrb[0].mxu0
    %1494 = vdwg.mxu0
    %v1495 = vadd.f32 %v1159, %v1489
    %v1496 = vadd.f32 %v1160, %v1492
    %v1497 = vld [vmem:[%s15] sm:$0x1]
    %v1498 = vld [vmem:[%s16] sm:$0x1]
    %1499 = vadd.xlane.f32.xlu0 %v1495
    %v1500 = vpop.xlane.xlu0 %1499
    %1501 = vadd.xlane.f32.xlu0 %v1496
    %v1502 = vpop.xlane.xlu0 %1501
    %v1503 = vmul.f32 %v1500, %v1126
    %v1504 = vmul.f32 %v1502, %v1126
    %v1505 = vsub.f32 %v1495, %v1503
    %v1506 = vsub.f32 %v1496, %v1504
    %v1507 = vmul.f32 %v1505, %v1505
    %v1508 = vmul.f32 %v1506, %v1506
    %1509 = vadd.xlane.f32.xlu0 %v1507
    %v1510 = vpop.xlane.xlu0 %1509
    %1511 = vadd.xlane.f32.xlu0 %v1508
    %v1512 = vpop.xlane.xlu0 %1511
    %v1513 = vmul.f32 %v1510, %v1126
    %v1514 = vmul.f32 %v1512, %v1126
    %v1515 = vadd.f32 %v1513, 1e-05
    %v1516 = vadd.f32 %v1514, 1e-05
    %v1517 = vrsqrt.pop %v1515
    %v1518 = vrsqrt.pop %v1516
    %v1519 = vmul.f32 %v1505, %v1517
    %v1520 = vmul.f32 %v1506, %v1518
    %v1522 = vlaneseq
    %v1523 = vshrl.u32 %v1522, 7
    %v1524 = vsub.s32 0, %v1523
    %v1525 = vrot.slane %v1497, %v1524
    %v1527 = vmul.f32 %v1519, %v1525
    %v1528 = vmul.f32 %v1520, %v1525
    %v1530 = vlaneseq
    %v1531 = vshrl.u32 %v1530, 7
    %v1532 = vsub.s32 0, %v1531
    %v1533 = vrot.slane %v1498, %v1532
    %v1535 = vadd.f32 %v1527, %v1533
    %v1536 = vadd.f32 %v1528, %v1533
    %v1537 = vpack.c.bf16 %v1536, %v1535
    %s1538 = scalar_lea.vmem %s5, 192
    %v1539 = vld [vmem:[%s1538] sm:$0xff]
    %v1540 = vld [vmem:[%s1538 + $0x8] sm:$0xf]
    %v1541 = vld [vmem:[%s1538 + $0xc] sm:$0xff]
    %v1542 = vld [vmem:[%s1538 + $0x14] sm:$0xf]
    %v1543 = vld [vmem:[%s1538 + $0x18] sm:$0xff]
    %v1544 = vld [vmem:[%s1538 + $0x20] sm:$0xf]
    %v1545 = vld [vmem:[%s1538 + $0x24] sm:$0xff]
    %v1546 = vld [vmem:[%s1538 + $0x2c] sm:$0xf]
    %v1547 = vld [vmem:[%s1538 + $0x30] sm:$0xff]
    %v1548 = vld [vmem:[%s1538 + $0x38] sm:$0xf]
    %v1549 = vld [vmem:[%s1538 + $0x3c] sm:$0xff]
    %v1550 = vld [vmem:[%s1538 + $0x44] sm:$0xf]
    %v1551 = vld [vmem:[%s1538 + $0x48] sm:$0xff]
    %v1552 = vld [vmem:[%s1538 + $0x50] sm:$0xf]
    %v1553 = vld [vmem:[%s1538 + $0x54] sm:$0xff]
    %v1554 = vld [vmem:[%s1538 + $0x5c] sm:$0xf]
    %v1555 = vld [vmem:[%s1538 + $0x60] sm:$0xff]
    %v1556 = vld [vmem:[%s1538 + $0x68] sm:$0xf]
    %v1557 = vld [vmem:[%s1538 + $0x6c] sm:$0xff]
    %v1558 = vld [vmem:[%s1538 + $0x74] sm:$0xf]
    %v1559 = vld [vmem:[%s1538 + $0x78] sm:$0xff]
    %v1560 = vld [vmem:[%s1538 + $0x80] sm:$0xf]
    %v1561 = vld [vmem:[%s1538 + $0x84] sm:$0xff]
    %v1562 = vld [vmem:[%s1538 + $0x8c] sm:$0xf]
    %v1563 = vld [vmem:[%s1538 + $0x90] sm:$0xff]
    %v1564 = vld [vmem:[%s1538 + $0x98] sm:$0xf]
    %v1565 = vld [vmem:[%s1538 + $0x9c] sm:$0xff]
    %v1566 = vld [vmem:[%s1538 + $0xa4] sm:$0xf]
    %v1567 = vld [vmem:[%s1538 + $0xa8] sm:$0xff]
    %v1568 = vld [vmem:[%s1538 + $0xb0] sm:$0xf]
    %v1569 = vld [vmem:[%s1538 + $0xb4] sm:$0xff]
    %v1570 = vld [vmem:[%s1538 + $0xbc] sm:$0xf]
    %s1571 = scalar_lea.vmem %s6, 3
    %v1572 = vld [vmem:[%s1571] sm:$0x7]
    %v1574 = vlaneseq
    %v1575 = vshrl.u32 %v1574, 7
    %v1576 = vsub.s32 0, %v1575
    %v1577 = vrot.slane %v1572, %v1576
    %v1578 = vlaneseq
    %v1579 = vshrl.u32 %v1578, 7
    %v1580 = vsub.s32 1, %v1579
    %v1581 = vrot.slane %v1572, %v1580
    %v1582 = vlaneseq
    %v1583 = vshrl.u32 %v1582, 7
    %v1584 = vsub.s32 2, %v1583
    %v1585 = vrot.slane %v1572, %v1584
    %v1621 = vunpack.c.l.b16 %v1539
    %v1622 = vunpack.c.h.b16 %v1539
    %v1623 = vunpack.c.l.b16 %v1540
    %v1624 = vunpack.c.l.b16 %v1541
    %v1625 = vunpack.c.h.b16 %v1541
    %v1626 = vunpack.c.l.b16 %v1542
    %v1627 = vunpack.c.l.b16 %v1543
    %v1628 = vunpack.c.h.b16 %v1543
    %v1629 = vunpack.c.l.b16 %v1544
    %v1630 = vunpack.c.l.b16 %v1545
    %v1631 = vunpack.c.h.b16 %v1545
    %v1632 = vunpack.c.l.b16 %v1546
    %v1633 = vunpack.c.l.b16 %v1547
    %v1634 = vunpack.c.h.b16 %v1547
    %v1635 = vunpack.c.l.b16 %v1548
    %v1636 = vunpack.c.l.b16 %v1549
    %v1637 = vunpack.c.h.b16 %v1549
    %v1638 = vunpack.c.l.b16 %v1550
    %v1639 = vunpack.c.l.b16 %v1551
    %v1640 = vunpack.c.h.b16 %v1551
    %v1641 = vunpack.c.l.b16 %v1552
    %v1642 = vunpack.c.l.b16 %v1553
    %v1643 = vunpack.c.h.b16 %v1553
    %v1644 = vunpack.c.l.b16 %v1554
    %v1645 = vunpack.c.l.b16 %v1555
    %v1646 = vunpack.c.h.b16 %v1555
    %v1647 = vunpack.c.l.b16 %v1556
    %v1648 = vunpack.c.l.b16 %v1557
    %v1649 = vunpack.c.h.b16 %v1557
    %v1650 = vunpack.c.l.b16 %v1558
    %v1651 = vunpack.c.l.b16 %v1559
    %v1652 = vunpack.c.h.b16 %v1559
    %v1653 = vunpack.c.l.b16 %v1560
    %v1654 = vunpack.c.l.b16 %v1561
    %v1655 = vunpack.c.h.b16 %v1561
    %v1656 = vunpack.c.l.b16 %v1562
    %v1657 = vunpack.c.l.b16 %v1563
    %v1658 = vunpack.c.h.b16 %v1563
    %v1659 = vunpack.c.l.b16 %v1564
    %v1660 = vunpack.c.l.b16 %v1565
    %v1661 = vunpack.c.h.b16 %v1565
    %v1662 = vunpack.c.l.b16 %v1566
    %v1663 = vunpack.c.l.b16 %v1567
    %v1664 = vunpack.c.h.b16 %v1567
    %v1665 = vunpack.c.l.b16 %v1568
    %v1666 = vunpack.c.l.b16 %v1569
    %v1667 = vunpack.c.h.b16 %v1569
    %v1668 = vunpack.c.l.b16 %v1570
    %v1669 = vpack.c.b16 %v1624, %v1621
    %v1670 = vpack.c.b16 %v1625, %v1622
    %v1671 = vpack.c.b16 %v1626, %v1623
    %v1672 = vpack.c.b16 %v1630, %v1627
    %v1673 = vpack.c.b16 %v1631, %v1628
    %v1674 = vpack.c.b16 %v1632, %v1629
    %v1675 = vpack.c.b16 %v1636, %v1633
    %v1676 = vpack.c.b16 %v1637, %v1634
    %v1677 = vpack.c.b16 %v1638, %v1635
    %v1678 = vpack.c.b16 %v1642, %v1639
    %v1679 = vpack.c.b16 %v1643, %v1640
    %v1680 = vpack.c.b16 %v1644, %v1641
    %v1681 = vpack.c.b16 %v1648, %v1645
    %v1682 = vpack.c.b16 %v1649, %v1646
    %v1683 = vpack.c.b16 %v1650, %v1647
    %v1684 = vpack.c.b16 %v1654, %v1651
    %v1685 = vpack.c.b16 %v1655, %v1652
    %v1686 = vpack.c.b16 %v1656, %v1653
    %v1687 = vpack.c.b16 %v1660, %v1657
    %v1688 = vpack.c.b16 %v1661, %v1658
    %v1689 = vpack.c.b16 %v1662, %v1659
    %v1690 = vpack.c.b16 %v1666, %v1663
    %v1691 = vpack.c.b16 %v1667, %v1664
    %v1692 = vpack.c.b16 %v1668, %v1665
    %1717 = vmatprep.subr.bf16.mxu0 %v1670
    %1718 = vmatpush1.bf16.msra.mxu0 %v1669
    %1719 = vmatprep.subr.bf16.mxu0 %v1673
    %1720 = vmatpush1.bf16.msra.mxu0 %v1672
    %1721 = vmatprep.subr.bf16.mxu0 %v1676
    %1722 = vmatpush1.bf16.msra.mxu0 %v1675
    %1723 = vmatprep.subr.bf16.mxu0 %v1679
    %1724 = vmatpush1.bf16.msra.mxu0 %v1678
    %1725 = vmatprep.subr.bf16.mxu0 %v1682
    %1726 = vmatpush1.bf16.msra.mxu0 %v1681
    %1727 = vmatprep.subr.bf16.mxu0 %v1685
    %1728 = vmatpush1.bf16.msra.mxu0 %v1684
    %1729 = vmatprep.subr.bf16.mxu0 %v1688
    %1730 = vmatpush1.bf16.msra.mxu0 %v1687
    %1731 = vmatprep.subr.bf16.mxu0 %v1691
    %1732 = vmatpush1.bf16.msra.mxu0 %v1690
    %1733 = vmatprep.subr.bf16.mxu0 0
    %1734 = vmatpush1.bf16.msra.mxu0 0
    %1735 = vmatprep.subr.bf16.mxu0 0
    %1736 = vmatpush1.bf16.msra.mxu0 0
    %1737 = vmatprep.subr.bf16.mxu0 0
    %1738 = vmatpush1.bf16.msra.mxu0 0
    %1739 = vmatprep.subr.bf16.mxu0 0
    %1740 = vmatpush1.bf16.msra.mxu0 0
    %1741 = vmatprep.subr.bf16.mxu0 0
    %1742 = vmatpush1.bf16.msra.mxu0 0
    %1743 = vmatprep.subr.bf16.mxu0 0
    %1744 = vmatpush1.bf16.msra.mxu0 0
    %1745 = vmatprep.subr.bf16.mxu0 0
    %1746 = vmatpush1.bf16.msra.mxu0 0
    %1747 = vmatprep.subr.bf16.mxu0 0
    %1748 = vmatpush1.bf16.msra.mxu0 0
    %1749 = vmatprep.mubr.bf16.mxu0 0
    %1750 = vmatmul.mubr.bf16.gmra.mrb[0].mxu0 %v1537
    %v1751 = vpop.f32.mrb[0].mxu0
    %v1752 = vadd.f32 %v1577, %v1751
    %v1753 = vpop.f32.mrb[0].mxu0
    %v1754 = vadd.f32 %v1581, %v1753
    %v1755 = vpop.f32.mrb[0].mxu0
    %v1756 = vadd.f32 %v1577, %v1755
    %v1757 = vpop.f32.mrb[0].mxu0
    %v1758 = vadd.f32 %v1581, %v1757
    %1759 = vdwg.mxu0
    %1760 = vmatprep.subr.bf16.mxu0 0
    %1761 = vmatpush1.bf16.msra.mxu0 %v1671
    %1762 = vmatprep.subr.bf16.mxu0 0
    %1763 = vmatpush1.bf16.msra.mxu0 %v1674
    %1764 = vmatprep.subr.bf16.mxu0 0
    %1765 = vmatpush1.bf16.msra.mxu0 %v1677
    %1766 = vmatprep.subr.bf16.mxu0 0
    %1767 = vmatpush1.bf16.msra.mxu0 %v1680
    %1768 = vmatprep.subr.bf16.mxu0 0
    %1769 = vmatpush1.bf16.msra.mxu0 %v1683
    %1770 = vmatprep.subr.bf16.mxu0 0
    %1771 = vmatpush1.bf16.msra.mxu0 %v1686
    %1772 = vmatprep.subr.bf16.mxu0 0
    %1773 = vmatpush1.bf16.msra.mxu0 %v1689
    %1774 = vmatprep.subr.bf16.mxu0 0
    %1775 = vmatpush1.bf16.msra.mxu0 %v1692
    %1776 = vmatprep.subr.bf16.mxu0 0
    %1777 = vmatpush1.bf16.msra.mxu0 0
    %1778 = vmatprep.subr.bf16.mxu0 0
    %1779 = vmatpush1.bf16.msra.mxu0 0
    %1780 = vmatprep.subr.bf16.mxu0 0
    %1781 = vmatpush1.bf16.msra.mxu0 0
    %1782 = vmatprep.subr.bf16.mxu0 0
    %1783 = vmatpush1.bf16.msra.mxu0 0
    %1784 = vmatprep.subr.bf16.mxu0 0
    %1785 = vmatpush1.bf16.msra.mxu0 0
    %1786 = vmatprep.subr.bf16.mxu0 0
    %1787 = vmatpush1.bf16.msra.mxu0 0
    %1788 = vmatprep.subr.bf16.mxu0 0
    %1789 = vmatpush1.bf16.msra.mxu0 0
    %1790 = vmatprep.subr.bf16.mxu0 0
    %1791 = vmatpush1.bf16.msra.mxu0 0
    %1792 = vmatprep.mubr.bf16.mxu0 0
    %1793 = vmatmul.mubr.bf16.gmra.mrb[0].mxu0 %v1537
    %v1794 = vpop.f32.mrb[0].mxu0
    %v1795 = vadd.f32 %v1585, %v1794
    %v1796 = vpop.f32.mrb[0].mxu0
    %v1797 = vpop.f32.mrb[0].mxu0
    %v1798 = vadd.f32 %v1585, %v1797
    %v1799 = vpop.f32.mrb[0].mxu0
    %1800 = vdwg.mxu0
    %1803 = vrot.lane.b32.xlu0 %v1752, 96
    %v1804 = vpop.permute.xlu0 %1803
    %1805 = vrot.lane.b32.xlu0 %v1756, 96
    %v1806 = vpop.permute.xlu0 %1805
    %1809 = vrot.lane.b32.xlu0 %v1752, 64
    %v1810 = vpop.permute.xlu0 %1809
    %1811 = vrot.lane.b32.xlu0 %v1756, 64
    %v1812 = vpop.permute.xlu0 %1811
    %1815 = vrot.lane.b32.xlu0 %v1752, 32
    %v1816 = vpop.permute.xlu0 %1815
    %1817 = vrot.lane.b32.xlu0 %v1756, 32
    %v1818 = vpop.permute.xlu0 %1817
    %v1821 = vpack.c.bf16 %v1756, %v1752
    %v1822 = vpack.c.bf16 %v1806, %v1804
    %v1823 = vpack.c.bf16 %v1812, %v1810
    %v1824 = vpack.c.bf16 %v1818, %v1816
    %1827 = vrot.lane.b32.xlu0 %v1754, 96
    %v1828 = vpop.permute.xlu0 %1827
    %1829 = vrot.lane.b32.xlu0 %v1758, 96
    %v1830 = vpop.permute.xlu0 %1829
    %1833 = vrot.lane.b32.xlu0 %v1754, 64
    %v1834 = vpop.permute.xlu0 %1833
    %1835 = vrot.lane.b32.xlu0 %v1758, 64
    %v1836 = vpop.permute.xlu0 %1835
    %1839 = vrot.lane.b32.xlu0 %v1754, 32
    %v1840 = vpop.permute.xlu0 %1839
    %1841 = vrot.lane.b32.xlu0 %v1758, 32
    %v1842 = vpop.permute.xlu0 %1841
    %v1845 = vpack.c.bf16 %v1758, %v1754
    %v1846 = vpack.c.bf16 %v1830, %v1828
    %v1847 = vpack.c.bf16 %v1836, %v1834
    %v1848 = vpack.c.bf16 %v1842, %v1840
    %1851 = vrot.lane.b32.xlu0 %v1795, 96
    %v1852 = vpop.permute.xlu0 %1851
    %1853 = vrot.lane.b32.xlu0 %v1798, 96
    %v1854 = vpop.permute.xlu0 %1853
    %1857 = vrot.lane.b32.xlu0 %v1795, 64
    %v1858 = vpop.permute.xlu0 %1857
    %1859 = vrot.lane.b32.xlu0 %v1798, 64
    %v1860 = vpop.permute.xlu0 %1859
    %1863 = vrot.lane.b32.xlu0 %v1795, 32
    %v1864 = vpop.permute.xlu0 %1863
    %1865 = vrot.lane.b32.xlu0 %v1798, 32
    %v1866 = vpop.permute.xlu0 %1865
    %v1869 = vpack.c.bf16 %v1798, %v1795
    %v1870 = vpack.c.bf16 %v1854, %v1852
    %v1871 = vpack.c.bf16 %v1860, %v1858
    %v1872 = vpack.c.bf16 %v1866, %v1864
    %v1874 = vsel %vm585, %v1821, 0
    %v1877 = vsel %vm585, %v1822, 0
    %v1880 = vsel %vm585, %v1823, 0
    %v1883 = vsel %vm585, %v1824, 0
    %v1886 = vsel %vm585, %v1845, 0
    %v1889 = vsel %vm585, %v1846, 0
    %v1892 = vsel %vm585, %v1847, 0
    %v1895 = vsel %vm585, %v1848, 0
    %1897 = vmatprep.subr.bf16.mxu0 0
    %1898 = vmatpush1.bf16.xpose.msra.mxu0 %v1886
    %1899 = vmatprep.subr.bf16.mxu0 0
    %1900 = vmatpush1.bf16.xpose.msra.mxu0 %v1889
    %1901 = vmatprep.subr.bf16.mxu0 0
    %1902 = vmatpush1.bf16.xpose.msra.mxu0 %v1892
    %1903 = vmatprep.subr.bf16.mxu0 0
    %1904 = vmatpush1.bf16.xpose.msra.mxu0 %v1895
    %1905 = vmatprep.subr.bf16.mxu0 0
    %1906 = vmatpush1.bf16.xpose.msra.mxu0 0
    %1907 = vmatprep.subr.bf16.mxu0 0
    %1908 = vmatpush1.bf16.xpose.msra.mxu0 0
    %1909 = vmatprep.subr.bf16.mxu0 0
    %1910 = vmatpush1.bf16.xpose.msra.mxu0 0
    %1911 = vmatprep.subr.bf16.mxu0 0
    %1912 = vmatpush1.bf16.xpose.msra.mxu0 0
    %1913 = vmatprep.subr.bf16.mxu0 0
    %1914 = vmatpush1.bf16.xpose.msra.mxu0 0
    %1915 = vmatprep.subr.bf16.mxu0 0
    %1916 = vmatpush1.bf16.xpose.msra.mxu0 0
    %1917 = vmatprep.subr.bf16.mxu0 0
    %1918 = vmatpush1.bf16.xpose.msra.mxu0 0
    %1919 = vmatprep.subr.bf16.mxu0 0
    %1920 = vmatpush1.bf16.xpose.msra.mxu0 0
    %1921 = vmatprep.subr.bf16.mxu0 0
    %1922 = vmatpush1.bf16.xpose.msra.mxu0 0
    %1923 = vmatprep.subr.bf16.mxu0 0
    %1924 = vmatpush1.bf16.xpose.msra.mxu0 0
    %1925 = vmatprep.subr.bf16.mxu0 0
    %1926 = vmatpush1.bf16.xpose.msra.mxu0 0
    %1927 = vmatprep.subr.bf16.mxu0 0
    %1928 = vmatpush1.bf16.xpose.msra.mxu0 0
    %1929 = vmatprep.mubr.bf16.mxu0 0
    %1930 = vmatmul.mubr.bf16.gmra.mrb[0].mxu0 %v1874
    %v1931 = vpop.f32.mrb[0].mxu0
    %v1932 = vadd.f32 0.0, %v1931
    %v1933 = vpop.f32.mrb[0].mxu0
    %v1934 = vpop.f32.mrb[0].mxu0
    %v1935 = vadd.f32 0.0, %v1934
    %v1936 = vpop.f32.mrb[0].mxu0
    %1937 = vmatprep.mubr.bf16.mxu0 0
    %1938 = vmatmul.mubr.bf16.gmra.mrb[0].mxu0 %v1877
    %v1939 = vpop.f32.mrb[0].mxu0
    %v1940 = vadd.f32 0.0, %v1939
    %v1941 = vpop.f32.mrb[0].mxu0
    %v1942 = vpop.f32.mrb[0].mxu0
    %v1943 = vadd.f32 0.0, %v1942
    %v1944 = vpop.f32.mrb[0].mxu0
    %1945 = vmatprep.mubr.bf16.mxu0 0
    %1946 = vmatmul.mubr.bf16.gmra.mrb[0].mxu0 %v1880
    %v1947 = vpop.f32.mrb[0].mxu0
    %v1948 = vadd.f32 0.0, %v1947
    %v1949 = vpop.f32.mrb[0].mxu0
    %v1950 = vpop.f32.mrb[0].mxu0
    %v1951 = vadd.f32 0.0, %v1950
    %v1952 = vpop.f32.mrb[0].mxu0
    %1953 = vmatprep.mubr.bf16.mxu0 0
    %1954 = vmatmul.mubr.bf16.gmra.mrb[0].mxu0 %v1883
    %v1955 = vpop.f32.mrb[0].mxu0
    %v1956 = vadd.f32 0.0, %v1955
    %v1957 = vpop.f32.mrb[0].mxu0
    %v1958 = vpop.f32.mrb[0].mxu0
    %v1959 = vadd.f32 0.0, %v1958
    %v1960 = vpop.f32.mrb[0].mxu0
    %1961 = vdwg.mxu0
    %v1962 = vmul.f32 %v1932, 0.17677669
    %v1963 = vmul.f32 %v1935, 0.17677669
    %v1964 = vmul.f32 %v1940, 0.17677669
    %v1965 = vmul.f32 %v1943, 0.17677669
    %v1966 = vmul.f32 %v1948, 0.17677669
    %v1967 = vmul.f32 %v1951, 0.17677669
    %v1968 = vmul.f32 %v1956, 0.17677669
    %v1969 = vmul.f32 %v1959, 0.17677669
    %v1970 = vadd.f32 %v1962, %v162
    %v1971 = vadd.f32 %v1963, %v163
    %v1972 = vadd.f32 %v1964, %v164
    %v1973 = vadd.f32 %v1965, %v165
    %v1974 = vadd.f32 %v1966, %v166
    %v1975 = vadd.f32 %v1967, %v167
    %v1976 = vadd.f32 %v1968, %v168
    %v1977 = vadd.f32 %v1969, %v169
    %v1978 = vsel %vm691, %v1970, -inf
    %1979 = vmax.xlane.f32.xlu0 %v1978
    %v1980 = vpop.xlane.xlu0 %1979
    %v1981 = vsel %vm691, %v1971, -inf
    %1982 = vmax.xlane.f32.xlu0 %v1981
    %v1983 = vpop.xlane.xlu0 %1982
    %v1984 = vsel %vm691, %v1972, -inf
    %1985 = vmax.xlane.f32.xlu0 %v1984
    %v1986 = vpop.xlane.xlu0 %1985
    %v1987 = vsel %vm691, %v1973, -inf
    %1988 = vmax.xlane.f32.xlu0 %v1987
    %v1989 = vpop.xlane.xlu0 %1988
    %v1990 = vsel %vm691, %v1974, -inf
    %1991 = vmax.xlane.f32.xlu0 %v1990
    %v1992 = vpop.xlane.xlu0 %1991
    %v1993 = vsel %vm691, %v1975, -inf
    %1994 = vmax.xlane.f32.xlu0 %v1993
    %v1995 = vpop.xlane.xlu0 %1994
    %v1996 = vsel %vm691, %v1976, -inf
    %1997 = vmax.xlane.f32.xlu0 %v1996
    %v1998 = vpop.xlane.xlu0 %1997
    %v1999 = vsel %vm691, %v1977, -inf
    %2000 = vmax.xlane.f32.xlu0 %v1999
    %v2001 = vpop.xlane.xlu0 %2000
    %v2002 = vsub.f32 %v1970, %v1980
    %v2003 = vsub.f32 %v1971, %v1983
    %v2004 = vsub.f32 %v1972, %v1986
    %v2005 = vsub.f32 %v1973, %v1989
    %v2006 = vsub.f32 %v1974, %v1992
    %v2007 = vsub.f32 %v1975, %v1995
    %v2008 = vsub.f32 %v1976, %v1998
    %v2009 = vsub.f32 %v1977, %v2001
    %v2010 = vmul.f32 %v2002, 1.442695
    %v2011 = vpow.pop %v2010
    %v2012 = vmul.f32 %v2003, 1.442695
    %v2013 = vpow.pop %v2012
    %v2014 = vmul.f32 %v2004, 1.442695
    %v2015 = vpow.pop %v2014
    %v2016 = vmul.f32 %v2005, 1.442695
    %v2017 = vpow.pop %v2016
    %v2018 = vmul.f32 %v2006, 1.442695
    %v2019 = vpow.pop %v2018
    %v2020 = vmul.f32 %v2007, 1.442695
    %v2021 = vpow.pop %v2020
    %v2022 = vmul.f32 %v2008, 1.442695
    %v2023 = vpow.pop %v2022
    %v2024 = vmul.f32 %v2009, 1.442695
    %v2025 = vpow.pop %v2024
    %v2026 = vsel %vm691, %v2011, 0.0
    %2027 = vadd.xlane.f32.xlu0 %v2026
    %v2028 = vpop.xlane.xlu0 %2027
    %v2029 = vsel %vm691, %v2013, 0.0
    %2030 = vadd.xlane.f32.xlu0 %v2029
    %v2031 = vpop.xlane.xlu0 %2030
    %v2032 = vsel %vm691, %v2015, 0.0
    %2033 = vadd.xlane.f32.xlu0 %v2032
    %v2034 = vpop.xlane.xlu0 %2033
    %v2035 = vsel %vm691, %v2017, 0.0
    %2036 = vadd.xlane.f32.xlu0 %v2035
    %v2037 = vpop.xlane.xlu0 %2036
    %v2038 = vsel %vm691, %v2019, 0.0
    %2039 = vadd.xlane.f32.xlu0 %v2038
    %v2040 = vpop.xlane.xlu0 %2039
    %v2041 = vsel %vm691, %v2021, 0.0
    %2042 = vadd.xlane.f32.xlu0 %v2041
    %v2043 = vpop.xlane.xlu0 %2042
    %v2044 = vsel %vm691, %v2023, 0.0
    %2045 = vadd.xlane.f32.xlu0 %v2044
    %v2046 = vpop.xlane.xlu0 %2045
    %v2047 = vsel %vm691, %v2025, 0.0
    %2048 = vadd.xlane.f32.xlu0 %v2047
    %v2049 = vpop.xlane.xlu0 %2048
    %v2050 = vrcp.pop %v2028
    %v2051 = vrcp.pop %v2031
    %v2052 = vrcp.pop %v2034
    %v2053 = vrcp.pop %v2037
    %v2054 = vrcp.pop %v2040
    %v2055 = vrcp.pop %v2043
    %v2056 = vrcp.pop %v2046
    %v2057 = vrcp.pop %v2049
    %v2058 = vmul.f32 %v2011, %v2050
    %v2059 = vmul.f32 %v2013, %v2051
    %v2060 = vmul.f32 %v2015, %v2052
    %v2061 = vmul.f32 %v2017, %v2053
    %v2062 = vmul.f32 %v2019, %v2054
    %v2063 = vmul.f32 %v2021, %v2055
    %v2064 = vmul.f32 %v2023, %v2056
    %v2065 = vmul.f32 %v2025, %v2057
    %v2066 = vpack.c.bf16 %v2059, %v2058
    %v2067 = vpack.c.bf16 %v2061, %v2060
    %v2068 = vpack.c.bf16 %v2063, %v2062
    %v2069 = vpack.c.bf16 %v2065, %v2064
    %v2071 = vsel %vm691, %v2066, 0
    %v2074 = vsel %vm691, %v2067, 0
    %v2077 = vsel %vm691, %v2068, 0
    %v2080 = vsel %vm691, %v2069, 0
    %2082 = vmatprep.subr.bf16.mxu0 0
    %2083 = vmatpush1.bf16.msra.mxu0 %v1869
    %2084 = vmatprep.subr.bf16.mxu0 0
    %2085 = vmatpush1.bf16.msra.mxu0 %v1870
    %2086 = vmatprep.subr.bf16.mxu0 0
    %2087 = vmatpush1.bf16.msra.mxu0 %v1871
    %2088 = vmatprep.subr.bf16.mxu0 0
    %2089 = vmatpush1.bf16.msra.mxu0 %v1872
    %2090 = vmatprep.subr.bf16.mxu0 0
    %2091 = vmatpush1.bf16.msra.mxu0 0
    %2092 = vmatprep.subr.bf16.mxu0 0
    %2093 = vmatpush1.bf16.msra.mxu0 0
    %2094 = vmatprep.subr.bf16.mxu0 0
    %2095 = vmatpush1.bf16.msra.mxu0 0
    %2096 = vmatprep.subr.bf16.mxu0 0
    %2097 = vmatpush1.bf16.msra.mxu0 0
    %2098 = vmatprep.subr.bf16.mxu0 0
    %2099 = vmatpush1.bf16.msra.mxu0 0
    %2100 = vmatprep.subr.bf16.mxu0 0
    %2101 = vmatpush1.bf16.msra.mxu0 0
    %2102 = vmatprep.subr.bf16.mxu0 0
    %2103 = vmatpush1.bf16.msra.mxu0 0
    %2104 = vmatprep.subr.bf16.mxu0 0
    %2105 = vmatpush1.bf16.msra.mxu0 0
    %2106 = vmatprep.subr.bf16.mxu0 0
    %2107 = vmatpush1.bf16.msra.mxu0 0
    %2108 = vmatprep.subr.bf16.mxu0 0
    %2109 = vmatpush1.bf16.msra.mxu0 0
    %2110 = vmatprep.subr.bf16.mxu0 0
    %2111 = vmatpush1.bf16.msra.mxu0 0
    %2112 = vmatprep.subr.bf16.mxu0 0
    %2113 = vmatpush1.bf16.msra.mxu0 0
    %2114 = vmatprep.mubr.bf16.mxu0 0
    %2115 = vmatmul.mubr.bf16.gmra.mrb[0].mxu0 %v2071
    %v2116 = vpop.f32.mrb[0].mxu0
    %v2117 = vadd.f32 0.0, %v2116
    %v2118 = vpop.f32.mrb[0].mxu0
    %v2119 = vpop.f32.mrb[0].mxu0
    %v2120 = vadd.f32 0.0, %v2119
    %v2121 = vpop.f32.mrb[0].mxu0
    %2122 = vmatprep.mubr.bf16.mxu0 0
    %2123 = vmatmul.mubr.bf16.gmra.mrb[0].mxu0 %v2074
    %v2124 = vpop.f32.mrb[0].mxu0
    %v2125 = vadd.f32 0.0, %v2124
    %v2126 = vpop.f32.mrb[0].mxu0
    %v2127 = vpop.f32.mrb[0].mxu0
    %v2128 = vadd.f32 0.0, %v2127
    %v2129 = vpop.f32.mrb[0].mxu0
    %2130 = vmatprep.mubr.bf16.mxu0 0
    %2131 = vmatmul.mubr.bf16.gmra.mrb[0].mxu0 %v2077
    %v2132 = vpop.f32.mrb[0].mxu0
    %v2133 = vadd.f32 0.0, %v2132
    %v2134 = vpop.f32.mrb[0].mxu0
    %v2135 = vpop.f32.mrb[0].mxu0
    %v2136 = vadd.f32 0.0, %v2135
    %v2137 = vpop.f32.mrb[0].mxu0
    %2138 = vmatprep.mubr.bf16.mxu0 0
    %2139 = vmatmul.mubr.bf16.gmra.mrb[0].mxu0 %v2080
    %v2140 = vpop.f32.mrb[0].mxu0
    %v2141 = vadd.f32 0.0, %v2140
    %v2142 = vpop.f32.mrb[0].mxu0
    %v2143 = vpop.f32.mrb[0].mxu0
    %v2144 = vadd.f32 0.0, %v2143
    %v2145 = vpop.f32.mrb[0].mxu0
    %2146 = vdwg.mxu0
    %s2147 = scalar_lea.vmem %s7, 64
    %v2148 = vld [vmem:[%s2147] sm:$0xf]
    %v2149 = vld [vmem:[%s2147 + $0x4] sm:$0xf]
    %v2150 = vld [vmem:[%s2147 + $0x8] sm:$0xf]
    %v2151 = vld [vmem:[%s2147 + $0xc] sm:$0xf]
    %v2152 = vld [vmem:[%s2147 + $0x10] sm:$0xf]
    %v2153 = vld [vmem:[%s2147 + $0x14] sm:$0xf]
    %v2154 = vld [vmem:[%s2147 + $0x18] sm:$0xf]
    %v2155 = vld [vmem:[%s2147 + $0x1c] sm:$0xf]
    %v2156 = vld [vmem:[%s2147 + $0x20] sm:$0xf]
    %v2157 = vld [vmem:[%s2147 + $0x24] sm:$0xf]
    %v2158 = vld [vmem:[%s2147 + $0x28] sm:$0xf]
    %v2159 = vld [vmem:[%s2147 + $0x2c] sm:$0xf]
    %v2160 = vld [vmem:[%s2147 + $0x30] sm:$0xf]
    %v2161 = vld [vmem:[%s2147 + $0x34] sm:$0xf]
    %v2162 = vld [vmem:[%s2147 + $0x38] sm:$0xf]
    %v2163 = vld [vmem:[%s2147 + $0x3c] sm:$0xf]
    %v2164 = vpack.c.bf16 %v2120, %v2117
    %v2165 = vpack.c.bf16 %v2128, %v2125
    %v2170 = vunpack.c.l.b16 %v2152
    %v2171 = vunpack.c.l.b16 %v2153
    %v2172 = vunpack.c.l.b16 %v2154
    %v2173 = vunpack.c.l.b16 %v2155
    %v2174 = vpack.c.b16 %v2171, %v2170
    %v2175 = vpack.c.b16 %v2173, %v2172
    %v2179 = vsel %vm585, %v2165, 0
    %2181 = vmatprep.subr.bf16.mxu0 0
    %2182 = vmatpush1.bf16.msra.mxu0 %v2174
    %2183 = vmatprep.subr.bf16.mxu0 0
    %2184 = vmatpush1.bf16.msra.mxu0 %v2175
    %2185 = vmatprep.subr.bf16.mxu0 0
    %2186 = vmatpush1.bf16.msra.mxu0 0
    %2187 = vmatprep.subr.bf16.mxu0 0
    %2188 = vmatpush1.bf16.msra.mxu0 0
    %2189 = vmatprep.subr.bf16.mxu0 0
    %2190 = vmatpush1.bf16.msra.mxu0 0
    %2191 = vmatprep.subr.bf16.mxu0 0
    %2192 = vmatpush1.bf16.msra.mxu0 0
    %2193 = vmatprep.subr.bf16.mxu0 0
    %2194 = vmatpush1.bf16.msra.mxu0 0
    %2195 = vmatprep.subr.bf16.mxu0 0
    %2196 = vmatpush1.bf16.msra.mxu0 0
    %2197 = vmatprep.subr.bf16.mxu0 0
    %2198 = vmatpush1.bf16.msra.mxu0 0
    %2199 = vmatprep.subr.bf16.mxu0 0
    %2200 = vmatpush1.bf16.msra.mxu0 0
    %2201 = vmatprep.subr.bf16.mxu0 0
    %2202 = vmatpush1.bf16.msra.mxu0 0
    %2203 = vmatprep.subr.bf16.mxu0 0
    %2204 = vmatpush1.bf16.msra.mxu0 0
    %2205 = vmatprep.subr.bf16.mxu0 0
    %2206 = vmatpush1.bf16.msra.mxu0 0
    %2207 = vmatprep.subr.bf16.mxu0 0
    %2208 = vmatpush1.bf16.msra.mxu0 0
    %2209 = vmatprep.subr.bf16.mxu0 0
    %2210 = vmatpush1.bf16.msra.mxu0 0
    %2211 = vmatprep.subr.bf16.mxu0 0
    %2212 = vmatpush1.bf16.msra.mxu0 0
    %2213 = vmatprep.mubr.bf16.mxu0 0
    %2214 = vmatmul.mubr.bf16.gmra.mrb[0].mxu0 %v2179
    %v2215 = vpop.f32.mrb[0].mxu0
    %v2216 = vadd.f32 0.0, %v2215
    %v2217 = vpop.f32.mrb[0].mxu0
    %v2218 = vpop.f32.mrb[0].mxu0
    %v2219 = vadd.f32 0.0, %v2218
    %v2220 = vpop.f32.mrb[0].mxu0
    %2221 = vdwg.mxu0
    %v2226 = vunpack.c.l.b16 %v2148
    %v2227 = vunpack.c.l.b16 %v2149
    %v2228 = vunpack.c.l.b16 %v2150
    %v2229 = vunpack.c.l.b16 %v2151
    %v2230 = vpack.c.b16 %v2227, %v2226
    %v2231 = vpack.c.b16 %v2229, %v2228
    %v2235 = vsel %vm585, %v2164, 0
    %2237 = vmatprep.subr.bf16.mxu0 0
    %2238 = vmatpush1.bf16.msra.mxu0 %v2230
    %2239 = vmatprep.subr.bf16.mxu0 0
    %2240 = vmatpush1.bf16.msra.mxu0 %v2231
    %2241 = vmatprep.subr.bf16.mxu0 0
    %2242 = vmatpush1.bf16.msra.mxu0 0
    %2243 = vmatprep.subr.bf16.mxu0 0
    %2244 = vmatpush1.bf16.msra.mxu0 0
    %2245 = vmatprep.subr.bf16.mxu0 0
    %2246 = vmatpush1.bf16.msra.mxu0 0
    %2247 = vmatprep.subr.bf16.mxu0 0
    %2248 = vmatpush1.bf16.msra.mxu0 0
    %2249 = vmatprep.subr.bf16.mxu0 0
    %2250 = vmatpush1.bf16.msra.mxu0 0
    %2251 = vmatprep.subr.bf16.mxu0 0
    %2252 = vmatpush1.bf16.msra.mxu0 0
    %2253 = vmatprep.subr.bf16.mxu0 0
    %2254 = vmatpush1.bf16.msra.mxu0 0
    %2255 = vmatprep.subr.bf16.mxu0 0
    %2256 = vmatpush1.bf16.msra.mxu0 0
    %2257 = vmatprep.subr.bf16.mxu0 0
    %2258 = vmatpush1.bf16.msra.mxu0 0
    %2259 = vmatprep.subr.bf16.mxu0 0
    %2260 = vmatpush1.bf16.msra.mxu0 0
    %2261 = vmatprep.subr.bf16.mxu0 0
    %2262 = vmatpush1.bf16.msra.mxu0 0
    %2263 = vmatprep.subr.bf16.mxu0 0
    %2264 = vmatpush1.bf16.msra.mxu0 0
    %2265 = vmatprep.subr.bf16.mxu0 0
    %2266 = vmatpush1.bf16.msra.mxu0 0
    %2267 = vmatprep.subr.bf16.mxu0 0
    %2268 = vmatpush1.bf16.msra.mxu0 0
    %2269 = vmatprep.mubr.bf16.mxu0 0
    %2270 = vmatmul.mubr.bf16.gmra.mrb[0].mxu0 %v2235
    %v2271 = vpop.f32.mrb[0].mxu0
    %v2272 = vadd.f32 %v2216, %v2271
    %v2273 = vpop.f32.mrb[0].mxu0
    %v2274 = vpop.f32.mrb[0].mxu0
    %v2275 = vadd.f32 %v2219, %v2274
    %v2276 = vpop.f32.mrb[0].mxu0
    %2277 = vdwg.mxu0
    %v2278 = vpack.c.bf16 %v2136, %v2133
    %v2283 = vunpack.c.l.b16 %v2156
    %v2284 = vunpack.c.l.b16 %v2157
    %v2285 = vunpack.c.l.b16 %v2158
    %v2286 = vunpack.c.l.b16 %v2159
    %v2287 = vpack.c.b16 %v2284, %v2283
    %v2288 = vpack.c.b16 %v2286, %v2285
    %v2292 = vsel %vm585, %v2278, 0
    %2294 = vmatprep.subr.bf16.mxu0 0
    %2295 = vmatpush1.bf16.msra.mxu0 %v2287
    %2296 = vmatprep.subr.bf16.mxu0 0
    %2297 = vmatpush1.bf16.msra.mxu0 %v2288
    %2298 = vmatprep.subr.bf16.mxu0 0
    %2299 = vmatpush1.bf16.msra.mxu0 0
    %2300 = vmatprep.subr.bf16.mxu0 0
    %2301 = vmatpush1.bf16.msra.mxu0 0
    %2302 = vmatprep.subr.bf16.mxu0 0
    %2303 = vmatpush1.bf16.msra.mxu0 0
    %2304 = vmatprep.subr.bf16.mxu0 0
    %2305 = vmatpush1.bf16.msra.mxu0 0
    %2306 = vmatprep.subr.bf16.mxu0 0
    %2307 = vmatpush1.bf16.msra.mxu0 0
    %2308 = vmatprep.subr.bf16.mxu0 0
    %2309 = vmatpush1.bf16.msra.mxu0 0
    %2310 = vmatprep.subr.bf16.mxu0 0
    %2311 = vmatpush1.bf16.msra.mxu0 0
    %2312 = vmatprep.subr.bf16.mxu0 0
    %2313 = vmatpush1.bf16.msra.mxu0 0
    %2314 = vmatprep.subr.bf16.mxu0 0
    %2315 = vmatpush1.bf16.msra.mxu0 0
    %2316 = vmatprep.subr.bf16.mxu0 0
    %2317 = vmatpush1.bf16.msra.mxu0 0
    %2318 = vmatprep.subr.bf16.mxu0 0
    %2319 = vmatpush1.bf16.msra.mxu0 0
    %2320 = vmatprep.subr.bf16.mxu0 0
    %2321 = vmatpush1.bf16.msra.mxu0 0
    %2322 = vmatprep.subr.bf16.mxu0 0
    %2323 = vmatpush1.bf16.msra.mxu0 0
    %2324 = vmatprep.subr.bf16.mxu0 0
    %2325 = vmatpush1.bf16.msra.mxu0 0
    %2326 = vmatprep.mubr.bf16.mxu0 0
    %2327 = vmatmul.mubr.bf16.gmra.mrb[0].mxu0 %v2292
    %v2328 = vpop.f32.mrb[0].mxu0
    %v2329 = vadd.f32 0.0, %v2328
    %v2330 = vpop.f32.mrb[0].mxu0
    %v2331 = vpop.f32.mrb[0].mxu0
    %v2332 = vadd.f32 0.0, %v2331
    %v2333 = vpop.f32.mrb[0].mxu0
    %2334 = vdwg.mxu0
    %v2335 = vadd.f32 %v2272, %v2329
    %v2336 = vadd.f32 %v2275, %v2332
    %v2337 = vpack.c.bf16 %v2144, %v2141
    %v2342 = vunpack.c.l.b16 %v2160
    %v2343 = vunpack.c.l.b16 %v2161
    %v2344 = vunpack.c.l.b16 %v2162
    %v2345 = vunpack.c.l.b16 %v2163
    %v2346 = vpack.c.b16 %v2343, %v2342
    %v2347 = vpack.c.b16 %v2345, %v2344
    %v2351 = vsel %vm585, %v2337, 0
    %2353 = vmatprep.subr.bf16.mxu0 0
    %2354 = vmatpush1.bf16.msra.mxu0 %v2346
    %2355 = vmatprep.subr.bf16.mxu0 0
    %2356 = vmatpush1.bf16.msra.mxu0 %v2347
    %2357 = vmatprep.subr.bf16.mxu0 0
    %2358 = vmatpush1.bf16.msra.mxu0 0
    %2359 = vmatprep.subr.bf16.mxu0 0
    %2360 = vmatpush1.bf16.msra.mxu0 0
    %2361 = vmatprep.subr.bf16.mxu0 0
    %2362 = vmatpush1.bf16.msra.mxu0 0
    %2363 = vmatprep.subr.bf16.mxu0 0
    %2364 = vmatpush1.bf16.msra.mxu0 0
    %2365 = vmatprep.subr.bf16.mxu0 0
    %2366 = vmatpush1.bf16.msra.mxu0 0
    %2367 = vmatprep.subr.bf16.mxu0 0
    %2368 = vmatpush1.bf16.msra.mxu0 0
    %2369 = vmatprep.subr.bf16.mxu0 0
    %2370 = vmatpush1.bf16.msra.mxu0 0
    %2371 = vmatprep.subr.bf16.mxu0 0
    %2372 = vmatpush1.bf16.msra.mxu0 0
    %2373 = vmatprep.subr.bf16.mxu0 0
    %2374 = vmatpush1.bf16.msra.mxu0 0
    %2375 = vmatprep.subr.bf16.mxu0 0
    %2376 = vmatpush1.bf16.msra.mxu0 0
    %2377 = vmatprep.subr.bf16.mxu0 0
    %2378 = vmatpush1.bf16.msra.mxu0 0
    %2379 = vmatprep.subr.bf16.mxu0 0
    %2380 = vmatpush1.bf16.msra.mxu0 0
    %2381 = vmatprep.subr.bf16.mxu0 0
    %2382 = vmatpush1.bf16.msra.mxu0 0
    %2383 = vmatprep.subr.bf16.mxu0 0
    %2384 = vmatpush1.bf16.msra.mxu0 0
    %2385 = vmatprep.mubr.bf16.mxu0 0
    %2386 = vmatmul.mubr.bf16.gmra.mrb[0].mxu0 %v2351
    %v2387 = vpop.f32.mrb[0].mxu0
    %v2388 = vadd.f32 0.0, %v2387
    %v2389 = vpop.f32.mrb[0].mxu0
    %v2390 = vpop.f32.mrb[0].mxu0
    %v2391 = vadd.f32 0.0, %v2390
    %v2392 = vpop.f32.mrb[0].mxu0
    %2393 = vdwg.mxu0
    %v2394 = vadd.f32 %v2335, %v2388
    %v2395 = vadd.f32 %v2336, %v2391
    %s2396 = scalar_lea.vmem %s8, 1
    %v2397 = vld [vmem:[%s2396] sm:$0x1]
    %v2399 = vlaneseq
    %v2400 = vshrl.u32 %v2399, 7
    %v2401 = vsub.s32 0, %v2400
    %v2402 = vrot.slane %v2397, %v2401
    %v2404 = vadd.f32 %v2394, %v2402
    %v2405 = vadd.f32 %v2395, %v2402
    %v2406 = vadd.f32 %v1535, %v2404
    %v2407 = vadd.f32 %v1536, %v2405
    %s2408 = scalar_lea.vmem %s9, 1
    %v2409 = vld [vmem:[%s2408] sm:$0x1]
    %s2410 = scalar_lea.vmem %s10, 1
    %v2411 = vld [vmem:[%s2410] sm:$0x1]
    %2412 = vadd.xlane.f32.xlu0 %v2406
    %v2413 = vpop.xlane.xlu0 %2412
    %2414 = vadd.xlane.f32.xlu0 %v2407
    %v2415 = vpop.xlane.xlu0 %2414
    %v2416 = vmul.f32 %v2413, %v1126
    %v2417 = vmul.f32 %v2415, %v1126
    %v2418 = vsub.f32 %v2406, %v2416
    %v2419 = vsub.f32 %v2407, %v2417
    %v2420 = vmul.f32 %v2418, %v2418
    %v2421 = vmul.f32 %v2419, %v2419
    %2422 = vadd.xlane.f32.xlu0 %v2420
    %v2423 = vpop.xlane.xlu0 %2422
    %2424 = vadd.xlane.f32.xlu0 %v2421
    %v2425 = vpop.xlane.xlu0 %2424
    %v2426 = vmul.f32 %v2423, %v1126
    %v2427 = vmul.f32 %v2425, %v1126
    %v2428 = vadd.f32 %v2426, 1e-05
    %v2429 = vadd.f32 %v2427, 1e-05
    %v2430 = vrsqrt.pop %v2428
    %v2431 = vrsqrt.pop %v2429
    %v2432 = vmul.f32 %v2418, %v2430
    %v2433 = vmul.f32 %v2419, %v2431
    %v2435 = vlaneseq
    %v2436 = vshrl.u32 %v2435, 7
    %v2437 = vsub.s32 0, %v2436
    %v2438 = vrot.slane %v2409, %v2437
    %v2440 = vmul.f32 %v2432, %v2438
    %v2441 = vmul.f32 %v2433, %v2438
    %v2443 = vlaneseq
    %v2444 = vshrl.u32 %v2443, 7
    %v2445 = vsub.s32 0, %v2444
    %v2446 = vrot.slane %v2411, %v2445
    %v2448 = vadd.f32 %v2440, %v2446
    %v2449 = vadd.f32 %v2441, %v2446
    %v2450 = vpack.c.bf16 %v2449, %v2448
    %s2451 = scalar_lea.vmem %s11, 128
    %v2452 = vld [vmem:[%s2451] sm:$0xff]
    %v2453 = vld [vmem:[%s2451 + $0x8] sm:$0xff]
    %v2454 = vld [vmem:[%s2451 + $0x10] sm:$0xff]
    %v2455 = vld [vmem:[%s2451 + $0x18] sm:$0xff]
    %v2456 = vld [vmem:[%s2451 + $0x20] sm:$0xff]
    %v2457 = vld [vmem:[%s2451 + $0x28] sm:$0xff]
    %v2458 = vld [vmem:[%s2451 + $0x30] sm:$0xff]
    %v2459 = vld [vmem:[%s2451 + $0x38] sm:$0xff]
    %v2460 = vld [vmem:[%s2451 + $0x40] sm:$0xff]
    %v2461 = vld [vmem:[%s2451 + $0x48] sm:$0xff]
    %v2462 = vld [vmem:[%s2451 + $0x50] sm:$0xff]
    %v2463 = vld [vmem:[%s2451 + $0x58] sm:$0xff]
    %v2464 = vld [vmem:[%s2451 + $0x60] sm:$0xff]
    %v2465 = vld [vmem:[%s2451 + $0x68] sm:$0xff]
    %v2466 = vld [vmem:[%s2451 + $0x70] sm:$0xff]
    %v2467 = vld [vmem:[%s2451 + $0x78] sm:$0xff]
    %s2468 = scalar_lea.vmem %s12, 2
    %v2469 = vld [vmem:[%s2468] sm:$0x3]
    %v2471 = vlaneseq
    %v2472 = vshrl.u32 %v2471, 7
    %v2473 = vsub.s32 0, %v2472
    %v2474 = vrot.slane %v2469, %v2473
    %v2475 = vlaneseq
    %v2476 = vshrl.u32 %v2475, 7
    %v2477 = vsub.s32 1, %v2476
    %v2478 = vrot.slane %v2469, %v2477
    %v2497 = vunpack.c.l.b16 %v2452
    %v2498 = vunpack.c.h.b16 %v2452
    %v2499 = vunpack.c.l.b16 %v2453
    %v2500 = vunpack.c.h.b16 %v2453
    %v2501 = vunpack.c.l.b16 %v2454
    %v2502 = vunpack.c.h.b16 %v2454
    %v2503 = vunpack.c.l.b16 %v2455
    %v2504 = vunpack.c.h.b16 %v2455
    %v2505 = vunpack.c.l.b16 %v2456
    %v2506 = vunpack.c.h.b16 %v2456
    %v2507 = vunpack.c.l.b16 %v2457
    %v2508 = vunpack.c.h.b16 %v2457
    %v2509 = vunpack.c.l.b16 %v2458
    %v2510 = vunpack.c.h.b16 %v2458
    %v2511 = vunpack.c.l.b16 %v2459
    %v2512 = vunpack.c.h.b16 %v2459
    %v2513 = vunpack.c.l.b16 %v2460
    %v2514 = vunpack.c.h.b16 %v2460
    %v2515 = vunpack.c.l.b16 %v2461
    %v2516 = vunpack.c.h.b16 %v2461
    %v2517 = vunpack.c.l.b16 %v2462
    %v2518 = vunpack.c.h.b16 %v2462
    %v2519 = vunpack.c.l.b16 %v2463
    %v2520 = vunpack.c.h.b16 %v2463
    %v2521 = vunpack.c.l.b16 %v2464
    %v2522 = vunpack.c.h.b16 %v2464
    %v2523 = vunpack.c.l.b16 %v2465
    %v2524 = vunpack.c.h.b16 %v2465
    %v2525 = vunpack.c.l.b16 %v2466
    %v2526 = vunpack.c.h.b16 %v2466
    %v2527 = vunpack.c.l.b16 %v2467
    %v2528 = vunpack.c.h.b16 %v2467
    %v2529 = vpack.c.b16 %v2499, %v2497
    %v2530 = vpack.c.b16 %v2500, %v2498
    %v2531 = vpack.c.b16 %v2503, %v2501
    %v2532 = vpack.c.b16 %v2504, %v2502
    %v2533 = vpack.c.b16 %v2507, %v2505
    %v2534 = vpack.c.b16 %v2508, %v2506
    %v2535 = vpack.c.b16 %v2511, %v2509
    %v2536 = vpack.c.b16 %v2512, %v2510
    %v2537 = vpack.c.b16 %v2515, %v2513
    %v2538 = vpack.c.b16 %v2516, %v2514
    %v2539 = vpack.c.b16 %v2519, %v2517
    %v2540 = vpack.c.b16 %v2520, %v2518
    %v2541 = vpack.c.b16 %v2523, %v2521
    %v2542 = vpack.c.b16 %v2524, %v2522
    %v2543 = vpack.c.b16 %v2527, %v2525
    %v2544 = vpack.c.b16 %v2528, %v2526
    %2561 = vmatprep.subr.bf16.mxu0 %v2530
    %2562 = vmatpush1.bf16.msra.mxu0 %v2529
    %2563 = vmatprep.subr.bf16.mxu0 %v2532
    %2564 = vmatpush1.bf16.msra.mxu0 %v2531
    %2565 = vmatprep.subr.bf16.mxu0 %v2534
    %2566 = vmatpush1.bf16.msra.mxu0 %v2533
    %2567 = vmatprep.subr.bf16.mxu0 %v2536
    %2568 = vmatpush1.bf16.msra.mxu0 %v2535
    %2569 = vmatprep.subr.bf16.mxu0 %v2538
    %2570 = vmatpush1.bf16.msra.mxu0 %v2537
    %2571 = vmatprep.subr.bf16.mxu0 %v2540
    %2572 = vmatpush1.bf16.msra.mxu0 %v2539
    %2573 = vmatprep.subr.bf16.mxu0 %v2542
    %2574 = vmatpush1.bf16.msra.mxu0 %v2541
    %2575 = vmatprep.subr.bf16.mxu0 %v2544
    %2576 = vmatpush1.bf16.msra.mxu0 %v2543
    %2577 = vmatprep.subr.bf16.mxu0 0
    %2578 = vmatpush1.bf16.msra.mxu0 0
    %2579 = vmatprep.subr.bf16.mxu0 0
    %2580 = vmatpush1.bf16.msra.mxu0 0
    %2581 = vmatprep.subr.bf16.mxu0 0
    %2582 = vmatpush1.bf16.msra.mxu0 0
    %2583 = vmatprep.subr.bf16.mxu0 0
    %2584 = vmatpush1.bf16.msra.mxu0 0
    %2585 = vmatprep.subr.bf16.mxu0 0
    %2586 = vmatpush1.bf16.msra.mxu0 0
    %2587 = vmatprep.subr.bf16.mxu0 0
    %2588 = vmatpush1.bf16.msra.mxu0 0
    %2589 = vmatprep.subr.bf16.mxu0 0
    %2590 = vmatpush1.bf16.msra.mxu0 0
    %2591 = vmatprep.subr.bf16.mxu0 0
    %2592 = vmatpush1.bf16.msra.mxu0 0
    %2593 = vmatprep.mubr.bf16.mxu0 0
    %2594 = vmatmul.mubr.bf16.gmra.mrb[0].mxu0 %v2450
    %v2595 = vpop.f32.mrb[0].mxu0
    %v2596 = vadd.f32 %v2474, %v2595
    %v2597 = vpop.f32.mrb[0].mxu0
    %v2598 = vadd.f32 %v2478, %v2597
    %v2599 = vpop.f32.mrb[0].mxu0
    %v2600 = vadd.f32 %v2474, %v2599
    %v2601 = vpop.f32.mrb[0].mxu0
    %v2602 = vadd.f32 %v2478, %v2601
    %2603 = vdwg.mxu0
    %v2604 = vmax.f32 %v2596, 0.0
    %v2605 = vmax.f32 %v2598, 0.0
    %v2606 = vmax.f32 %v2600, 0.0
    %v2607 = vmax.f32 %v2602, 0.0
    %v2608 = vpack.c.bf16 %v2606, %v2604
    %v2609 = vpack.c.bf16 %v2607, %v2605
    %s2610 = scalar_lea.vmem %s13, 128
    %v2611 = vld [vmem:[%s2610] sm:$0xf]
    %v2612 = vld [vmem:[%s2610 + $0x4] sm:$0xf]
    %v2613 = vld [vmem:[%s2610 + $0x8] sm:$0xf]
    %v2614 = vld [vmem:[%s2610 + $0xc] sm:$0xf]
    %v2615 = vld [vmem:[%s2610 + $0x10] sm:$0xf]
    %v2616 = vld [vmem:[%s2610 + $0x14] sm:$0xf]
    %v2617 = vld [vmem:[%s2610 + $0x18] sm:$0xf]
    %v2618 = vld [vmem:[%s2610 + $0x1c] sm:$0xf]
    %v2619 = vld [vmem:[%s2610 + $0x20] sm:$0xf]
    %v2620 = vld [vmem:[%s2610 + $0x24] sm:$0xf]
    %v2621 = vld [vmem:[%s2610 + $0x28] sm:$0xf]
    %v2622 = vld [vmem:[%s2610 + $0x2c] sm:$0xf]
    %v2623 = vld [vmem:[%s2610 + $0x30] sm:$0xf]
    %v2624 = vld [vmem:[%s2610 + $0x34] sm:$0xf]
    %v2625 = vld [vmem:[%s2610 + $0x38] sm:$0xf]
    %v2626 = vld [vmem:[%s2610 + $0x3c] sm:$0xf]
    %v2627 = vld [vmem:[%s2610 + $0x40] sm:$0xf]
    %v2628 = vld [vmem:[%s2610 + $0x44] sm:$0xf]
    %v2629 = vld [vmem:[%s2610 + $0x48] sm:$0xf]
    %v2630 = vld [vmem:[%s2610 + $0x4c] sm:$0xf]
    %v2631 = vld [vmem:[%s2610 + $0x50] sm:$0xf]
    %v2632 = vld [vmem:[%s2610 + $0x54] sm:$0xf]
    %v2633 = vld [vmem:[%s2610 + $0x58] sm:$0xf]
    %v2634 = vld [vmem:[%s2610 + $0x5c] sm:$0xf]
    %v2635 = vld [vmem:[%s2610 + $0x60] sm:$0xf]
    %v2636 = vld [vmem:[%s2610 + $0x64] sm:$0xf]
    %v2637 = vld [vmem:[%s2610 + $0x68] sm:$0xf]
    %v2638 = vld [vmem:[%s2610 + $0x6c] sm:$0xf]
    %v2639 = vld [vmem:[%s2610 + $0x70] sm:$0xf]
    %v2640 = vld [vmem:[%s2610 + $0x74] sm:$0xf]
    %v2641 = vld [vmem:[%s2610 + $0x78] sm:$0xf]
    %v2642 = vld [vmem:[%s2610 + $0x7c] sm:$0xf]
    %s2643 = scalar_lea.vmem %s14, 1
    %v2644 = vld [vmem:[%s2643] sm:$0x1]
    %v2646 = vlaneseq
    %v2647 = vshrl.u32 %v2646, 7
    %v2648 = vsub.s32 0, %v2647
    %v2649 = vrot.slane %v2644, %v2648
    %v2683 = vunpack.c.l.b16 %v2611
    %v2684 = vunpack.c.l.b16 %v2612
    %v2685 = vunpack.c.l.b16 %v2613
    %v2686 = vunpack.c.l.b16 %v2614
    %v2687 = vunpack.c.l.b16 %v2615
    %v2688 = vunpack.c.l.b16 %v2616
    %v2689 = vunpack.c.l.b16 %v2617
    %v2690 = vunpack.c.l.b16 %v2618
    %v2691 = vunpack.c.l.b16 %v2619
    %v2692 = vunpack.c.l.b16 %v2620
    %v2693 = vunpack.c.l.b16 %v2621
    %v2694 = vunpack.c.l.b16 %v2622
    %v2695 = vunpack.c.l.b16 %v2623
    %v2696 = vunpack.c.l.b16 %v2624
    %v2697 = vunpack.c.l.b16 %v2625
    %v2698 = vunpack.c.l.b16 %v2626
    %v2699 = vunpack.c.l.b16 %v2627
    %v2700 = vunpack.c.l.b16 %v2628
    %v2701 = vunpack.c.l.b16 %v2629
    %v2702 = vunpack.c.l.b16 %v2630
    %v2703 = vunpack.c.l.b16 %v2631
    %v2704 = vunpack.c.l.b16 %v2632
    %v2705 = vunpack.c.l.b16 %v2633
    %v2706 = vunpack.c.l.b16 %v2634
    %v2707 = vunpack.c.l.b16 %v2635
    %v2708 = vunpack.c.l.b16 %v2636
    %v2709 = vunpack.c.l.b16 %v2637
    %v2710 = vunpack.c.l.b16 %v2638
    %v2711 = vunpack.c.l.b16 %v2639
    %v2712 = vunpack.c.l.b16 %v2640
    %v2713 = vunpack.c.l.b16 %v2641
    %v2714 = vunpack.c.l.b16 %v2642
    %v2715 = vpack.c.b16 %v2684, %v2683
    %v2716 = vpack.c.b16 %v2686, %v2685
    %v2717 = vpack.c.b16 %v2688, %v2687
    %v2718 = vpack.c.b16 %v2690, %v2689
    %v2719 = vpack.c.b16 %v2692, %v2691
    %v2720 = vpack.c.b16 %v2694, %v2693
    %v2721 = vpack.c.b16 %v2696, %v2695
    %v2722 = vpack.c.b16 %v2698, %v2697
    %v2723 = vpack.c.b16 %v2700, %v2699
    %v2724 = vpack.c.b16 %v2702, %v2701
    %v2725 = vpack.c.b16 %v2704, %v2703
    %v2726 = vpack.c.b16 %v2706, %v2705
    %v2727 = vpack.c.b16 %v2708, %v2707
    %v2728 = vpack.c.b16 %v2710, %v2709
    %v2729 = vpack.c.b16 %v2712, %v2711
    %v2730 = vpack.c.b16 %v2714, %v2713
    %2747 = vmatprep.subr.bf16.mxu0 0
    %2748 = vmatpush1.bf16.msra.mxu0 %v2715
    %2749 = vmatprep.subr.bf16.mxu0 0
    %2750 = vmatpush1.bf16.msra.mxu0 %v2716
    %2751 = vmatprep.subr.bf16.mxu0 0
    %2752 = vmatpush1.bf16.msra.mxu0 %v2717
    %2753 = vmatprep.subr.bf16.mxu0 0
    %2754 = vmatpush1.bf16.msra.mxu0 %v2718
    %2755 = vmatprep.subr.bf16.mxu0 0
    %2756 = vmatpush1.bf16.msra.mxu0 %v2719
    %2757 = vmatprep.subr.bf16.mxu0 0
    %2758 = vmatpush1.bf16.msra.mxu0 %v2720
    %2759 = vmatprep.subr.bf16.mxu0 0
    %2760 = vmatpush1.bf16.msra.mxu0 %v2721
    %2761 = vmatprep.subr.bf16.mxu0 0
    %2762 = vmatpush1.bf16.msra.mxu0 %v2722
    %2763 = vmatprep.subr.bf16.mxu0 0
    %2764 = vmatpush1.bf16.msra.mxu0 %v2723
    %2765 = vmatprep.subr.bf16.mxu0 0
    %2766 = vmatpush1.bf16.msra.mxu0 %v2724
    %2767 = vmatprep.subr.bf16.mxu0 0
    %2768 = vmatpush1.bf16.msra.mxu0 %v2725
    %2769 = vmatprep.subr.bf16.mxu0 0
    %2770 = vmatpush1.bf16.msra.mxu0 %v2726
    %2771 = vmatprep.subr.bf16.mxu0 0
    %2772 = vmatpush1.bf16.msra.mxu0 %v2727
    %2773 = vmatprep.subr.bf16.mxu0 0
    %2774 = vmatpush1.bf16.msra.mxu0 %v2728
    %2775 = vmatprep.subr.bf16.mxu0 0
    %2776 = vmatpush1.bf16.msra.mxu0 %v2729
    %2777 = vmatprep.subr.bf16.mxu0 0
    %2778 = vmatpush1.bf16.msra.mxu0 %v2730
    %2779 = vmatprep.mubr.bf16.mxu0 %v2609
    %2780 = vmatmul.mubr.bf16.gmra.mrb[0].mxu0 %v2608
    %v2781 = vpop.f32.mrb[0].mxu0
    %v2782 = vadd.f32 %v2649, %v2781
    %v2783 = vpop.f32.mrb[0].mxu0
    %v2784 = vpop.f32.mrb[0].mxu0
    %v2785 = vadd.f32 %v2649, %v2784
    %v2786 = vpop.f32.mrb[0].mxu0
    %2787 = vdwg.mxu0
    %v2788 = vadd.f32 %v2448, %v2782
    %v2789 = vadd.f32 %v2449, %v2785
    %s2790 = scalar_lea.vmem %s15, 1
    %v2791 = vld [vmem:[%s2790] sm:$0x1]
    %s2792 = scalar_lea.vmem %s16, 1
    %v2793 = vld [vmem:[%s2792] sm:$0x1]
    %2794 = vadd.xlane.f32.xlu0 %v2788
    %v2795 = vpop.xlane.xlu0 %2794
    %2796 = vadd.xlane.f32.xlu0 %v2789
    %v2797 = vpop.xlane.xlu0 %2796
    %v2798 = vmul.f32 %v2795, %v1126
    %v2799 = vmul.f32 %v2797, %v1126
    %v2800 = vsub.f32 %v2788, %v2798
    %v2801 = vsub.f32 %v2789, %v2799
    %v2802 = vmul.f32 %v2800, %v2800
    %v2803 = vmul.f32 %v2801, %v2801
    %2804 = vadd.xlane.f32.xlu0 %v2802
    %v2805 = vpop.xlane.xlu0 %2804
    %2806 = vadd.xlane.f32.xlu0 %v2803
    %v2807 = vpop.xlane.xlu0 %2806
    %v2808 = vmul.f32 %v2805, %v1126
    %v2809 = vmul.f32 %v2807, %v1126
    %v2810 = vadd.f32 %v2808, 1e-05
    %v2811 = vadd.f32 %v2809, 1e-05
    %v2812 = vrsqrt.pop %v2810
    %v2813 = vrsqrt.pop %v2811
    %v2814 = vmul.f32 %v2800, %v2812
    %v2815 = vmul.f32 %v2801, %v2813
    %v2817 = vlaneseq
    %v2818 = vshrl.u32 %v2817, 7
    %v2819 = vsub.s32 0, %v2818
    %v2820 = vrot.slane %v2791, %v2819
    %v2822 = vmul.f32 %v2814, %v2820
    %v2823 = vmul.f32 %v2815, %v2820
    %v2825 = vlaneseq
    %v2826 = vshrl.u32 %v2825, 7
    %v2827 = vsub.s32 0, %v2826
    %v2828 = vrot.slane %v2793, %v2827
    %v2830 = vadd.f32 %v2822, %v2828
    %v2831 = vadd.f32 %v2823, %v2828
    %v2832 = vld [vmem:[%s17] sm:$0x1]
    %v2833 = vld [vmem:[%s18] sm:$0x1]
    %2834 = vadd.xlane.f32.xlu0 %v2830
    %v2835 = vpop.xlane.xlu0 %2834
    %2836 = vadd.xlane.f32.xlu0 %v2831
    %v2837 = vpop.xlane.xlu0 %2836
    %v2838 = vmul.f32 %v2835, %v1126
    %v2839 = vmul.f32 %v2837, %v1126
    %v2840 = vsub.f32 %v2830, %v2838
    %v2841 = vsub.f32 %v2831, %v2839
    %v2842 = vmul.f32 %v2840, %v2840
    %v2843 = vmul.f32 %v2841, %v2841
    %2844 = vadd.xlane.f32.xlu0 %v2842
    %v2845 = vpop.xlane.xlu0 %2844
    %2846 = vadd.xlane.f32.xlu0 %v2843
    %v2847 = vpop.xlane.xlu0 %2846
    %v2848 = vmul.f32 %v2845, %v1126
    %v2849 = vmul.f32 %v2847, %v1126
    %v2850 = vadd.f32 %v2848, 1e-05
    %v2851 = vadd.f32 %v2849, 1e-05
    %v2852 = vrsqrt.pop %v2850
    %v2853 = vrsqrt.pop %v2851
    %v2854 = vmul.f32 %v2840, %v2852
    %v2855 = vmul.f32 %v2841, %v2853
    %v2857 = vlaneseq
    %v2858 = vshrl.u32 %v2857, 7
    %v2859 = vsub.s32 0, %v2858
    %v2860 = vrot.slane %v2832, %v2859
    %v2862 = vmul.f32 %v2854, %v2860
    %v2863 = vmul.f32 %v2855, %v2860
    %v2865 = vlaneseq
    %v2866 = vshrl.u32 %v2865, 7
    %v2867 = vsub.s32 0, %v2866
    %v2868 = vrot.slane %v2833, %v2867
    %v2870 = vadd.f32 %v2862, %v2868
    %v2871 = vadd.f32 %v2863, %v2868
    %v2872 = vsel %vm182, 1, 0
    %v2873 = vsel %vm183, 1, 0
    %vm2874 = vcmp.eq.s32.totalorder %v2872, 1
    %vm2875 = vcmp.eq.s32.totalorder %v2873, 1
    %v2876 = vsel %vm2874, %v2870, -1e+30
    %v2877 = vsel %vm2875, %v2871, -1e+30
    %v2878 = vrot.slane %v2876, 4
    %v2879 = vmax.f32 %v2876, %v2878
    %v2880 = vrot.slane %v2879, 2
    %v2881 = vmax.f32 %v2879, %v2880
    %v2882 = vrot.slane %v2881, 1
    %v2883 = vmax.f32 %v2881, %v2882
    %v2884 = vrot.slane %v2877, 4
    %v2885 = vmax.f32 %v2877, %v2884
    %v2886 = vrot.slane %v2885, 2
    %v2887 = vmax.f32 %v2885, %v2886
    %v2888 = vrot.slane %v2887, 1
    %v2889 = vmax.f32 %v2887, %v2888
    %v2890 = vpack.c.bf16 %v2883, %v2883
    %v2891 = vpack.c.bf16 %v2889, %v2889
    %v2892 = vld [vmem:[%s19] sm:$0xf]
    %v2893 = vld [vmem:[%s19 + $0x4] sm:$0xf]
    %v2894 = vld [vmem:[%s19 + $0x8] sm:$0xf]
    %v2895 = vld [vmem:[%s19 + $0xc] sm:$0xf]
    %v2896 = vld [vmem:[%s19 + $0x10] sm:$0xf]
    %v2897 = vld [vmem:[%s19 + $0x14] sm:$0xf]
    %v2898 = vld [vmem:[%s19 + $0x18] sm:$0xf]
    %v2899 = vld [vmem:[%s19 + $0x1c] sm:$0xf]
    %v2900 = vld [vmem:[%s19 + $0x20] sm:$0xf]
    %v2901 = vld [vmem:[%s19 + $0x24] sm:$0xf]
    %v2902 = vld [vmem:[%s19 + $0x28] sm:$0xf]
    %v2903 = vld [vmem:[%s19 + $0x2c] sm:$0xf]
    %v2904 = vld [vmem:[%s19 + $0x30] sm:$0xf]
    %v2905 = vld [vmem:[%s19 + $0x34] sm:$0xf]
    %v2906 = vld [vmem:[%s19 + $0x38] sm:$0xf]
    %v2907 = vld [vmem:[%s19 + $0x3c] sm:$0xf]
    %v2908 = vld [vmem:[%s20] sm:$0x1]
    %v2910 = vlaneseq
    %v2911 = vshrl.u32 %v2910, 7
    %v2912 = vsub.s32 0, %v2911
    %v2913 = vrot.slane %v2908, %v2912
    %v2917 = vunpack.c.l.b16 %v2890
    %v2918 = vunpack.c.l.b16 %v2891
    %vm2919 = vcmask 1041409
    %v2920 = vsel %vm2919, %v2918, %v2917
    %v2921 = vpack.c.b16 %v2920, %v2920
    %v2939 = vunpack.c.l.b16 %v2892
    %v2940 = vunpack.c.l.b16 %v2893
    %v2941 = vunpack.c.l.b16 %v2894
    %v2942 = vunpack.c.l.b16 %v2895
    %v2943 = vunpack.c.l.b16 %v2896
    %v2944 = vunpack.c.l.b16 %v2897
    %v2945 = vunpack.c.l.b16 %v2898
    %v2946 = vunpack.c.l.b16 %v2899
    %v2947 = vunpack.c.l.b16 %v2900
    %v2948 = vunpack.c.l.b16 %v2901
    %v2949 = vunpack.c.l.b16 %v2902
    %v2950 = vunpack.c.l.b16 %v2903
    %v2951 = vunpack.c.l.b16 %v2904
    %v2952 = vunpack.c.l.b16 %v2905
    %v2953 = vunpack.c.l.b16 %v2906
    %v2954 = vunpack.c.l.b16 %v2907
    %v2955 = vpack.c.b16 %v2940, %v2939
    %v2956 = vpack.c.b16 %v2942, %v2941
    %v2957 = vpack.c.b16 %v2944, %v2943
    %v2958 = vpack.c.b16 %v2946, %v2945
    %v2959 = vpack.c.b16 %v2948, %v2947
    %v2960 = vpack.c.b16 %v2950, %v2949
    %v2961 = vpack.c.b16 %v2952, %v2951
    %v2962 = vpack.c.b16 %v2954, %v2953
    %2971 = vmatprep.subr.bf16.mxu0 0
    %2972 = vmatpush1.bf16.msra.mxu0 %v2955
    %2973 = vmatprep.subr.bf16.mxu0 0
    %2974 = vmatpush1.bf16.msra.mxu0 %v2956
    %2975 = vmatprep.subr.bf16.mxu0 0
    %2976 = vmatpush1.bf16.msra.mxu0 %v2957
    %2977 = vmatprep.subr.bf16.mxu0 0
    %2978 = vmatpush1.bf16.msra.mxu0 %v2958
    %2979 = vmatprep.subr.bf16.mxu0 0
    %2980 = vmatpush1.bf16.msra.mxu0 %v2959
    %2981 = vmatprep.subr.bf16.mxu0 0
    %2982 = vmatpush1.bf16.msra.mxu0 %v2960
    %2983 = vmatprep.subr.bf16.mxu0 0
    %2984 = vmatpush1.bf16.msra.mxu0 %v2961
    %2985 = vmatprep.subr.bf16.mxu0 0
    %2986 = vmatpush1.bf16.msra.mxu0 %v2962
    %2987 = vmatprep.subr.bf16.mxu0 0
    %2988 = vmatpush1.bf16.msra.mxu0 0
    %2989 = vmatprep.subr.bf16.mxu0 0
    %2990 = vmatpush1.bf16.msra.mxu0 0
    %2991 = vmatprep.subr.bf16.mxu0 0
    %2992 = vmatpush1.bf16.msra.mxu0 0
    %2993 = vmatprep.subr.bf16.mxu0 0
    %2994 = vmatpush1.bf16.msra.mxu0 0
    %2995 = vmatprep.subr.bf16.mxu0 0
    %2996 = vmatpush1.bf16.msra.mxu0 0
    %2997 = vmatprep.subr.bf16.mxu0 0
    %2998 = vmatpush1.bf16.msra.mxu0 0
    %2999 = vmatprep.subr.bf16.mxu0 0
    %3000 = vmatpush1.bf16.msra.mxu0 0
    %3001 = vmatprep.subr.bf16.mxu0 0
    %3002 = vmatpush1.bf16.msra.mxu0 0
    %3003 = vmatprep.mubr.bf16.mxu0 0
    %3004 = vmatmul.mubr.bf16.gmra.mrb[0].mxu0 %v2921
    %v3005 = vpop.f32.mrb[0].mxu0
    %v3006 = vadd.f32 %v2913, %v3005
    %v3007 = vpop.f32.mrb[0].mxu0
    %v3008 = vpop.f32.mrb[0].mxu0
    %v3009 = vpop.f32.mrb[0].mxu0
    %3010 = vdwg.mxu0
    %vm3011 = vcmp.lt.s32.totalorder %v92, 32
    %v3012 = vmul.f32 %v3006, 0.5
    %v3013 = vmul.f32 %v3012, 1.442695
    %v3014 = vpow.pop %v3013
    %v3015 = vsel %vm3011, %v3006, %v3014
    %3016 = vst [vmem:[%s21] sm:$0x3] %v3015
    // Predicated region
    $region90: #{_forward_jit.1} parent=1 // pred_check
      _
    $region91: #{_forward_jit.1} parent=1 // pred_check_branch
      %3018 = sbr.rel (0) target = $region93
    $region92: #{_forward_jit.1} parent=1 // pred_region
      _
    $region93: #{_forward_jit.1} parent=1 // pred_fallthru
      _
    // Predicated region
    $region94: #{_forward_jit.1} parent=1 // pred_check
      _
    $region95: #{_forward_jit.1} parent=1 // pred_check_branch
      %3020 = sbr.rel (0) target = $region97
    $region96: #{_forward_jit.1} parent=1 // pred_region
      _
    $region97: #{_forward_jit.1} parent=1 // pred_fallthru
      _
    %3021 = vsyncpa [#allocation3], 1

</llo_original>
